<compile_context>
chip_gen: v7x
topology: tpu7x:2x2x1
jax: 0.10.0
libtpu: 0.0.40
codegen_flags: <defaults>
</compile_context>

<pallas_src>
import functools

import jax
import jax.numpy as jnp
from jax.experimental import pallas as pl
from jax.experimental.pallas import tpu as pltpu


def _fused_ussrnet_kernel(x_taps_ref, masks_ref, w0_ref, b0_ref,
                          wm_ref, bm_ref, w7_ref, b7_ref, o_ref,
                          *, H, W, offsets, n_mid, channels):
    """Whole 8-layer network for one batch element.

    x_taps_ref: (1, 9*Cin, H*W)  im2col of the zero-padded input image
    masks_ref : (9, H*W)         per-tap boundary masks (1 inside, 0 outside)
    w0_ref    : (C, 9*Cin)       layer-0 weights,  b0_ref: (C, 1)
    wm_ref    : (n_mid, C, 9*C)  middle weights,   bm_ref: (n_mid, C, 1)
    w7_ref    : (Cout, 9*C)      last-layer weights, b7_ref: (Cout, 1)
    o_ref     : (1, Cout, H*W)
    """
    HW = H * W
    C = channels
    masks = masks_ref[...]                                  # (9, HW) f32

    def shifted_taps(act):
        # act: (C, HW) -> 9 dilated-shifted, zero-masked copies (all (C, HW)).
        taps = []
        for t, (dy, dx) in enumerate(offsets):
            off = dy * W + dx
            if dy == 0 and dx == 0:
                taps.append(act)                            # center tap
            else:
                rolled = pltpu.roll(act, (-off) % HW, 1)    # XLU lane rotate
                taps.append(rolled * masks[t:t + 1, :])     # zero the halo
        return taps

    def conv_layer(act, w, b, relu):
        # One K = 9*C matmul on the MXU per layer (lane-dense (Cout, HW) out).
        patches = jnp.concatenate(shifted_taps(act), axis=0)   # (9*C, HW)
        z = jnp.dot(w, patches, preferred_element_type=jnp.float32) + b
        return jnp.maximum(z, 0.0) if relu else z

    # ---- layer 0: Cin == 1 -> VPU broadcast multiply-adds (K=9 matmul would
    #      waste an MXU push), im2col of the input was done in the wrapper.
    xt = x_taps_ref[0].astype(jnp.float32)                  # (9*Cin, HW)
    w0 = w0_ref[...]                                        # (C, 9*Cin)
    acc = jnp.zeros((C, HW), jnp.float32)
    for k in range(xt.shape[0]):
        acc = acc + w0[:, k:k + 1] * xt[k:k + 1, :]
    act = jnp.maximum(acc + b0_ref[...], 0.0)

    # ---- layers 1 .. n_mid: C -> C with ReLU.
    for l in range(n_mid):
        act = conv_layer(act, wm_ref[l], bm_ref[l], relu=True)

    # ---- last layer: C -> Cout, no ReLU.
    out = conv_layer(act, w7_ref[...], b7_ref[...], relu=False)
    o_ref[0] = out.astype(o_ref.dtype)


def ussrnet8_forward(x_nchw, params, *, dilation=2):
    """Forward pass matching USSRNet_8_delated. x_nchw: (N, Cin, H, W)."""
    N, Cin, H, W = x_nchw.shape
    HW = H * W
    d = dilation
    dt = x_nchw.dtype

    (w0h, b0), mids, (w7h, b7) = params[0], params[1:-1], params[-1]
    C = w0h.shape[-1]
    Cout = w7h.shape[-1]
    n_mid = len(mids)

    # Tap offsets (dy, dx), same (ky, kx) order as the weights and masks.
    offsets = tuple((d * (ky - 1), d * (kx - 1))
                    for ky in range(3) for kx in range(3))

    # im2col of the input (layer 0) in plain JAX: shift + zero pad.
    x_pad = jnp.pad(x_nchw, ((0, 0), (0, 0), (d, d), (d, d)))
    x_taps = jnp.concatenate(
        [x_pad[:, :, ky * d:ky * d + H, kx * d:kx * d + W].reshape(N, Cin, HW)
         for ky in range(3) for kx in range(3)], axis=1)      # (N, 9*Cin, HW)

    # Boundary masks for the in-kernel roll-based shifts (layers 1..7).
    hh = jnp.arange(H)
    ww = jnp.arange(W)
    masks = jnp.stack([
        (((hh + dy >= 0) & (hh + dy < H))[:, None]
         & ((ww + dx >= 0) & (ww + dx < W))[None, :]).reshape(HW)
        for dy, dx in offsets]).astype(jnp.float32)            # (9, HW)

    def to2d(w_hwio):
        # (3, 3, Cin, Cout) -> (Cout, 9*Cin) with K index = tap*Cin + cin
        co = w_hwio.shape[-1]
        return jnp.transpose(w_hwio, (3, 0, 1, 2)).reshape(co, -1)

    w0 = to2d(w0h)                                  # (C, 9*Cin)
    b0c = b0.reshape(C, 1)
    wm = jnp.stack([to2d(w) for w, _ in mids])      # (n_mid, C, 9*C)
    bm = jnp.stack([b.reshape(C, 1) for _, b in mids])
    w7 = to2d(w7h)                                  # (Cout, 9*C)
    b7c = b7.reshape(Cout, 1)

    kernel = functools.partial(
        _fused_ussrnet_kernel, H=H, W=W, offsets=offsets,
        n_mid=n_mid, channels=C)

    out_flat = pl.pallas_call(
        kernel,
        out_shape=jax.ShapeDtypeStruct((N, Cout, HW), dt),
        grid_spec=pltpu.PrefetchScalarGridSpec(
            num_scalar_prefetch=0,
            grid=(N,),
            in_specs=[
                pl.BlockSpec((1, 9 * Cin, HW), lambda n: (n, 0, 0)),   # x_taps
                pl.BlockSpec((9, HW), lambda n: (0, 0)),               # masks
                pl.BlockSpec((C, 9 * Cin), lambda n: (0, 0)),          # w0
                pl.BlockSpec((C, 1), lambda n: (0, 0)),                # b0
                pl.BlockSpec((n_mid, C, 9 * C), lambda n: (0, 0, 0)),  # wm
                pl.BlockSpec((n_mid, C, 1), lambda n: (0, 0, 0)),      # bm
                pl.BlockSpec((Cout, 9 * C), lambda n: (0, 0)),         # w7
                pl.BlockSpec((Cout, 1), lambda n: (0, 0)),             # b7
            ],
            out_specs=pl.BlockSpec((1, Cout, HW), lambda n: (n, 0, 0)),
        ),
        compiler_params=pltpu.CompilerParams(
            dimension_semantics=("parallel",)),
    )(x_taps, masks, w0, b0c, wm, bm, w7, b7c)

    return out_flat.reshape(N, Cout, H, W)


def init_params(key, input_channels=1, channels=32, kernel_size=3):
    """Deterministic synthetic weights (HWIO layout), matching module shapes."""
    ks = kernel_size
    io = [(input_channels, channels)] + [(channels, channels)] * 6 + \
         [(channels, input_channels)]
    params = []
    for cin, cout in io:
        key, kw, kb = jax.random.split(key, 3)
        fan_in = cin * ks * ks
        scale = 1.0 / jnp.sqrt(jnp.float32(fan_in))
        w = jax.random.uniform(kw, (ks, ks, cin, cout), jnp.float32,
                               -scale, scale)
        bb = jax.random.uniform(kb, (cout,), jnp.float32, -scale, scale)
        params.append((w, bb))
    return params


def _reference_forward(x_nchw, params, *, dilation=2):
    """Pure-JAX reference (dilated lax conv) for correctness check."""
    x = x_nchw
    for i, (w, b) in enumerate(params):
        y = jax.lax.conv_general_dilated(
            x, w, window_strides=(1, 1),
            padding=[(dilation, dilation), (dilation, dilation)],
            rhs_dilation=(dilation, dilation),
            dimension_numbers=("NCHW", "HWIO", "NCHW"))
        y = y + b[None, :, None, None]
        if i != len(params) - 1:
            y = jnp.maximum(y, 0.0)
        x = y
    return x


if __name__ == "__main__":
    key = jax.random.PRNGKey(0)
    k_x, k_p = jax.random.split(key)

    N, Cin, H, W = 2, 1, 16, 16
    channels = 32
    dilation = 2
    x = jax.random.normal(k_x, (N, Cin, H, W), jnp.float32)
    params = init_params(k_p, input_channels=Cin, channels=channels)

    out = ussrnet8_forward(x, params, dilation=dilation)
    out = jax.block_until_ready(out)

    ref = _reference_forward(x, params, dilation=dilation)
    assert out.shape == (N, Cin, H, W)
    max_err = float(jnp.max(jnp.abs(out - ref)))
    assert jnp.allclose(out, ref, atol=1e-3, rtol=1e-3), \
        f"mismatch vs reference, max abs err = {max_err}"

    print("KERNEL_OK")
</pallas_src>

<mosaic_0001>
module attributes {stable_mosaic.version = 11 : i64} {
  func.func @_fused_ussrnet_kernel(%arg0: i32, %arg1: memref<1x9x256xf32, #tpu.memory_space<vmem>>, %arg2: memref<9x256xf32, #tpu.memory_space<vmem>>, %arg3: memref<32x9xf32, #tpu.memory_space<vmem>>, %arg4: memref<32x1xf32, #tpu.memory_space<vmem>>, %arg5: memref<6x32x288xf32, #tpu.memory_space<vmem>>, %arg6: memref<6x32x1xf32, #tpu.memory_space<vmem>>, %arg7: memref<1x288xf32, #tpu.memory_space<vmem>>, %arg8: memref<1x1xf32, #tpu.memory_space<vmem>>, %arg9: memref<1x1x256xf32, #tpu.memory_space<vmem>>) attributes {dimension_semantics = [#tpu.dimension_semantics<parallel>], iteration_bounds = array<i64: 2>, scalar_prefetch = 0 : i64, scratch_operands = 0 : i64, tpu.core_type = #tpu.core_type<tc>, window_params = [{transform_indices = @transform_0, window_bounds = array<i64: 1, 9, 256>}, {pipeline_mode = #tpu.pipeline_mode<synchronous>, transform_indices = @transform_1, window_bounds = array<i64: 9, 256>}, {pipeline_mode = #tpu.pipeline_mode<synchronous>, transform_indices = @transform_2, window_bounds = array<i64: 32, 9>}, {pipeline_mode = #tpu.pipeline_mode<synchronous>, transform_indices = @transform_3, window_bounds = array<i64: 32, 1>}, {pipeline_mode = #tpu.pipeline_mode<synchronous>, transform_indices = @transform_4, window_bounds = array<i64: 6, 32, 288>}, {pipeline_mode = #tpu.pipeline_mode<synchronous>, transform_indices = @transform_5, window_bounds = array<i64: 6, 32, 1>}, {pipeline_mode = #tpu.pipeline_mode<synchronous>, transform_indices = @transform_6, window_bounds = array<i64: 1, 288>}, {pipeline_mode = #tpu.pipeline_mode<synchronous>, transform_indices = @transform_7, window_bounds = array<i64: 1, 1>}, {transform_indices = @transform_8, window_bounds = array<i64: 1, 1, 256>}]} {
    %c0 = arith.constant 0 : index
    %c0_0 = arith.constant 0 : index
    %0 = vector.load %arg2[%c0, %c0_0] : memref<9x256xf32, #tpu.memory_space<vmem>>, vector<9x256xf32>
    %c0_1 = arith.constant 0 : index
    %c0_2 = arith.constant 0 : index
    %c0_3 = arith.constant 0 : index
    %1 = vector.load %arg1[%c0_1, %c0_2, %c0_3] : memref<1x9x256xf32, #tpu.memory_space<vmem>>, vector<1x9x256xf32>
    %2 = vector.shape_cast %1 : vector<1x9x256xf32> to vector<9x256xf32>
    %c0_4 = arith.constant 0 : index
    %c0_5 = arith.constant 0 : index
    %3 = vector.load %arg3[%c0_4, %c0_5] : memref<32x9xf32, #tpu.memory_space<vmem>>, vector<32x9xf32>
    %cst = arith.constant 0.000000e+00 : f32
    %4 = vector.broadcast %cst : f32 to vector<32x256xf32>
    %5 = vector.extract_strided_slice %3 {offsets = [0, 0], sizes = [32, 1], strides = [1, 1]} : vector<32x9xf32> to vector<32x1xf32>
    %6 = vector.extract_strided_slice %2 {offsets = [0, 0], sizes = [1, 256], strides = [1, 1]} : vector<9x256xf32> to vector<1x256xf32>
    %7 = vector.broadcast %5 : vector<32x1xf32> to vector<32x256xf32>
    %8 = vector.broadcast %6 : vector<1x256xf32> to vector<32x256xf32>
    %9 = arith.mulf %7, %8 : vector<32x256xf32>
    %10 = arith.addf %4, %9 : vector<32x256xf32>
    %11 = vector.extract_strided_slice %3 {offsets = [0, 1], sizes = [32, 1], strides = [1, 1]} : vector<32x9xf32> to vector<32x1xf32>
    %12 = vector.extract_strided_slice %2 {offsets = [1, 0], sizes = [1, 256], strides = [1, 1]} : vector<9x256xf32> to vector<1x256xf32>
    %13 = vector.broadcast %11 : vector<32x1xf32> to vector<32x256xf32>
    %14 = vector.broadcast %12 : vector<1x256xf32> to vector<32x256xf32>
    %15 = arith.mulf %13, %14 : vector<32x256xf32>
    %16 = arith.addf %10, %15 : vector<32x256xf32>
    %17 = vector.extract_strided_slice %3 {offsets = [0, 2], sizes = [32, 1], strides = [1, 1]} : vector<32x9xf32> to vector<32x1xf32>
    %18 = vector.extract_strided_slice %2 {offsets = [2, 0], sizes = [1, 256], strides = [1, 1]} : vector<9x256xf32> to vector<1x256xf32>
    %19 = vector.broadcast %17 : vector<32x1xf32> to vector<32x256xf32>
    %20 = vector.broadcast %18 : vector<1x256xf32> to vector<32x256xf32>
    %21 = arith.mulf %19, %20 : vector<32x256xf32>
    %22 = arith.addf %16, %21 : vector<32x256xf32>
    %23 = vector.extract_strided_slice %3 {offsets = [0, 3], sizes = [32, 1], strides = [1, 1]} : vector<32x9xf32> to vector<32x1xf32>
    %24 = vector.extract_strided_slice %2 {offsets = [3, 0], sizes = [1, 256], strides = [1, 1]} : vector<9x256xf32> to vector<1x256xf32>
    %25 = vector.broadcast %23 : vector<32x1xf32> to vector<32x256xf32>
    %26 = vector.broadcast %24 : vector<1x256xf32> to vector<32x256xf32>
    %27 = arith.mulf %25, %26 : vector<32x256xf32>
    %28 = arith.addf %22, %27 : vector<32x256xf32>
    %29 = vector.extract_strided_slice %3 {offsets = [0, 4], sizes = [32, 1], strides = [1, 1]} : vector<32x9xf32> to vector<32x1xf32>
    %30 = vector.extract_strided_slice %2 {offsets = [4, 0], sizes = [1, 256], strides = [1, 1]} : vector<9x256xf32> to vector<1x256xf32>
    %31 = vector.broadcast %29 : vector<32x1xf32> to vector<32x256xf32>
    %32 = vector.broadcast %30 : vector<1x256xf32> to vector<32x256xf32>
    %33 = arith.mulf %31, %32 : vector<32x256xf32>
    %34 = arith.addf %28, %33 : vector<32x256xf32>
    %35 = vector.extract_strided_slice %3 {offsets = [0, 5], sizes = [32, 1], strides = [1, 1]} : vector<32x9xf32> to vector<32x1xf32>
    %36 = vector.extract_strided_slice %2 {offsets = [5, 0], sizes = [1, 256], strides = [1, 1]} : vector<9x256xf32> to vector<1x256xf32>
    %37 = vector.broadcast %35 : vector<32x1xf32> to vector<32x256xf32>
    %38 = vector.broadcast %36 : vector<1x256xf32> to vector<32x256xf32>
    %39 = arith.mulf %37, %38 : vector<32x256xf32>
    %40 = arith.addf %34, %39 : vector<32x256xf32>
    %41 = vector.extract_strided_slice %3 {offsets = [0, 6], sizes = [32, 1], strides = [1, 1]} : vector<32x9xf32> to vector<32x1xf32>
    %42 = vector.extract_strided_slice %2 {offsets = [6, 0], sizes = [1, 256], strides = [1, 1]} : vector<9x256xf32> to vector<1x256xf32>
    %43 = vector.broadcast %41 : vector<32x1xf32> to vector<32x256xf32>
    %44 = vector.broadcast %42 : vector<1x256xf32> to vector<32x256xf32>
    %45 = arith.mulf %43, %44 : vector<32x256xf32>
    %46 = arith.addf %40, %45 : vector<32x256xf32>
    %47 = vector.extract_strided_slice %3 {offsets = [0, 7], sizes = [32, 1], strides = [1, 1]} : vector<32x9xf32> to vector<32x1xf32>
    %48 = vector.extract_strided_slice %2 {offsets = [7, 0], sizes = [1, 256], strides = [1, 1]} : vector<9x256xf32> to vector<1x256xf32>
    %49 = vector.broadcast %47 : vector<32x1xf32> to vector<32x256xf32>
    %50 = vector.broadcast %48 : vector<1x256xf32> to vector<32x256xf32>
    %51 = arith.mulf %49, %50 : vector<32x256xf32>
    %52 = arith.addf %46, %51 : vector<32x256xf32>
    %53 = vector.extract_strided_slice %3 {offsets = [0, 8], sizes = [32, 1], strides = [1, 1]} : vector<32x9xf32> to vector<32x1xf32>
    %54 = vector.extract_strided_slice %2 {offsets = [8, 0], sizes = [1, 256], strides = [1, 1]} : vector<9x256xf32> to vector<1x256xf32>
    %55 = vector.broadcast %53 : vector<32x1xf32> to vector<32x256xf32>
    %56 = vector.broadcast %54 : vector<1x256xf32> to vector<32x256xf32>
    %57 = arith.mulf %55, %56 : vector<32x256xf32>
    %58 = arith.addf %52, %57 : vector<32x256xf32>
    %c0_6 = arith.constant 0 : index
    %c0_7 = arith.constant 0 : index
    %59 = vector.load %arg4[%c0_6, %c0_7] : memref<32x1xf32, #tpu.memory_space<vmem>>, vector<32x1xf32>
    %60 = vector.broadcast %59 : vector<32x1xf32> to vector<32x256xf32>
    %61 = arith.addf %58, %60 : vector<32x256xf32>
    %cst_8 = arith.constant 0.000000e+00 : f32
    %62 = vector.broadcast %cst_8 : f32 to vector<32x256xf32>
    %63 = arith.maximumf %61, %62 : vector<32x256xf32>
    %c0_9 = arith.constant 0 : index
    %c0_10 = arith.constant 0 : index
    %c0_11 = arith.constant 0 : index
    %64 = vector.load %arg5[%c0_9, %c0_10, %c0_11] : memref<6x32x288xf32, #tpu.memory_space<vmem>>, vector<1x32x288xf32>
    %65 = vector.shape_cast %64 : vector<1x32x288xf32> to vector<32x288xf32>
    %c0_12 = arith.constant 0 : index
    %c0_13 = arith.constant 0 : index
    %c0_14 = arith.constant 0 : index
    %66 = vector.load %arg6[%c0_12, %c0_13, %c0_14] : memref<6x32x1xf32, #tpu.memory_space<vmem>>, vector<1x32x1xf32>
    %67 = vector.shape_cast %66 : vector<1x32x1xf32> to vector<32x1xf32>
    %c34_i32 = arith.constant 34 : i32
    %68 = tpu.dynamic_rotate %63 by %c34_i32 dim 1 : vector<32x256xf32>, i32 -> vector<32x256xf32>
    %69 = vector.extract_strided_slice %0 {offsets = [0, 0], sizes = [1, 256], strides = [1, 1]} : vector<9x256xf32> to vector<1x256xf32>
    %70 = vector.broadcast %69 : vector<1x256xf32> to vector<32x256xf32>
    %71 = arith.mulf %68, %70 : vector<32x256xf32>
    %c32_i32 = arith.constant 32 : i32
    %72 = tpu.dynamic_rotate %63 by %c32_i32 dim 1 : vector<32x256xf32>, i32 -> vector<32x256xf32>
    %73 = vector.extract_strided_slice %0 {offsets = [1, 0], sizes = [1, 256], strides = [1, 1]} : vector<9x256xf32> to vector<1x256xf32>
    %74 = vector.broadcast %73 : vector<1x256xf32> to vector<32x256xf32>
    %75 = arith.mulf %72, %74 : vector<32x256xf32>
    %c30_i32 = arith.constant 30 : i32
    %76 = tpu.dynamic_rotate %63 by %c30_i32 dim 1 : vector<32x256xf32>, i32 -> vector<32x256xf32>
    %77 = vector.extract_strided_slice %0 {offsets = [2, 0], sizes = [1, 256], strides = [1, 1]} : vector<9x256xf32> to vector<1x256xf32>
    %78 = vector.broadcast %77 : vector<1x256xf32> to vector<32x256xf32>
    %79 = arith.mulf %76, %78 : vector<32x256xf32>
    %c2_i32 = arith.constant 2 : i32
    %80 = tpu.dynamic_rotate %63 by %c2_i32 dim 1 : vector<32x256xf32>, i32 -> vector<32x256xf32>
    %81 = vector.extract_strided_slice %0 {offsets = [3, 0], sizes = [1, 256], strides = [1, 1]} : vector<9x256xf32> to vector<1x256xf32>
    %82 = vector.broadcast %81 : vector<1x256xf32> to vector<32x256xf32>
    %83 = arith.mulf %80, %82 : vector<32x256xf32>
    %c254_i32 = arith.constant 254 : i32
    %84 = tpu.dynamic_rotate %63 by %c254_i32 dim 1 : vector<32x256xf32>, i32 -> vector<32x256xf32>
    %85 = vector.extract_strided_slice %0 {offsets = [5, 0], sizes = [1, 256], strides = [1, 1]} : vector<9x256xf32> to vector<1x256xf32>
    %86 = vector.broadcast %85 : vector<1x256xf32> to vector<32x256xf32>
    %87 = arith.mulf %84, %86 : vector<32x256xf32>
    %c226_i32 = arith.constant 226 : i32
    %88 = tpu.dynamic_rotate %63 by %c226_i32 dim 1 : vector<32x256xf32>, i32 -> vector<32x256xf32>
    %89 = vector.extract_strided_slice %0 {offsets = [6, 0], sizes = [1, 256], strides = [1, 1]} : vector<9x256xf32> to vector<1x256xf32>
    %90 = vector.broadcast %89 : vector<1x256xf32> to vector<32x256xf32>
    %91 = arith.mulf %88, %90 : vector<32x256xf32>
    %c224_i32 = arith.constant 224 : i32
    %92 = tpu.dynamic_rotate %63 by %c224_i32 dim 1 : vector<32x256xf32>, i32 -> vector<32x256xf32>
    %93 = vector.extract_strided_slice %0 {offsets = [7, 0], sizes = [1, 256], strides = [1, 1]} : vector<9x256xf32> to vector<1x256xf32>
    %94 = vector.broadcast %93 : vector<1x256xf32> to vector<32x256xf32>
    %95 = arith.mulf %92, %94 : vector<32x256xf32>
    %c222_i32 = arith.constant 222 : i32
    %96 = tpu.dynamic_rotate %63 by %c222_i32 dim 1 : vector<32x256xf32>, i32 -> vector<32x256xf32>
    %97 = vector.extract_strided_slice %0 {offsets = [8, 0], sizes = [1, 256], strides = [1, 1]} : vector<9x256xf32> to vector<1x256xf32>
    %98 = vector.broadcast %97 : vector<1x256xf32> to vector<32x256xf32>
    %99 = arith.mulf %96, %98 : vector<32x256xf32>
    %100 = tpu.concatenate %71, %75, %79, %83, %63, %87, %91, %95, %99 in 0 : vector<32x256xf32>, vector<32x256xf32>, vector<32x256xf32>, vector<32x256xf32>, vector<32x256xf32>, vector<32x256xf32>, vector<32x256xf32>, vector<32x256xf32>, vector<32x256xf32> -> vector<288x256xf32>
    %cst_15 = arith.constant dense<0.000000e+00> : vector<32x256xf32>
    %101 = tpu.matmul %65, %100, %cst_15 {dimension_numbers = #tpu.dot_dimension_numbers<[1], [0], [0], [1], [0, 0, 1, 1], [], []>} : vector<32x288xf32>, vector<288x256xf32>, vector<32x256xf32> -> vector<32x256xf32>
    %102 = vector.broadcast %67 : vector<32x1xf32> to vector<32x256xf32>
    %103 = arith.addf %101, %102 : vector<32x256xf32>
    %cst_16 = arith.constant 0.000000e+00 : f32
    %104 = vector.broadcast %cst_16 : f32 to vector<32x256xf32>
    %105 = arith.maximumf %103, %104 : vector<32x256xf32>
    %c1 = arith.constant 1 : index
    %c0_17 = arith.constant 0 : index
    %c0_18 = arith.constant 0 : index
    %106 = vector.load %arg5[%c1, %c0_17, %c0_18] : memref<6x32x288xf32, #tpu.memory_space<vmem>>, vector<1x32x288xf32>
    %107 = vector.shape_cast %106 : vector<1x32x288xf32> to vector<32x288xf32>
    %c1_19 = arith.constant 1 : index
    %c0_20 = arith.constant 0 : index
    %c0_21 = arith.constant 0 : index
    %108 = vector.load %arg6[%c1_19, %c0_20, %c0_21] : memref<6x32x1xf32, #tpu.memory_space<vmem>>, vector<1x32x1xf32>
    %109 = vector.shape_cast %108 : vector<1x32x1xf32> to vector<32x1xf32>
    %c34_i32_22 = arith.constant 34 : i32
    %110 = tpu.dynamic_rotate %105 by %c34_i32_22 dim 1 : vector<32x256xf32>, i32 -> vector<32x256xf32>
    %111 = vector.extract_strided_slice %0 {offsets = [0, 0], sizes = [1, 256], strides = [1, 1]} : vector<9x256xf32> to vector<1x256xf32>
    %112 = vector.broadcast %111 : vector<1x256xf32> to vector<32x256xf32>
    %113 = arith.mulf %110, %112 : vector<32x256xf32>
    %c32_i32_23 = arith.constant 32 : i32
    %114 = tpu.dynamic_rotate %105 by %c32_i32_23 dim 1 : vector<32x256xf32>, i32 -> vector<32x256xf32>
    %115 = vector.extract_strided_slice %0 {offsets = [1, 0], sizes = [1, 256], strides = [1, 1]} : vector<9x256xf32> to vector<1x256xf32>
    %116 = vector.broadcast %115 : vector<1x256xf32> to vector<32x256xf32>
    %117 = arith.mulf %114, %116 : vector<32x256xf32>
    %c30_i32_24 = arith.constant 30 : i32
    %118 = tpu.dynamic_rotate %105 by %c30_i32_24 dim 1 : vector<32x256xf32>, i32 -> vector<32x256xf32>
    %119 = vector.extract_strided_slice %0 {offsets = [2, 0], sizes = [1, 256], strides = [1, 1]} : vector<9x256xf32> to vector<1x256xf32>
    %120 = vector.broadcast %119 : vector<1x256xf32> to vector<32x256xf32>
    %121 = arith.mulf %118, %120 : vector<32x256xf32>
    %c2_i32_25 = arith.constant 2 : i32
    %122 = tpu.dynamic_rotate %105 by %c2_i32_25 dim 1 : vector<32x256xf32>, i32 -> vector<32x256xf32>
    %123 = vector.extract_strided_slice %0 {offsets = [3, 0], sizes = [1, 256], strides = [1, 1]} : vector<9x256xf32> to vector<1x256xf32>
    %124 = vector.broadcast %123 : vector<1x256xf32> to vector<32x256xf32>
    %125 = arith.mulf %122, %124 : vector<32x256xf32>
    %c254_i32_26 = arith.constant 254 : i32
    %126 = tpu.dynamic_rotate %105 by %c254_i32_26 dim 1 : vector<32x256xf32>, i32 -> vector<32x256xf32>
    %127 = vector.extract_strided_slice %0 {offsets = [5, 0], sizes = [1, 256], strides = [1, 1]} : vector<9x256xf32> to vector<1x256xf32>
    %128 = vector.broadcast %127 : vector<1x256xf32> to vector<32x256xf32>
    %129 = arith.mulf %126, %128 : vector<32x256xf32>
    %c226_i32_27 = arith.constant 226 : i32
    %130 = tpu.dynamic_rotate %105 by %c226_i32_27 dim 1 : vector<32x256xf32>, i32 -> vector<32x256xf32>
    %131 = vector.extract_strided_slice %0 {offsets = [6, 0], sizes = [1, 256], strides = [1, 1]} : vector<9x256xf32> to vector<1x256xf32>
    %132 = vector.broadcast %131 : vector<1x256xf32> to vector<32x256xf32>
    %133 = arith.mulf %130, %132 : vector<32x256xf32>
    %c224_i32_28 = arith.constant 224 : i32
    %134 = tpu.dynamic_rotate %105 by %c224_i32_28 dim 1 : vector<32x256xf32>, i32 -> vector<32x256xf32>
    %135 = vector.extract_strided_slice %0 {offsets = [7, 0], sizes = [1, 256], strides = [1, 1]} : vector<9x256xf32> to vector<1x256xf32>
    %136 = vector.broadcast %135 : vector<1x256xf32> to vector<32x256xf32>
    %137 = arith.mulf %134, %136 : vector<32x256xf32>
    %c222_i32_29 = arith.constant 222 : i32
    %138 = tpu.dynamic_rotate %105 by %c222_i32_29 dim 1 : vector<32x256xf32>, i32 -> vector<32x256xf32>
    %139 = vector.extract_strided_slice %0 {offsets = [8, 0], sizes = [1, 256], strides = [1, 1]} : vector<9x256xf32> to vector<1x256xf32>
    %140 = vector.broadcast %139 : vector<1x256xf32> to vector<32x256xf32>
    %141 = arith.mulf %138, %140 : vector<32x256xf32>
    %142 = tpu.concatenate %113, %117, %121, %125, %105, %129, %133, %137, %141 in 0 : vector<32x256xf32>, vector<32x256xf32>, vector<32x256xf32>, vector<32x256xf32>, vector<32x256xf32>, vector<32x256xf32>, vector<32x256xf32>, vector<32x256xf32>, vector<32x256xf32> -> vector<288x256xf32>
    %cst_30 = arith.constant dense<0.000000e+00> : vector<32x256xf32>
    %143 = tpu.matmul %107, %142, %cst_30 {dimension_numbers = #tpu.dot_dimension_numbers<[1], [0], [0], [1], [0, 0, 1, 1], [], []>} : vector<32x288xf32>, vector<288x256xf32>, vector<32x256xf32> -> vector<32x256xf32>
    %144 = vector.broadcast %109 : vector<32x1xf32> to vector<32x256xf32>
    %145 = arith.addf %143, %144 : vector<32x256xf32>
    %cst_31 = arith.constant 0.000000e+00 : f32
    %146 = vector.broadcast %cst_31 : f32 to vector<32x256xf32>
    %147 = arith.maximumf %145, %146 : vector<32x256xf32>
    %c2 = arith.constant 2 : index
    %c0_32 = arith.constant 0 : index
    %c0_33 = arith.constant 0 : index
    %148 = vector.load %arg5[%c2, %c0_32, %c0_33] : memref<6x32x288xf32, #tpu.memory_space<vmem>>, vector<1x32x288xf32>
    %149 = vector.shape_cast %148 : vector<1x32x288xf32> to vector<32x288xf32>
    %c2_34 = arith.constant 2 : index
    %c0_35 = arith.constant 0 : index
    %c0_36 = arith.constant 0 : index
    %150 = vector.load %arg6[%c2_34, %c0_35, %c0_36] : memref<6x32x1xf32, #tpu.memory_space<vmem>>, vector<1x32x1xf32>
    %151 = vector.shape_cast %150 : vector<1x32x1xf32> to vector<32x1xf32>
    %c34_i32_37 = arith.constant 34 : i32
    %152 = tpu.dynamic_rotate %147 by %c34_i32_37 dim 1 : vector<32x256xf32>, i32 -> vector<32x256xf32>
    %153 = vector.extract_strided_slice %0 {offsets = [0, 0], sizes = [1, 256], strides = [1, 1]} : vector<9x256xf32> to vector<1x256xf32>
    %154 = vector.broadcast %153 : vector<1x256xf32> to vector<32x256xf32>
    %155 = arith.mulf %152, %154 : vector<32x256xf32>
    %c32_i32_38 = arith.constant 32 : i32
    %156 = tpu.dynamic_rotate %147 by %c32_i32_38 dim 1 : vector<32x256xf32>, i32 -> vector<32x256xf32>
    %157 = vector.extract_strided_slice %0 {offsets = [1, 0], sizes = [1, 256], strides = [1, 1]} : vector<9x256xf32> to vector<1x256xf32>
    %158 = vector.broadcast %157 : vector<1x256xf32> to vector<32x256xf32>
    %159 = arith.mulf %156, %158 : vector<32x256xf32>
    %c30_i32_39 = arith.constant 30 : i32
    %160 = tpu.dynamic_rotate %147 by %c30_i32_39 dim 1 : vector<32x256xf32>, i32 -> vector<32x256xf32>
    %161 = vector.extract_strided_slice %0 {offsets = [2, 0], sizes = [1, 256], strides = [1, 1]} : vector<9x256xf32> to vector<1x256xf32>
    %162 = vector.broadcast %161 : vector<1x256xf32> to vector<32x256xf32>
    %163 = arith.mulf %160, %162 : vector<32x256xf32>
    %c2_i32_40 = arith.constant 2 : i32
    %164 = tpu.dynamic_rotate %147 by %c2_i32_40 dim 1 : vector<32x256xf32>, i32 -> vector<32x256xf32>
    %165 = vector.extract_strided_slice %0 {offsets = [3, 0], sizes = [1, 256], strides = [1, 1]} : vector<9x256xf32> to vector<1x256xf32>
    %166 = vector.broadcast %165 : vector<1x256xf32> to vector<32x256xf32>
    %167 = arith.mulf %164, %166 : vector<32x256xf32>
    %c254_i32_41 = arith.constant 254 : i32
    %168 = tpu.dynamic_rotate %147 by %c254_i32_41 dim 1 : vector<32x256xf32>, i32 -> vector<32x256xf32>
    %169 = vector.extract_strided_slice %0 {offsets = [5, 0], sizes = [1, 256], strides = [1, 1]} : vector<9x256xf32> to vector<1x256xf32>
    %170 = vector.broadcast %169 : vector<1x256xf32> to vector<32x256xf32>
    %171 = arith.mulf %168, %170 : vector<32x256xf32>
    %c226_i32_42 = arith.constant 226 : i32
    %172 = tpu.dynamic_rotate %147 by %c226_i32_42 dim 1 : vector<32x256xf32>, i32 -> vector<32x256xf32>
    %173 = vector.extract_strided_slice %0 {offsets = [6, 0], sizes = [1, 256], strides = [1, 1]} : vector<9x256xf32> to vector<1x256xf32>
    %174 = vector.broadcast %173 : vector<1x256xf32> to vector<32x256xf32>
    %175 = arith.mulf %172, %174 : vector<32x256xf32>
    %c224_i32_43 = arith.constant 224 : i32
    %176 = tpu.dynamic_rotate %147 by %c224_i32_43 dim 1 : vector<32x256xf32>, i32 -> vector<32x256xf32>
    %177 = vector.extract_strided_slice %0 {offsets = [7, 0], sizes = [1, 256], strides = [1, 1]} : vector<9x256xf32> to vector<1x256xf32>
    %178 = vector.broadcast %177 : vector<1x256xf32> to vector<32x256xf32>
    %179 = arith.mulf %176, %178 : vector<32x256xf32>
    %c222_i32_44 = arith.constant 222 : i32
    %180 = tpu.dynamic_rotate %147 by %c222_i32_44 dim 1 : vector<32x256xf32>, i32 -> vector<32x256xf32>
    %181 = vector.extract_strided_slice %0 {offsets = [8, 0], sizes = [1, 256], strides = [1, 1]} : vector<9x256xf32> to vector<1x256xf32>
    %182 = vector.broadcast %181 : vector<1x256xf32> to vector<32x256xf32>
    %183 = arith.mulf %180, %182 : vector<32x256xf32>
    %184 = tpu.concatenate %155, %159, %163, %167, %147, %171, %175, %179, %183 in 0 : vector<32x256xf32>, vector<32x256xf32>, vector<32x256xf32>, vector<32x256xf32>, vector<32x256xf32>, vector<32x256xf32>, vector<32x256xf32>, vector<32x256xf32>, vector<32x256xf32> -> vector<288x256xf32>
    %cst_45 = arith.constant dense<0.000000e+00> : vector<32x256xf32>
    %185 = tpu.matmul %149, %184, %cst_45 {dimension_numbers = #tpu.dot_dimension_numbers<[1], [0], [0], [1], [0, 0, 1, 1], [], []>} : vector<32x288xf32>, vector<288x256xf32>, vector<32x256xf32> -> vector<32x256xf32>
    %186 = vector.broadcast %151 : vector<32x1xf32> to vector<32x256xf32>
    %187 = arith.addf %185, %186 : vector<32x256xf32>
    %cst_46 = arith.constant 0.000000e+00 : f32
    %188 = vector.broadcast %cst_46 : f32 to vector<32x256xf32>
    %189 = arith.maximumf %187, %188 : vector<32x256xf32>
    %c3 = arith.constant 3 : index
    %c0_47 = arith.constant 0 : index
    %c0_48 = arith.constant 0 : index
    %190 = vector.load %arg5[%c3, %c0_47, %c0_48] : memref<6x32x288xf32, #tpu.memory_space<vmem>>, vector<1x32x288xf32>
    %191 = vector.shape_cast %190 : vector<1x32x288xf32> to vector<32x288xf32>
    %c3_49 = arith.constant 3 : index
    %c0_50 = arith.constant 0 : index
    %c0_51 = arith.constant 0 : index
    %192 = vector.load %arg6[%c3_49, %c0_50, %c0_51] : memref<6x32x1xf32, #tpu.memory_space<vmem>>, vector<1x32x1xf32>
    %193 = vector.shape_cast %192 : vector<1x32x1xf32> to vector<32x1xf32>
    %c34_i32_52 = arith.constant 34 : i32
    %194 = tpu.dynamic_rotate %189 by %c34_i32_52 dim 1 : vector<32x256xf32>, i32 -> vector<32x256xf32>
    %195 = vector.extract_strided_slice %0 {offsets = [0, 0], sizes = [1, 256], strides = [1, 1]} : vector<9x256xf32> to vector<1x256xf32>
    %196 = vector.broadcast %195 : vector<1x256xf32> to vector<32x256xf32>
    %197 = arith.mulf %194, %196 : vector<32x256xf32>
    %c32_i32_53 = arith.constant 32 : i32
    %198 = tpu.dynamic_rotate %189 by %c32_i32_53 dim 1 : vector<32x256xf32>, i32 -> vector<32x256xf32>
    %199 = vector.extract_strided_slice %0 {offsets = [1, 0], sizes = [1, 256], strides = [1, 1]} : vector<9x256xf32> to vector<1x256xf32>
    %200 = vector.broadcast %199 : vector<1x256xf32> to vector<32x256xf32>
    %201 = arith.mulf %198, %200 : vector<32x256xf32>
    %c30_i32_54 = arith.constant 30 : i32
    %202 = tpu.dynamic_rotate %189 by %c30_i32_54 dim 1 : vector<32x256xf32>, i32 -> vector<32x256xf32>
    %203 = vector.extract_strided_slice %0 {offsets = [2, 0], sizes = [1, 256], strides = [1, 1]} : vector<9x256xf32> to vector<1x256xf32>
    %204 = vector.broadcast %203 : vector<1x256xf32> to vector<32x256xf32>
    %205 = arith.mulf %202, %204 : vector<32x256xf32>
    %c2_i32_55 = arith.constant 2 : i32
    %206 = tpu.dynamic_rotate %189 by %c2_i32_55 dim 1 : vector<32x256xf32>, i32 -> vector<32x256xf32>
    %207 = vector.extract_strided_slice %0 {offsets = [3, 0], sizes = [1, 256], strides = [1, 1]} : vector<9x256xf32> to vector<1x256xf32>
    %208 = vector.broadcast %207 : vector<1x256xf32> to vector<32x256xf32>
    %209 = arith.mulf %206, %208 : vector<32x256xf32>
    %c254_i32_56 = arith.constant 254 : i32
    %210 = tpu.dynamic_rotate %189 by %c254_i32_56 dim 1 : vector<32x256xf32>, i32 -> vector<32x256xf32>
    %211 = vector.extract_strided_slice %0 {offsets = [5, 0], sizes = [1, 256], strides = [1, 1]} : vector<9x256xf32> to vector<1x256xf32>
    %212 = vector.broadcast %211 : vector<1x256xf32> to vector<32x256xf32>
    %213 = arith.mulf %210, %212 : vector<32x256xf32>
    %c226_i32_57 = arith.constant 226 : i32
    %214 = tpu.dynamic_rotate %189 by %c226_i32_57 dim 1 : vector<32x256xf32>, i32 -> vector<32x256xf32>
    %215 = vector.extract_strided_slice %0 {offsets = [6, 0], sizes = [1, 256], strides = [1, 1]} : vector<9x256xf32> to vector<1x256xf32>
    %216 = vector.broadcast %215 : vector<1x256xf32> to vector<32x256xf32>
    %217 = arith.mulf %214, %216 : vector<32x256xf32>
    %c224_i32_58 = arith.constant 224 : i32
    %218 = tpu.dynamic_rotate %189 by %c224_i32_58 dim 1 : vector<32x256xf32>, i32 -> vector<32x256xf32>
    %219 = vector.extract_strided_slice %0 {offsets = [7, 0], sizes = [1, 256], strides = [1, 1]} : vector<9x256xf32> to vector<1x256xf32>
    %220 = vector.broadcast %219 : vector<1x256xf32> to vector<32x256xf32>
    %221 = arith.mulf %218, %220 : vector<32x256xf32>
    %c222_i32_59 = arith.constant 222 : i32
    %222 = tpu.dynamic_rotate %189 by %c222_i32_59 dim 1 : vector<32x256xf32>, i32 -> vector<32x256xf32>
    %223 = vector.extract_strided_slice %0 {offsets = [8, 0], sizes = [1, 256], strides = [1, 1]} : vector<9x256xf32> to vector<1x256xf32>
    %224 = vector.broadcast %223 : vector<1x256xf32> to vector<32x256xf32>
    %225 = arith.mulf %222, %224 : vector<32x256xf32>
    %226 = tpu.concatenate %197, %201, %205, %209, %189, %213, %217, %221, %225 in 0 : vector<32x256xf32>, vector<32x256xf32>, vector<32x256xf32>, vector<32x256xf32>, vector<32x256xf32>, vector<32x256xf32>, vector<32x256xf32>, vector<32x256xf32>, vector<32x256xf32> -> vector<288x256xf32>
    %cst_60 = arith.constant dense<0.000000e+00> : vector<32x256xf32>
    %227 = tpu.matmul %191, %226, %cst_60 {dimension_numbers = #tpu.dot_dimension_numbers<[1], [0], [0], [1], [0, 0, 1, 1], [], []>} : vector<32x288xf32>, vector<288x256xf32>, vector<32x256xf32> -> vector<32x256xf32>
    %228 = vector.broadcast %193 : vector<32x1xf32> to vector<32x256xf32>
    %229 = arith.addf %227, %228 : vector<32x256xf32>
    %cst_61 = arith.constant 0.000000e+00 : f32
    %230 = vector.broadcast %cst_61 : f32 to vector<32x256xf32>
    %231 = arith.maximumf %229, %230 : vector<32x256xf32>
    %c4 = arith.constant 4 : index
    %c0_62 = arith.constant 0 : index
    %c0_63 = arith.constant 0 : index
    %232 = vector.load %arg5[%c4, %c0_62, %c0_63] : memref<6x32x288xf32, #tpu.memory_space<vmem>>, vector<1x32x288xf32>
    %233 = vector.shape_cast %232 : vector<1x32x288xf32> to vector<32x288xf32>
    %c4_64 = arith.constant 4 : index
    %c0_65 = arith.constant 0 : index
    %c0_66 = arith.constant 0 : index
    %234 = vector.load %arg6[%c4_64, %c0_65, %c0_66] : memref<6x32x1xf32, #tpu.memory_space<vmem>>, vector<1x32x1xf32>
    %235 = vector.shape_cast %234 : vector<1x32x1xf32> to vector<32x1xf32>
    %c34_i32_67 = arith.constant 34 : i32
    %236 = tpu.dynamic_rotate %231 by %c34_i32_67 dim 1 : vector<32x256xf32>, i32 -> vector<32x256xf32>
    %237 = vector.extract_strided_slice %0 {offsets = [0, 0], sizes = [1, 256], strides = [1, 1]} : vector<9x256xf32> to vector<1x256xf32>
    %238 = vector.broadcast %237 : vector<1x256xf32> to vector<32x256xf32>
    %239 = arith.mulf %236, %238 : vector<32x256xf32>
    %c32_i32_68 = arith.constant 32 : i32
    %240 = tpu.dynamic_rotate %231 by %c32_i32_68 dim 1 : vector<32x256xf32>, i32 -> vector<32x256xf32>
    %241 = vector.extract_strided_slice %0 {offsets = [1, 0], sizes = [1, 256], strides = [1, 1]} : vector<9x256xf32> to vector<1x256xf32>
    %242 = vector.broadcast %241 : vector<1x256xf32> to vector<32x256xf32>
    %243 = arith.mulf %240, %242 : vector<32x256xf32>
    %c30_i32_69 = arith.constant 30 : i32
    %244 = tpu.dynamic_rotate %231 by %c30_i32_69 dim 1 : vector<32x256xf32>, i32 -> vector<32x256xf32>
    %245 = vector.extract_strided_slice %0 {offsets = [2, 0], sizes = [1, 256], strides = [1, 1]} : vector<9x256xf32> to vector<1x256xf32>
    %246 = vector.broadcast %245 : vector<1x256xf32> to vector<32x256xf32>
    %247 = arith.mulf %244, %246 : vector<32x256xf32>
    %c2_i32_70 = arith.constant 2 : i32
    %248 = tpu.dynamic_rotate %231 by %c2_i32_70 dim 1 : vector<32x256xf32>, i32 -> vector<32x256xf32>
    %249 = vector.extract_strided_slice %0 {offsets = [3, 0], sizes = [1, 256], strides = [1, 1]} : vector<9x256xf32> to vector<1x256xf32>
    %250 = vector.broadcast %249 : vector<1x256xf32> to vector<32x256xf32>
    %251 = arith.mulf %248, %250 : vector<32x256xf32>
    %c254_i32_71 = arith.constant 254 : i32
    %252 = tpu.dynamic_rotate %231 by %c254_i32_71 dim 1 : vector<32x256xf32>, i32 -> vector<32x256xf32>
    %253 = vector.extract_strided_slice %0 {offsets = [5, 0], sizes = [1, 256], strides = [1, 1]} : vector<9x256xf32> to vector<1x256xf32>
    %254 = vector.broadcast %253 : vector<1x256xf32> to vector<32x256xf32>
    %255 = arith.mulf %252, %254 : vector<32x256xf32>
    %c226_i32_72 = arith.constant 226 : i32
    %256 = tpu.dynamic_rotate %231 by %c226_i32_72 dim 1 : vector<32x256xf32>, i32 -> vector<32x256xf32>
    %257 = vector.extract_strided_slice %0 {offsets = [6, 0], sizes = [1, 256], strides = [1, 1]} : vector<9x256xf32> to vector<1x256xf32>
    %258 = vector.broadcast %257 : vector<1x256xf32> to vector<32x256xf32>
    %259 = arith.mulf %256, %258 : vector<32x256xf32>
    %c224_i32_73 = arith.constant 224 : i32
    %260 = tpu.dynamic_rotate %231 by %c224_i32_73 dim 1 : vector<32x256xf32>, i32 -> vector<32x256xf32>
    %261 = vector.extract_strided_slice %0 {offsets = [7, 0], sizes = [1, 256], strides = [1, 1]} : vector<9x256xf32> to vector<1x256xf32>
    %262 = vector.broadcast %261 : vector<1x256xf32> to vector<32x256xf32>
    %263 = arith.mulf %260, %262 : vector<32x256xf32>
    %c222_i32_74 = arith.constant 222 : i32
    %264 = tpu.dynamic_rotate %231 by %c222_i32_74 dim 1 : vector<32x256xf32>, i32 -> vector<32x256xf32>
    %265 = vector.extract_strided_slice %0 {offsets = [8, 0], sizes = [1, 256], strides = [1, 1]} : vector<9x256xf32> to vector<1x256xf32>
    %266 = vector.broadcast %265 : vector<1x256xf32> to vector<32x256xf32>
    %267 = arith.mulf %264, %266 : vector<32x256xf32>
    %268 = tpu.concatenate %239, %243, %247, %251, %231, %255, %259, %263, %267 in 0 : vector<32x256xf32>, vector<32x256xf32>, vector<32x256xf32>, vector<32x256xf32>, vector<32x256xf32>, vector<32x256xf32>, vector<32x256xf32>, vector<32x256xf32>, vector<32x256xf32> -> vector<288x256xf32>
    %cst_75 = arith.constant dense<0.000000e+00> : vector<32x256xf32>
    %269 = tpu.matmul %233, %268, %cst_75 {dimension_numbers = #tpu.dot_dimension_numbers<[1], [0], [0], [1], [0, 0, 1, 1], [], []>} : vector<32x288xf32>, vector<288x256xf32>, vector<32x256xf32> -> vector<32x256xf32>
    %270 = vector.broadcast %235 : vector<32x1xf32> to vector<32x256xf32>
    %271 = arith.addf %269, %270 : vector<32x256xf32>
    %cst_76 = arith.constant 0.000000e+00 : f32
    %272 = vector.broadcast %cst_76 : f32 to vector<32x256xf32>
    %273 = arith.maximumf %271, %272 : vector<32x256xf32>
    %c5 = arith.constant 5 : index
    %c0_77 = arith.constant 0 : index
    %c0_78 = arith.constant 0 : index
    %274 = vector.load %arg5[%c5, %c0_77, %c0_78] : memref<6x32x288xf32, #tpu.memory_space<vmem>>, vector<1x32x288xf32>
    %275 = vector.shape_cast %274 : vector<1x32x288xf32> to vector<32x288xf32>
    %c5_79 = arith.constant 5 : index
    %c0_80 = arith.constant 0 : index
    %c0_81 = arith.constant 0 : index
    %276 = vector.load %arg6[%c5_79, %c0_80, %c0_81] : memref<6x32x1xf32, #tpu.memory_space<vmem>>, vector<1x32x1xf32>
    %277 = vector.shape_cast %276 : vector<1x32x1xf32> to vector<32x1xf32>
    %c34_i32_82 = arith.constant 34 : i32
    %278 = tpu.dynamic_rotate %273 by %c34_i32_82 dim 1 : vector<32x256xf32>, i32 -> vector<32x256xf32>
    %279 = vector.extract_strided_slice %0 {offsets = [0, 0], sizes = [1, 256], strides = [1, 1]} : vector<9x256xf32> to vector<1x256xf32>
    %280 = vector.broadcast %279 : vector<1x256xf32> to vector<32x256xf32>
    %281 = arith.mulf %278, %280 : vector<32x256xf32>
    %c32_i32_83 = arith.constant 32 : i32
    %282 = tpu.dynamic_rotate %273 by %c32_i32_83 dim 1 : vector<32x256xf32>, i32 -> vector<32x256xf32>
    %283 = vector.extract_strided_slice %0 {offsets = [1, 0], sizes = [1, 256], strides = [1, 1]} : vector<9x256xf32> to vector<1x256xf32>
    %284 = vector.broadcast %283 : vector<1x256xf32> to vector<32x256xf32>
    %285 = arith.mulf %282, %284 : vector<32x256xf32>
    %c30_i32_84 = arith.constant 30 : i32
    %286 = tpu.dynamic_rotate %273 by %c30_i32_84 dim 1 : vector<32x256xf32>, i32 -> vector<32x256xf32>
    %287 = vector.extract_strided_slice %0 {offsets = [2, 0], sizes = [1, 256], strides = [1, 1]} : vector<9x256xf32> to vector<1x256xf32>
    %288 = vector.broadcast %287 : vector<1x256xf32> to vector<32x256xf32>
    %289 = arith.mulf %286, %288 : vector<32x256xf32>
    %c2_i32_85 = arith.constant 2 : i32
    %290 = tpu.dynamic_rotate %273 by %c2_i32_85 dim 1 : vector<32x256xf32>, i32 -> vector<32x256xf32>
    %291 = vector.extract_strided_slice %0 {offsets = [3, 0], sizes = [1, 256], strides = [1, 1]} : vector<9x256xf32> to vector<1x256xf32>
    %292 = vector.broadcast %291 : vector<1x256xf32> to vector<32x256xf32>
    %293 = arith.mulf %290, %292 : vector<32x256xf32>
    %c254_i32_86 = arith.constant 254 : i32
    %294 = tpu.dynamic_rotate %273 by %c254_i32_86 dim 1 : vector<32x256xf32>, i32 -> vector<32x256xf32>
    %295 = vector.extract_strided_slice %0 {offsets = [5, 0], sizes = [1, 256], strides = [1, 1]} : vector<9x256xf32> to vector<1x256xf32>
    %296 = vector.broadcast %295 : vector<1x256xf32> to vector<32x256xf32>
    %297 = arith.mulf %294, %296 : vector<32x256xf32>
    %c226_i32_87 = arith.constant 226 : i32
    %298 = tpu.dynamic_rotate %273 by %c226_i32_87 dim 1 : vector<32x256xf32>, i32 -> vector<32x256xf32>
    %299 = vector.extract_strided_slice %0 {offsets = [6, 0], sizes = [1, 256], strides = [1, 1]} : vector<9x256xf32> to vector<1x256xf32>
    %300 = vector.broadcast %299 : vector<1x256xf32> to vector<32x256xf32>
    %301 = arith.mulf %298, %300 : vector<32x256xf32>
    %c224_i32_88 = arith.constant 224 : i32
    %302 = tpu.dynamic_rotate %273 by %c224_i32_88 dim 1 : vector<32x256xf32>, i32 -> vector<32x256xf32>
    %303 = vector.extract_strided_slice %0 {offsets = [7, 0], sizes = [1, 256], strides = [1, 1]} : vector<9x256xf32> to vector<1x256xf32>
    %304 = vector.broadcast %303 : vector<1x256xf32> to vector<32x256xf32>
    %305 = arith.mulf %302, %304 : vector<32x256xf32>
    %c222_i32_89 = arith.constant 222 : i32
    %306 = tpu.dynamic_rotate %273 by %c222_i32_89 dim 1 : vector<32x256xf32>, i32 -> vector<32x256xf32>
    %307 = vector.extract_strided_slice %0 {offsets = [8, 0], sizes = [1, 256], strides = [1, 1]} : vector<9x256xf32> to vector<1x256xf32>
    %308 = vector.broadcast %307 : vector<1x256xf32> to vector<32x256xf32>
    %309 = arith.mulf %306, %308 : vector<32x256xf32>
    %310 = tpu.concatenate %281, %285, %289, %293, %273, %297, %301, %305, %309 in 0 : vector<32x256xf32>, vector<32x256xf32>, vector<32x256xf32>, vector<32x256xf32>, vector<32x256xf32>, vector<32x256xf32>, vector<32x256xf32>, vector<32x256xf32>, vector<32x256xf32> -> vector<288x256xf32>
    %cst_90 = arith.constant dense<0.000000e+00> : vector<32x256xf32>
    %311 = tpu.matmul %275, %310, %cst_90 {dimension_numbers = #tpu.dot_dimension_numbers<[1], [0], [0], [1], [0, 0, 1, 1], [], []>} : vector<32x288xf32>, vector<288x256xf32>, vector<32x256xf32> -> vector<32x256xf32>
    %312 = vector.broadcast %277 : vector<32x1xf32> to vector<32x256xf32>
    %313 = arith.addf %311, %312 : vector<32x256xf32>
    %cst_91 = arith.constant 0.000000e+00 : f32
    %314 = vector.broadcast %cst_91 : f32 to vector<32x256xf32>
    %315 = arith.maximumf %313, %314 : vector<32x256xf32>
    %c0_92 = arith.constant 0 : index
    %c0_93 = arith.constant 0 : index
    %316 = vector.load %arg7[%c0_92, %c0_93] : memref<1x288xf32, #tpu.memory_space<vmem>>, vector<1x288xf32>
    %c0_94 = arith.constant 0 : index
    %c0_95 = arith.constant 0 : index
    %317 = vector.load %arg8[%c0_94, %c0_95] : memref<1x1xf32, #tpu.memory_space<vmem>>, vector<1x1xf32>
    %c34_i32_96 = arith.constant 34 : i32
    %318 = tpu.dynamic_rotate %315 by %c34_i32_96 dim 1 : vector<32x256xf32>, i32 -> vector<32x256xf32>
    %319 = vector.extract_strided_slice %0 {offsets = [0, 0], sizes = [1, 256], strides = [1, 1]} : vector<9x256xf32> to vector<1x256xf32>
    %320 = vector.broadcast %319 : vector<1x256xf32> to vector<32x256xf32>
    %321 = arith.mulf %318, %320 : vector<32x256xf32>
    %c32_i32_97 = arith.constant 32 : i32
    %322 = tpu.dynamic_rotate %315 by %c32_i32_97 dim 1 : vector<32x256xf32>, i32 -> vector<32x256xf32>
    %323 = vector.extract_strided_slice %0 {offsets = [1, 0], sizes = [1, 256], strides = [1, 1]} : vector<9x256xf32> to vector<1x256xf32>
    %324 = vector.broadcast %323 : vector<1x256xf32> to vector<32x256xf32>
    %325 = arith.mulf %322, %324 : vector<32x256xf32>
    %c30_i32_98 = arith.constant 30 : i32
    %326 = tpu.dynamic_rotate %315 by %c30_i32_98 dim 1 : vector<32x256xf32>, i32 -> vector<32x256xf32>
    %327 = vector.extract_strided_slice %0 {offsets = [2, 0], sizes = [1, 256], strides = [1, 1]} : vector<9x256xf32> to vector<1x256xf32>
    %328 = vector.broadcast %327 : vector<1x256xf32> to vector<32x256xf32>
    %329 = arith.mulf %326, %328 : vector<32x256xf32>
    %c2_i32_99 = arith.constant 2 : i32
    %330 = tpu.dynamic_rotate %315 by %c2_i32_99 dim 1 : vector<32x256xf32>, i32 -> vector<32x256xf32>
    %331 = vector.extract_strided_slice %0 {offsets = [3, 0], sizes = [1, 256], strides = [1, 1]} : vector<9x256xf32> to vector<1x256xf32>
    %332 = vector.broadcast %331 : vector<1x256xf32> to vector<32x256xf32>
    %333 = arith.mulf %330, %332 : vector<32x256xf32>
    %c254_i32_100 = arith.constant 254 : i32
    %334 = tpu.dynamic_rotate %315 by %c254_i32_100 dim 1 : vector<32x256xf32>, i32 -> vector<32x256xf32>
    %335 = vector.extract_strided_slice %0 {offsets = [5, 0], sizes = [1, 256], strides = [1, 1]} : vector<9x256xf32> to vector<1x256xf32>
    %336 = vector.broadcast %335 : vector<1x256xf32> to vector<32x256xf32>
    %337 = arith.mulf %334, %336 : vector<32x256xf32>
    %c226_i32_101 = arith.constant 226 : i32
    %338 = tpu.dynamic_rotate %315 by %c226_i32_101 dim 1 : vector<32x256xf32>, i32 -> vector<32x256xf32>
    %339 = vector.extract_strided_slice %0 {offsets = [6, 0], sizes = [1, 256], strides = [1, 1]} : vector<9x256xf32> to vector<1x256xf32>
    %340 = vector.broadcast %339 : vector<1x256xf32> to vector<32x256xf32>
    %341 = arith.mulf %338, %340 : vector<32x256xf32>
    %c224_i32_102 = arith.constant 224 : i32
    %342 = tpu.dynamic_rotate %315 by %c224_i32_102 dim 1 : vector<32x256xf32>, i32 -> vector<32x256xf32>
    %343 = vector.extract_strided_slice %0 {offsets = [7, 0], sizes = [1, 256], strides = [1, 1]} : vector<9x256xf32> to vector<1x256xf32>
    %344 = vector.broadcast %343 : vector<1x256xf32> to vector<32x256xf32>
    %345 = arith.mulf %342, %344 : vector<32x256xf32>
    %c222_i32_103 = arith.constant 222 : i32
    %346 = tpu.dynamic_rotate %315 by %c222_i32_103 dim 1 : vector<32x256xf32>, i32 -> vector<32x256xf32>
    %347 = vector.extract_strided_slice %0 {offsets = [8, 0], sizes = [1, 256], strides = [1, 1]} : vector<9x256xf32> to vector<1x256xf32>
    %348 = vector.broadcast %347 : vector<1x256xf32> to vector<32x256xf32>
    %349 = arith.mulf %346, %348 : vector<32x256xf32>
    %350 = tpu.concatenate %321, %325, %329, %333, %315, %337, %341, %345, %349 in 0 : vector<32x256xf32>, vector<32x256xf32>, vector<32x256xf32>, vector<32x256xf32>, vector<32x256xf32>, vector<32x256xf32>, vector<32x256xf32>, vector<32x256xf32>, vector<32x256xf32> -> vector<288x256xf32>
    %cst_104 = arith.constant dense<0.000000e+00> : vector<1x256xf32>
    %351 = tpu.matmul %316, %350, %cst_104 {dimension_numbers = #tpu.dot_dimension_numbers<[1], [0], [0], [1], [0, 0, 1, 1], [], []>} : vector<1x288xf32>, vector<288x256xf32>, vector<1x256xf32> -> vector<1x256xf32>
    %352 = vector.broadcast %317 : vector<1x1xf32> to vector<1x256xf32>
    %353 = arith.addf %351, %352 : vector<1x256xf32>
    %c0_105 = arith.constant 0 : index
    %c0_106 = arith.constant 0 : index
    %c0_107 = arith.constant 0 : index
    %354 = vector.load %arg9[%c0_105, %c0_106, %c0_107] : memref<1x1x256xf32, #tpu.memory_space<vmem>>, vector<1x1x256xf32>
    %355 = vector.shape_cast %354 : vector<1x1x256xf32> to vector<1x256xf32>
    %356 = vector.shape_cast %353 : vector<1x256xf32> to vector<1x1x256xf32>
    tpu.vector_store %arg9[%c0_105, %c0_106, %c0_107], %356 {strides = array<i32>} : memref<1x1x256xf32, #tpu.memory_space<vmem>>, vector<1x1x256xf32>,
    return
  }
  func.func @transform_0(%arg0: i32) -> (i32, i32, i32) {
    %c0_i32 = arith.constant 0 : i32
    %c0_i32_0 = arith.constant 0 : i32
    %c0_i32_1 = arith.constant 0 : i32
    return %arg0, %c0_i32, %c0_i32_0 : i32, i32, i32
  }
  func.func @transform_1(%arg0: i32) -> (i32, i32) {
    %c0_i32 = arith.constant 0 : i32
    %c0_i32_0 = arith.constant 0 : i32
    %c0_i32_1 = arith.constant 0 : i32
    return %c0_i32, %c0_i32_0 : i32, i32
  }
  func.func @transform_2(%arg0: i32) -> (i32, i32) {
    %c0_i32 = arith.constant 0 : i32
    %c0_i32_0 = arith.constant 0 : i32
    %c0_i32_1 = arith.constant 0 : i32
    return %c0_i32, %c0_i32_0 : i32, i32
  }
  func.func @transform_3(%arg0: i32) -> (i32, i32) {
    %c0_i32 = arith.constant 0 : i32
    %c0_i32_0 = arith.constant 0 : i32
    %c0_i32_1 = arith.constant 0 : i32
    return %c0_i32, %c0_i32_0 : i32, i32
  }
  func.func @transform_4(%arg0: i32) -> (i32, i32, i32) {
    %c0_i32 = arith.constant 0 : i32
    %c0_i32_0 = arith.constant 0 : i32
    %c0_i32_1 = arith.constant 0 : i32
    %c0_i32_2 = arith.constant 0 : i32
    return %c0_i32, %c0_i32_0, %c0_i32_1 : i32, i32, i32
  }
  func.func @transform_5(%arg0: i32) -> (i32, i32, i32) {
    %c0_i32 = arith.constant 0 : i32
    %c0_i32_0 = arith.constant 0 : i32
    %c0_i32_1 = arith.constant 0 : i32
    %c0_i32_2 = arith.constant 0 : i32
    return %c0_i32, %c0_i32_0, %c0_i32_1 : i32, i32, i32
  }
  func.func @transform_6(%arg0: i32) -> (i32, i32) {
    %c0_i32 = arith.constant 0 : i32
    %c0_i32_0 = arith.constant 0 : i32
    %c0_i32_1 = arith.constant 0 : i32
    return %c0_i32, %c0_i32_0 : i32, i32
  }
  func.func @transform_7(%arg0: i32) -> (i32, i32) {
    %c0_i32 = arith.constant 0 : i32
    %c0_i32_0 = arith.constant 0 : i32
    %c0_i32_1 = arith.constant 0 : i32
    return %c0_i32, %c0_i32_0 : i32, i32
  }
  func.func @transform_8(%arg0: i32) -> (i32, i32, i32) {
    %c0_i32 = arith.constant 0 : i32
    %c0_i32_0 = arith.constant 0 : i32
    %c0_i32_1 = arith.constant 0 : i32
    return %arg0, %c0_i32, %c0_i32_0 : i32, i32, i32
  }
}

</mosaic_0001>

<llo_original>
// kernel: tpu_custom_call.1
$region0: #{tpu_custom_call.1}
  #allocation0 [shape = 'u32[]', space=smem, size = 0x4, offset = 0x4, fixed_abs, tag = 'smem constant byte address 0x4 - core index']
  #allocation1 [shape = 'u32[144,128]{1,0:T(1,128)}', space=vmem, size = 0x12000, scoped, tag = 'internal scratch']
  #allocation2 [shape = 'f32[1,1]{1,0:T(1,128)S(1)}', space=vmem, size = 0x200, scoped, tag = 'scoped memory for tpu_custom_call.1']
  %s0 = inlined_call_operand.vmem [shape: f32[2,9,256], index: 0, kind: input, shape index: {}]
  %s1 = inlined_call_operand.vmem [shape: f32[9,256], index: 1, kind: input, shape index: {}]
  %s2 = inlined_call_operand.vmem [shape: f32[32,9], index: 2, kind: input, shape index: {}]
  %s3 = inlined_call_operand.vmem [shape: f32[32,1], index: 3, kind: input, shape index: {}]
  %s4 = inlined_call_operand.hbm [shape: f32[6,32,288], index: 4, kind: input, shape index: {}]
  %s5 = inlined_call_operand.vmem [shape: f32[6,32,1], index: 5, kind: input, shape index: {}]
  %s6 = inlined_call_operand.vmem [shape: f32[1,288], index: 6, kind: input, shape index: {}]
  %s7 = inlined_call_operand.<no memory space> [shape: f32[1,1], index: 7, kind: input, shape index: {}]
  %s8 = inlined_call_operand.hbm [shape: f32[2,1,256], index: 8, kind: output, shape index: {}]
  %s9 = sld [smem:[#allocation0]]
  $region69: #{tpu_custom_call.1} parent=0
    _
  %s11 = ssub.s32 1, %s9
  %s12 = scalar_select 0, %s11, %s9
  %v13 = vstv %s7
  %14 = vst [vmem:[#allocation2] sm:$0x1] %v13
  $region1: #{tpu_custom_call.1} parent=0
    #allocation3 [shape = 'u8[294912]{0}', space=vmem, size = 0x48000, scoped, tag = 'input window, operand 4, single buffered']
    #allocation4 [shape = 's32[2]{0}', space=sflag, size = 0x8, scoped, tag = 'scoped memory for tpu_custom_call.1']
    #allocation5 [shape = 's32[2]{0}', space=sflag, size = 0x8, scoped, tag = 'scoped memory for tpu_custom_call.1']
    #allocation6 [shape = 'u8[2048]{0}', space=vmem, size = 0x800, scoped, tag = 'output window, operand 0']
    %15 = vsyncpa [#allocation4], 0
    %16 = vsyncpa [#allocation5], 0
    %s17 = scalar_lea.sflag [#allocation5], 1
    %18 = vsyncpa %s17, 0
    loop: start=0, step=1, limit=4
    $region2: #{tpu_custom_call.1} parent=1 // loop_pre_header
      _
    $region3: #{tpu_custom_call.1} parent=1 // loop_header
      %s20 = sphi 0, %s24
      %p21 = scmp.ge.s32.totalorder %s20, 4
      %s30 = sphi 0, %s32
      %s33 = sphi 0, %s30
      %s34 = sphi 0, %s33
      %s50 = sphi 0, %s34
      %s54 = sphi 0, %s54
      %s56 = sphi 0, %s54
      %s57 = sphi 0, %s56
      %s71 = sphi 0, %s57
      %s75 = sphi 0, %s75
      %s77 = sphi 0, %s75
      %s78 = sphi 0, %s77
      %s92 = sphi 0, %s78
      %s96 = sphi 0, %s96
      %s98 = sphi 0, %s96
      %s99 = sphi 0, %s98
      %s113 = sphi 0, %s99
      %s117 = sphi 0, %s117
      %s119 = sphi 0, %s117
      %s120 = sphi 0, %s119
      %s134 = sphi 0, %s120
      %s138 = sphi 0, %s138
      %s140 = sphi 0, %s138
      %s141 = sphi 0, %s140
      %s155 = sphi 0, %s141
      %s159 = sphi 0, %s159
      %s161 = sphi 0, %s159
      %s162 = sphi 0, %s161
      %s176 = sphi 0, %s162
      %s180 = sphi 0, %s180
      %s182 = sphi 0, %s180
      %s183 = sphi 0, %s182
      %s197 = sphi 0, %s183
      %s203 = sphi 0, %s205
      %s206 = sphi 0, %s203
      %s207 = sphi 0, %s206
      %s223 = sphi 0, %s207
    $region4: #{tpu_custom_call.1} parent=1 // loop_header_branch
      %23 = sbr.rel (%p21) target = $region8
    $region5: #{tpu_custom_call.1} parent=1 // loop_body
      %s25 = ssub.s32 %s20, 1
      %s26 = ssub.s32 %s20, 2
      %s27 = sadd.s32 %s20, 1
      %s28 = ssub.s32 %s20, %s27
      %p29 = scmp.eq.s32.totalorder %s28, 0
      %s31 = sadd.s32 %s30, 1
      %s32 = scalar_select %p29, %s30, %s31
      %p35 = pneg %p29
      %p36 = scmp.eq.s32.totalorder %s20, 1
      %p37 = por %p35, %p36
      %p38 = scmp.ne.s32.totalorder %s30, %s33
      %p39 = scmp.eq.s32.totalorder %s20, 0
      %p40 = por %p38, %p39
      %p41 = scmp.ne.s32.totalorder %s30, %s33
      %p42 = scmp.eq.s32.totalorder %s25, 1
      %p43 = por %p41, %p42
      %p44 = scmp.ne.s32.totalorder %s33, %s34
      %p45 = scmp.eq.s32.totalorder %s25, 0
      %p46 = por %p44, %p45
      %p47 = scmp.ne.s32.totalorder %s33, %s34
      %p48 = scmp.eq.s32.totalorder %s26, 1
      %p49 = por %p47, %p48
      %p51 = scmp.ne.s32.totalorder %s34, %s50
      %p52 = scmp.eq.s32.totalorder %s26, 0
      %p53 = por %p51, %p52
      %s55 = sadd.s32 %s54, 1
      %p58 = scmp.eq.s32.totalorder %s20, 1
      %p59 = scmp.ne.s32.totalorder %s54, %s56
      %p60 = scmp.eq.s32.totalorder %s20, 0
      %p61 = por %p59, %p60
      %p62 = scmp.ne.s32.totalorder %s54, %s56
      %p63 = scmp.eq.s32.totalorder %s25, 1
      %p64 = por %p62, %p63
      %p65 = scmp.ne.s32.totalorder %s56, %s57
      %p66 = scmp.eq.s32.totalorder %s25, 0
      %p67 = por %p65, %p66
      %p68 = scmp.ne.s32.totalorder %s56, %s57
      %p69 = scmp.eq.s32.totalorder %s26, 1
      %p70 = por %p68, %p69
      %p72 = scmp.ne.s32.totalorder %s57, %s71
      %p73 = scmp.eq.s32.totalorder %s26, 0
      %p74 = por %p72, %p73
      %s76 = sadd.s32 %s75, 1
      %p79 = scmp.eq.s32.totalorder %s20, 1
      %p80 = scmp.ne.s32.totalorder %s75, %s77
      %p81 = scmp.eq.s32.totalorder %s20, 0
      %p82 = por %p80, %p81
      %p83 = scmp.ne.s32.totalorder %s75, %s77
      %p84 = scmp.eq.s32.totalorder %s25, 1
      %p85 = por %p83, %p84
      %p86 = scmp.ne.s32.totalorder %s77, %s78
      %p87 = scmp.eq.s32.totalorder %s25, 0
      %p88 = por %p86, %p87
      %p89 = scmp.ne.s32.totalorder %s77, %s78
      %p90 = scmp.eq.s32.totalorder %s26, 1
      %p91 = por %p89, %p90
      %p93 = scmp.ne.s32.totalorder %s78, %s92
      %p94 = scmp.eq.s32.totalorder %s26, 0
      %p95 = por %p93, %p94
      %s97 = sadd.s32 %s96, 1
      %p100 = scmp.eq.s32.totalorder %s20, 1
      %p101 = scmp.ne.s32.totalorder %s96, %s98
      %p102 = scmp.eq.s32.totalorder %s20, 0
      %p103 = por %p101, %p102
      %p104 = scmp.ne.s32.totalorder %s96, %s98
      %p105 = scmp.eq.s32.totalorder %s25, 1
      %p106 = por %p104, %p105
      %p107 = scmp.ne.s32.totalorder %s98, %s99
      %p108 = scmp.eq.s32.totalorder %s25, 0
      %p109 = por %p107, %p108
      %p110 = scmp.ne.s32.totalorder %s98, %s99
      %p111 = scmp.eq.s32.totalorder %s26, 1
      %p112 = por %p110, %p111
      %p114 = scmp.ne.s32.totalorder %s99, %s113
      %p115 = scmp.eq.s32.totalorder %s26, 0
      %p116 = por %p114, %p115
      %s118 = sadd.s32 %s117, 1
      %p121 = scmp.eq.s32.totalorder %s20, 1
      %p122 = scmp.ne.s32.totalorder %s117, %s119
      %p123 = scmp.eq.s32.totalorder %s20, 0
      %p124 = por %p122, %p123
      %p125 = scmp.ne.s32.totalorder %s117, %s119
      %p126 = scmp.eq.s32.totalorder %s25, 1
      %p127 = por %p125, %p126
      %p128 = scmp.ne.s32.totalorder %s119, %s120
      %p129 = scmp.eq.s32.totalorder %s25, 0
      %p130 = por %p128, %p129
      %p131 = scmp.ne.s32.totalorder %s119, %s120
      %p132 = scmp.eq.s32.totalorder %s26, 1
      %p133 = por %p131, %p132
      %p135 = scmp.ne.s32.totalorder %s120, %s134
      %p136 = scmp.eq.s32.totalorder %s26, 0
      %p137 = por %p135, %p136
      %s139 = sadd.s32 %s138, 1
      %p142 = scmp.eq.s32.totalorder %s20, 1
      %p143 = scmp.ne.s32.totalorder %s138, %s140
      %p144 = scmp.eq.s32.totalorder %s20, 0
      %p145 = por %p143, %p144
      %p146 = scmp.ne.s32.totalorder %s138, %s140
      %p147 = scmp.eq.s32.totalorder %s25, 1
      %p148 = por %p146, %p147
      %p149 = scmp.ne.s32.totalorder %s140, %s141
      %p150 = scmp.eq.s32.totalorder %s25, 0
      %p151 = por %p149, %p150
      %p152 = scmp.ne.s32.totalorder %s140, %s141
      %p153 = scmp.eq.s32.totalorder %s26, 1
      %p154 = por %p152, %p153
      %p156 = scmp.ne.s32.totalorder %s141, %s155
      %p157 = scmp.eq.s32.totalorder %s26, 0
      %p158 = por %p156, %p157
      %s160 = sadd.s32 %s159, 1
      %p163 = scmp.eq.s32.totalorder %s20, 1
      %p164 = scmp.ne.s32.totalorder %s159, %s161
      %p165 = scmp.eq.s32.totalorder %s20, 0
      %p166 = por %p164, %p165
      %p167 = scmp.ne.s32.totalorder %s159, %s161
      %p168 = scmp.eq.s32.totalorder %s25, 1
      %p169 = por %p167, %p168
      %p170 = scmp.ne.s32.totalorder %s161, %s162
      %p171 = scmp.eq.s32.totalorder %s25, 0
      %p172 = por %p170, %p171
      %p173 = scmp.ne.s32.totalorder %s161, %s162
      %p174 = scmp.eq.s32.totalorder %s26, 1
      %p175 = por %p173, %p174
      %p177 = scmp.ne.s32.totalorder %s162, %s176
      %p178 = scmp.eq.s32.totalorder %s26, 0
      %p179 = por %p177, %p178
      %s181 = sadd.s32 %s180, 1
      %p184 = scmp.eq.s32.totalorder %s20, 1
      %p185 = scmp.ne.s32.totalorder %s180, %s182
      %p186 = scmp.eq.s32.totalorder %s20, 0
      %p187 = por %p185, %p186
      %p188 = scmp.ne.s32.totalorder %s180, %s182
      %p189 = scmp.eq.s32.totalorder %s25, 1
      %p190 = por %p188, %p189
      %p191 = scmp.ne.s32.totalorder %s182, %s183
      %p192 = scmp.eq.s32.totalorder %s25, 0
      %p193 = por %p191, %p192
      %p194 = scmp.ne.s32.totalorder %s182, %s183
      %p195 = scmp.eq.s32.totalorder %s26, 1
      %p196 = por %p194, %p195
      %p198 = scmp.ne.s32.totalorder %s183, %s197
      %p199 = scmp.eq.s32.totalorder %s26, 0
      %p200 = por %p198, %p199
      %s201 = ssub.s32 %s20, %s27
      %p202 = scmp.eq.s32.totalorder %s201, 0
      %s204 = sadd.s32 %s203, 1
      %s205 = scalar_select %p202, %s203, %s204
      %p208 = pneg %p202
      %p209 = scmp.eq.s32.totalorder %s20, 1
      %p210 = por %p208, %p209
      %p211 = scmp.ne.s32.totalorder %s203, %s206
      %p212 = scmp.eq.s32.totalorder %s20, 0
      %p213 = por %p211, %p212
      %p214 = scmp.ne.s32.totalorder %s203, %s206
      %p215 = scmp.eq.s32.totalorder %s25, 1
      %p216 = por %p214, %p215
      %p217 = scmp.ne.s32.totalorder %s206, %s207
      %p218 = scmp.eq.s32.totalorder %s25, 0
      %p219 = por %p217, %p218
      %p220 = scmp.ne.s32.totalorder %s206, %s207
      %p221 = scmp.eq.s32.totalorder %s26, 1
      %p222 = por %p220, %p221
      %p224 = scmp.ne.s32.totalorder %s207, %s223
      %p225 = scmp.eq.s32.totalorder %s26, 0
      %p226 = por %p224, %p225
      %p227 = scmp.le.s32.totalorder 1, %s20
      %p228 = scmp.lt.s32.totalorder %s20, 3
      %p229 = pnand %p227, %p228
      %p230 = pneg %p229
      // Predicated region
      $region9: #{tpu_custom_call.1} parent=5 // pred_check
        _
      $region10: #{tpu_custom_call.1} parent=5 // pred_check_branch
        %232 = sbr.rel (%p229) target = $region12
      $region11: #{tpu_custom_call.1} parent=5 // pred_region
        %s233 = ssub.s32 %s20, 1
        // Predicated region
        $region13: #{tpu_custom_call.1} parent=11 // pred_check
          %p234 = pneg %p67
        $region14: #{tpu_custom_call.1} parent=11 // pred_check_branch
          %236 = sbr.rel (%p234) target = $region16
        $region15: #{tpu_custom_call.1} parent=11 // pred_region
          _
        $region16: #{tpu_custom_call.1} parent=11 // pred_fallthru
          _
        // Predicated region
        $region17: #{tpu_custom_call.1} parent=11 // pred_check
          %p237 = pneg %p88
        $region18: #{tpu_custom_call.1} parent=11 // pred_check_branch
          %239 = sbr.rel (%p237) target = $region20
        $region19: #{tpu_custom_call.1} parent=11 // pred_region
          _
        $region20: #{tpu_custom_call.1} parent=11 // pred_fallthru
          _
        // Predicated region
        $region21: #{tpu_custom_call.1} parent=11 // pred_check
          %p240 = pneg %p109
        $region22: #{tpu_custom_call.1} parent=11 // pred_check_branch
          %242 = sbr.rel (%p240) target = $region24
        $region23: #{tpu_custom_call.1} parent=11 // pred_region
          _
        $region24: #{tpu_custom_call.1} parent=11 // pred_fallthru
          _
        // Predicated region
        $region25: #{tpu_custom_call.1} parent=11 // pred_check
          %p243 = pneg %p130
        $region26: #{tpu_custom_call.1} parent=11 // pred_check_branch
          %245 = sbr.rel (%p243) target = $region28
        $region27: #{tpu_custom_call.1} parent=11 // pred_region
          %s247 = ssub.s32 9216, 9216
          %248 = vsyncadd [#allocation4], %s247
          %s249 = sshll.u32 [#allocation3], 4
          %s250 = int_to_ptr.vmem [resolvable:$true] %s249
          %255 = dma.hbm_to_vmem [thread:$0]  %s4, 9216, %s250, [#allocation4], 384, 384, 24
        $region28: #{tpu_custom_call.1} parent=11 // pred_fallthru
          _
        // Predicated region
        $region29: #{tpu_custom_call.1} parent=11 // pred_check
          %p256 = pneg %p151
        $region30: #{tpu_custom_call.1} parent=11 // pred_check_branch
          %258 = sbr.rel (%p256) target = $region32
        $region31: #{tpu_custom_call.1} parent=11 // pred_region
          _
        $region32: #{tpu_custom_call.1} parent=11 // pred_fallthru
          _
        // Predicated region
        $region33: #{tpu_custom_call.1} parent=11 // pred_check
          %p259 = pneg %p172
        $region34: #{tpu_custom_call.1} parent=11 // pred_check_branch
          %261 = sbr.rel (%p259) target = $region36
        $region35: #{tpu_custom_call.1} parent=11 // pred_region
          _
        $region36: #{tpu_custom_call.1} parent=11 // pred_fallthru
          _
        // Predicated region
        $region37: #{tpu_custom_call.1} parent=11 // pred_check
          %p262 = pneg %p193
        $region38: #{tpu_custom_call.1} parent=11 // pred_check_branch
          %264 = sbr.rel (%p262) target = $region40
        $region39: #{tpu_custom_call.1} parent=11 // pred_region
          _
        $region40: #{tpu_custom_call.1} parent=11 // pred_fallthru
          _
      $region12: #{tpu_custom_call.1} parent=5 // pred_fallthru
        _
      %p265 = scmp.lt.s32.totalorder %s20, 2
      // Predicated region
      $region41: #{tpu_custom_call.1} parent=5 // pred_check
        %p266 = pneg %p265
      $region42: #{tpu_custom_call.1} parent=5 // pred_check_branch
        %268 = sbr.rel (%p266) target = $region44
      $region43: #{tpu_custom_call.1} parent=5 // pred_region
        // Predicated region
        $region45: #{tpu_custom_call.1} parent=43 // pred_check
          %p269 = pneg %p40
        $region46: #{tpu_custom_call.1} parent=43 // pred_check_branch
          %271 = sbr.rel (%p269) target = $region48
        $region47: #{tpu_custom_call.1} parent=43 // pred_region
          %p272 = scmp.lt.s32.totalorder %s20, 1
          %s273 = scalar_select %p272, %s20, 1
          %s274 = smul.addr %s273, 4
          %s275 = smul.addr %s274, 8
          %s276 = scalar_lea.vmem %s0, %s275
        $region48: #{tpu_custom_call.1} parent=43 // pred_fallthru
          _
      $region44: #{tpu_custom_call.1} parent=5 // pred_fallthru
        _
      %p277 = scmp.le.s32.totalorder 1, %s20
      %p278 = scmp.lt.s32.totalorder %s20, 3
      %p279 = pnand %p277, %p278
      %p280 = pneg %p279
      // Predicated region
      $region49: #{tpu_custom_call.1} parent=5 // pred_check
        _
      $region50: #{tpu_custom_call.1} parent=5 // pred_check_branch
        %282 = sbr.rel (%p279) target = $region52
      $region51: #{tpu_custom_call.1} parent=5 // pred_region
        %s283 = ssub.s32 %s20, 1
        // Predicated region
        $region53: #{tpu_custom_call.1} parent=51 // pred_check
          %p284 = pneg %p130
        $region54: #{tpu_custom_call.1} parent=51 // pred_check_branch
          %286 = sbr.rel (%p284) target = $region56
        $region55: #{tpu_custom_call.1} parent=51 // pred_region
          %287 = dma.done [#allocation4], 9216
        $region56: #{tpu_custom_call.1} parent=51 // pred_fallthru
          _
        %p288 = scmp.lt.s32.totalorder %s25, 1
        %s289 = scalar_select %p288, %s25, 1
        %s290 = smul.addr %s289, 4
        %s291 = smul.addr %s290, 8
        %s292 = scalar_lea.vmem %s0, %s291
        %p293 = pneg %p46
        %p294 = pneg %p43
        %p295 = pneg %p67
        %p296 = pneg %p64
        %p297 = pneg %p88
        %p298 = pneg %p85
        %p299 = pneg %p109
        %p300 = pneg %p106
        %p301 = pneg %p130
        %p302 = pneg %p127
        %p303 = pneg %p151
        %p304 = pneg %p148
        %p305 = pneg %p172
        %p306 = pneg %p169
        %p307 = pneg %p193
        %p308 = pneg %p190
        %p309 = pneg %p219
        %p310 = pneg %p216
        %s311 = sand.u32 %s206, 1
        %s312 = scalar_lea.sflag [#allocation5], %s311
        %s313 = sand.u32 %s206, 1
        %s314 = smul.addr %s313, 2
        %s315 = scalar_lea.vmem [#allocation6], %s314
        %p316 = scmp.lt.s32.totalorder %s25, 1
        %s317 = scalar_select %p316, %s25, 1
        %s318 = smul.addr %s317, 4
        %s319 = smul.addr %s318, 8
        %s320 = scalar_lea.vmem %s0, %s319
        %v321 = vld [vmem:[%s1] sm:$0xff]
        %v322 = vld [vmem:[%s1 + $0x8] sm:$0xff]
        %v323 = vld [vmem:[%s1 + $0x10] sm:$0x1]
        %v324 = vld [vmem:[%s1 + $0x18] sm:$0x1]
        %v325 = vld [vmem:[%s320] sm:$0xff]
        %v326 = vld [vmem:[%s320 + $0x8] sm:$0xff]
        %v327 = vld [vmem:[%s320 + $0x10] sm:$0x1]
        %v328 = vld [vmem:[%s320 + $0x18] sm:$0x1]
        %v329 = vld [vmem:[%s2] sm:$0xff]
        %v330 = vld [vmem:[%s2 + $0x8] sm:$0xff]
        %v331 = vld [vmem:[%s2 + $0x10] sm:$0xff]
        %v332 = vld [vmem:[%s2 + $0x18] sm:$0xff]
        %334 = vset.pattern.permute.xlu0 0
        %335 = vperm.xlu0 %334, %v329
        %v336 = vpop.permute.xlu0 %335
        %339 = vset.pattern.permute.xlu0 0
        %340 = vperm.xlu0 %339, %v330
        %v341 = vpop.permute.xlu0 %340
        %344 = vset.pattern.permute.xlu0 0
        %345 = vperm.xlu0 %344, %v331
        %v346 = vpop.permute.xlu0 %345
        %349 = vset.pattern.permute.xlu0 0
        %350 = vperm.xlu0 %349, %v332
        %v351 = vpop.permute.xlu0 %350
        %v353 = vlaneseq
        %v354 = vshrl.u32 %v353, 7
        %v355 = vsub.s32 0, %v354
        %v356 = vrot.slane %v325, %v355
        %v357 = vlaneseq
        %v358 = vshrl.u32 %v357, 7
        %v359 = vsub.s32 0, %v358
        %v360 = vrot.slane %v326, %v359
        %v361 = vmul.f32 %v336, %v356
        %v362 = vmul.f32 %v336, %v360
        %v363 = vmul.f32 %v341, %v356
        %v364 = vmul.f32 %v341, %v360
        %v365 = vmul.f32 %v346, %v356
        %v366 = vmul.f32 %v346, %v360
        %v367 = vmul.f32 %v351, %v356
        %v368 = vmul.f32 %v351, %v360
        %v369 = vadd.f32 %v361, 0.0
        %v370 = vadd.f32 %v362, 0.0
        %v371 = vadd.f32 %v363, 0.0
        %v372 = vadd.f32 %v364, 0.0
        %v373 = vadd.f32 %v365, 0.0
        %v374 = vadd.f32 %v366, 0.0
        %v375 = vadd.f32 %v367, 0.0
        %v376 = vadd.f32 %v368, 0.0
        %377 = vset.pattern.permute.xlu0 1
        %378 = vperm.xlu0 %377, %v329
        %v379 = vpop.permute.xlu0 %378
        %381 = vset.pattern.permute.xlu0 1
        %382 = vperm.xlu0 %381, %v330
        %v383 = vpop.permute.xlu0 %382
        %385 = vset.pattern.permute.xlu0 1
        %386 = vperm.xlu0 %385, %v331
        %v387 = vpop.permute.xlu0 %386
        %389 = vset.pattern.permute.xlu0 1
        %390 = vperm.xlu0 %389, %v332
        %v391 = vpop.permute.xlu0 %390
        %v393 = vlaneseq
        %v394 = vshrl.u32 %v393, 7
        %v395 = vsub.s32 1, %v394
        %v396 = vrot.slane %v325, %v395
        %v397 = vlaneseq
        %v398 = vshrl.u32 %v397, 7
        %v399 = vsub.s32 1, %v398
        %v400 = vrot.slane %v326, %v399
        %v401 = vmul.f32 %v379, %v396
        %v402 = vmul.f32 %v379, %v400
        %v403 = vmul.f32 %v383, %v396
        %v404 = vmul.f32 %v383, %v400
        %v405 = vmul.f32 %v387, %v396
        %v406 = vmul.f32 %v387, %v400
        %v407 = vmul.f32 %v391, %v396
        %v408 = vmul.f32 %v391, %v400
        %v409 = vadd.f32 %v369, %v401
        %v410 = vadd.f32 %v370, %v402
        %v411 = vadd.f32 %v371, %v403
        %v412 = vadd.f32 %v372, %v404
        %v413 = vadd.f32 %v373, %v405
        %v414 = vadd.f32 %v374, %v406
        %v415 = vadd.f32 %v375, %v407
        %v416 = vadd.f32 %v376, %v408
        %417 = vset.pattern.permute.xlu0 2
        %418 = vperm.xlu0 %417, %v329
        %v419 = vpop.permute.xlu0 %418
        %421 = vset.pattern.permute.xlu0 2
        %422 = vperm.xlu0 %421, %v330
        %v423 = vpop.permute.xlu0 %422
        %425 = vset.pattern.permute.xlu0 2
        %426 = vperm.xlu0 %425, %v331
        %v427 = vpop.permute.xlu0 %426
        %429 = vset.pattern.permute.xlu0 2
        %430 = vperm.xlu0 %429, %v332
        %v431 = vpop.permute.xlu0 %430
        %v433 = vlaneseq
        %v434 = vshrl.u32 %v433, 7
        %v435 = vsub.s32 2, %v434
        %v436 = vrot.slane %v325, %v435
        %v437 = vlaneseq
        %v438 = vshrl.u32 %v437, 7
        %v439 = vsub.s32 2, %v438
        %v440 = vrot.slane %v326, %v439
        %v441 = vmul.f32 %v419, %v436
        %v442 = vmul.f32 %v419, %v440
        %v443 = vmul.f32 %v423, %v436
        %v444 = vmul.f32 %v423, %v440
        %v445 = vmul.f32 %v427, %v436
        %v446 = vmul.f32 %v427, %v440
        %v447 = vmul.f32 %v431, %v436
        %v448 = vmul.f32 %v431, %v440
        %v449 = vadd.f32 %v409, %v441
        %v450 = vadd.f32 %v410, %v442
        %v451 = vadd.f32 %v411, %v443
        %v452 = vadd.f32 %v412, %v444
        %v453 = vadd.f32 %v413, %v445
        %v454 = vadd.f32 %v414, %v446
        %v455 = vadd.f32 %v415, %v447
        %v456 = vadd.f32 %v416, %v448
        %457 = vset.pattern.permute.xlu0 3
        %458 = vperm.xlu0 %457, %v329
        %v459 = vpop.permute.xlu0 %458
        %461 = vset.pattern.permute.xlu0 3
        %462 = vperm.xlu0 %461, %v330
        %v463 = vpop.permute.xlu0 %462
        %465 = vset.pattern.permute.xlu0 3
        %466 = vperm.xlu0 %465, %v331
        %v467 = vpop.permute.xlu0 %466
        %469 = vset.pattern.permute.xlu0 3
        %470 = vperm.xlu0 %469, %v332
        %v471 = vpop.permute.xlu0 %470
        %v473 = vlaneseq
        %v474 = vshrl.u32 %v473, 7
        %v475 = vsub.s32 3, %v474
        %v476 = vrot.slane %v325, %v475
        %v477 = vlaneseq
        %v478 = vshrl.u32 %v477, 7
        %v479 = vsub.s32 3, %v478
        %v480 = vrot.slane %v326, %v479
        %v481 = vmul.f32 %v459, %v476
        %v482 = vmul.f32 %v459, %v480
        %v483 = vmul.f32 %v463, %v476
        %v484 = vmul.f32 %v463, %v480
        %v485 = vmul.f32 %v467, %v476
        %v486 = vmul.f32 %v467, %v480
        %v487 = vmul.f32 %v471, %v476
        %v488 = vmul.f32 %v471, %v480
        %v489 = vadd.f32 %v449, %v481
        %v490 = vadd.f32 %v450, %v482
        %v491 = vadd.f32 %v451, %v483
        %v492 = vadd.f32 %v452, %v484
        %v493 = vadd.f32 %v453, %v485
        %v494 = vadd.f32 %v454, %v486
        %v495 = vadd.f32 %v455, %v487
        %v496 = vadd.f32 %v456, %v488
        %497 = vset.pattern.permute.xlu0 4
        %498 = vperm.xlu0 %497, %v329
        %v499 = vpop.permute.xlu0 %498
        %501 = vset.pattern.permute.xlu0 4
        %502 = vperm.xlu0 %501, %v330
        %v503 = vpop.permute.xlu0 %502
        %505 = vset.pattern.permute.xlu0 4
        %506 = vperm.xlu0 %505, %v331
        %v507 = vpop.permute.xlu0 %506
        %509 = vset.pattern.permute.xlu0 4
        %510 = vperm.xlu0 %509, %v332
        %v511 = vpop.permute.xlu0 %510
        %v513 = vlaneseq
        %v514 = vshrl.u32 %v513, 7
        %v515 = vsub.s32 4, %v514
        %v516 = vrot.slane %v325, %v515
        %v517 = vlaneseq
        %v518 = vshrl.u32 %v517, 7
        %v519 = vsub.s32 4, %v518
        %v520 = vrot.slane %v326, %v519
        %v521 = vmul.f32 %v499, %v516
        %v522 = vmul.f32 %v499, %v520
        %v523 = vmul.f32 %v503, %v516
        %v524 = vmul.f32 %v503, %v520
        %v525 = vmul.f32 %v507, %v516
        %v526 = vmul.f32 %v507, %v520
        %v527 = vmul.f32 %v511, %v516
        %v528 = vmul.f32 %v511, %v520
        %v529 = vadd.f32 %v489, %v521
        %v530 = vadd.f32 %v490, %v522
        %v531 = vadd.f32 %v491, %v523
        %v532 = vadd.f32 %v492, %v524
        %v533 = vadd.f32 %v493, %v525
        %v534 = vadd.f32 %v494, %v526
        %v535 = vadd.f32 %v495, %v527
        %v536 = vadd.f32 %v496, %v528
        %537 = vset.pattern.permute.xlu0 5
        %538 = vperm.xlu0 %537, %v329
        %v539 = vpop.permute.xlu0 %538
        %541 = vset.pattern.permute.xlu0 5
        %542 = vperm.xlu0 %541, %v330
        %v543 = vpop.permute.xlu0 %542
        %545 = vset.pattern.permute.xlu0 5
        %546 = vperm.xlu0 %545, %v331
        %v547 = vpop.permute.xlu0 %546
        %549 = vset.pattern.permute.xlu0 5
        %550 = vperm.xlu0 %549, %v332
        %v551 = vpop.permute.xlu0 %550
        %v553 = vlaneseq
        %v554 = vshrl.u32 %v553, 7
        %v555 = vsub.s32 5, %v554
        %v556 = vrot.slane %v325, %v555
        %v557 = vlaneseq
        %v558 = vshrl.u32 %v557, 7
        %v559 = vsub.s32 5, %v558
        %v560 = vrot.slane %v326, %v559
        %v561 = vmul.f32 %v539, %v556
        %v562 = vmul.f32 %v539, %v560
        %v563 = vmul.f32 %v543, %v556
        %v564 = vmul.f32 %v543, %v560
        %v565 = vmul.f32 %v547, %v556
        %v566 = vmul.f32 %v547, %v560
        %v567 = vmul.f32 %v551, %v556
        %v568 = vmul.f32 %v551, %v560
        %v569 = vadd.f32 %v529, %v561
        %v570 = vadd.f32 %v530, %v562
        %v571 = vadd.f32 %v531, %v563
        %v572 = vadd.f32 %v532, %v564
        %v573 = vadd.f32 %v533, %v565
        %v574 = vadd.f32 %v534, %v566
        %v575 = vadd.f32 %v535, %v567
        %v576 = vadd.f32 %v536, %v568
        %577 = vset.pattern.permute.xlu0 6
        %578 = vperm.xlu0 %577, %v329
        %v579 = vpop.permute.xlu0 %578
        %581 = vset.pattern.permute.xlu0 6
        %582 = vperm.xlu0 %581, %v330
        %v583 = vpop.permute.xlu0 %582
        %585 = vset.pattern.permute.xlu0 6
        %586 = vperm.xlu0 %585, %v331
        %v587 = vpop.permute.xlu0 %586
        %589 = vset.pattern.permute.xlu0 6
        %590 = vperm.xlu0 %589, %v332
        %v591 = vpop.permute.xlu0 %590
        %v593 = vlaneseq
        %v594 = vshrl.u32 %v593, 7
        %v595 = vsub.s32 6, %v594
        %v596 = vrot.slane %v325, %v595
        %v597 = vlaneseq
        %v598 = vshrl.u32 %v597, 7
        %v599 = vsub.s32 6, %v598
        %v600 = vrot.slane %v326, %v599
        %v601 = vmul.f32 %v579, %v596
        %v602 = vmul.f32 %v579, %v600
        %v603 = vmul.f32 %v583, %v596
        %v604 = vmul.f32 %v583, %v600
        %v605 = vmul.f32 %v587, %v596
        %v606 = vmul.f32 %v587, %v600
        %v607 = vmul.f32 %v591, %v596
        %v608 = vmul.f32 %v591, %v600
        %v609 = vadd.f32 %v569, %v601
        %v610 = vadd.f32 %v570, %v602
        %v611 = vadd.f32 %v571, %v603
        %v612 = vadd.f32 %v572, %v604
        %v613 = vadd.f32 %v573, %v605
        %v614 = vadd.f32 %v574, %v606
        %v615 = vadd.f32 %v575, %v607
        %v616 = vadd.f32 %v576, %v608
        %617 = vset.pattern.permute.xlu0 7
        %618 = vperm.xlu0 %617, %v329
        %v619 = vpop.permute.xlu0 %618
        %621 = vset.pattern.permute.xlu0 7
        %622 = vperm.xlu0 %621, %v330
        %v623 = vpop.permute.xlu0 %622
        %625 = vset.pattern.permute.xlu0 7
        %626 = vperm.xlu0 %625, %v331
        %v627 = vpop.permute.xlu0 %626
        %629 = vset.pattern.permute.xlu0 7
        %630 = vperm.xlu0 %629, %v332
        %v631 = vpop.permute.xlu0 %630
        %v633 = vlaneseq
        %v634 = vshrl.u32 %v633, 7
        %v635 = vsub.s32 7, %v634
        %v636 = vrot.slane %v325, %v635
        %v637 = vlaneseq
        %v638 = vshrl.u32 %v637, 7
        %v639 = vsub.s32 7, %v638
        %v640 = vrot.slane %v326, %v639
        %v641 = vmul.f32 %v619, %v636
        %v642 = vmul.f32 %v619, %v640
        %v643 = vmul.f32 %v623, %v636
        %v644 = vmul.f32 %v623, %v640
        %v645 = vmul.f32 %v627, %v636
        %v646 = vmul.f32 %v627, %v640
        %v647 = vmul.f32 %v631, %v636
        %v648 = vmul.f32 %v631, %v640
        %v649 = vadd.f32 %v609, %v641
        %v650 = vadd.f32 %v610, %v642
        %v651 = vadd.f32 %v611, %v643
        %v652 = vadd.f32 %v612, %v644
        %v653 = vadd.f32 %v613, %v645
        %v654 = vadd.f32 %v614, %v646
        %v655 = vadd.f32 %v615, %v647
        %v656 = vadd.f32 %v616, %v648
        %657 = vset.pattern.permute.xlu0 8
        %658 = vperm.xlu0 %657, %v329
        %v659 = vpop.permute.xlu0 %658
        %661 = vset.pattern.permute.xlu0 8
        %662 = vperm.xlu0 %661, %v330
        %v663 = vpop.permute.xlu0 %662
        %665 = vset.pattern.permute.xlu0 8
        %666 = vperm.xlu0 %665, %v331
        %v667 = vpop.permute.xlu0 %666
        %669 = vset.pattern.permute.xlu0 8
        %670 = vperm.xlu0 %669, %v332
        %v671 = vpop.permute.xlu0 %670
        %v673 = vlaneseq
        %v674 = vshrl.u32 %v673, 7
        %v675 = vsub.s32 0, %v674
        %v676 = vrot.slane %v327, %v675
        %v677 = vlaneseq
        %v678 = vshrl.u32 %v677, 7
        %v679 = vsub.s32 0, %v678
        %v680 = vrot.slane %v328, %v679
        %v681 = vmul.f32 %v659, %v676
        %v682 = vmul.f32 %v659, %v680
        %v683 = vmul.f32 %v663, %v676
        %v684 = vmul.f32 %v663, %v680
        %v685 = vmul.f32 %v667, %v676
        %v686 = vmul.f32 %v667, %v680
        %v687 = vmul.f32 %v671, %v676
        %v688 = vmul.f32 %v671, %v680
        %v689 = vadd.f32 %v649, %v681
        %v690 = vadd.f32 %v650, %v682
        %v691 = vadd.f32 %v651, %v683
        %v692 = vadd.f32 %v652, %v684
        %v693 = vadd.f32 %v653, %v685
        %v694 = vadd.f32 %v654, %v686
        %v695 = vadd.f32 %v655, %v687
        %v696 = vadd.f32 %v656, %v688
        %v697 = vld [vmem:[%s3] sm:$0xff]
        %v698 = vld [vmem:[%s3 + $0x8] sm:$0xff]
        %v699 = vld [vmem:[%s3 + $0x10] sm:$0xff]
        %v700 = vld [vmem:[%s3 + $0x18] sm:$0xff]
        %702 = vset.pattern.permute.xlu0 0
        %703 = vperm.xlu0 %702, %v697
        %v704 = vpop.permute.xlu0 %703
        %707 = vset.pattern.permute.xlu0 0
        %708 = vperm.xlu0 %707, %v698
        %v709 = vpop.permute.xlu0 %708
        %712 = vset.pattern.permute.xlu0 0
        %713 = vperm.xlu0 %712, %v699
        %v714 = vpop.permute.xlu0 %713
        %717 = vset.pattern.permute.xlu0 0
        %718 = vperm.xlu0 %717, %v700
        %v719 = vpop.permute.xlu0 %718
        %v721 = vadd.f32 %v689, %v704
        %v722 = vadd.f32 %v690, %v704
        %v723 = vadd.f32 %v691, %v709
        %v724 = vadd.f32 %v692, %v709
        %v725 = vadd.f32 %v693, %v714
        %v726 = vadd.f32 %v694, %v714
        %v727 = vadd.f32 %v695, %v719
        %v728 = vadd.f32 %v696, %v719
        %v729 = vmax.f32 %v721, 0.0
        %v730 = vmax.f32 %v722, 0.0
        %v731 = vmax.f32 %v723, 0.0
        %v732 = vmax.f32 %v724, 0.0
        %v733 = vmax.f32 %v725, 0.0
        %v734 = vmax.f32 %v726, 0.0
        %v735 = vmax.f32 %v727, 0.0
        %v736 = vmax.f32 %v728, 0.0
        %v737 = vld [vmem:[#allocation3] sm:$0xff]
        %v738 = vld [vmem:[#allocation3 + $0x8] sm:$0xff]
        %v739 = vld [vmem:[#allocation3 + $0x10] sm:$0xff]
        %v740 = vld [vmem:[#allocation3 + $0x18] sm:$0xff]
        %v741 = vld [vmem:[#allocation3 + $0x20] sm:$0xff]
        %v742 = vld [vmem:[#allocation3 + $0x28] sm:$0xff]
        %v743 = vld [vmem:[#allocation3 + $0x30] sm:$0xff]
        %v744 = vld [vmem:[#allocation3 + $0x38] sm:$0xff]
        %v745 = vld [vmem:[#allocation3 + $0x40] sm:$0xff]
        %v746 = vld [vmem:[#allocation3 + $0x48] sm:$0xff]
        %v747 = vld [vmem:[#allocation3 + $0x50] sm:$0xff]
        %v748 = vld [vmem:[#allocation3 + $0x58] sm:$0xff]
        %v749 = vld [vmem:[%s5] sm:$0xff]
        %v750 = vld [vmem:[%s5 + $0x8] sm:$0xff]
        %v751 = vld [vmem:[%s5 + $0x10] sm:$0xff]
        %v752 = vld [vmem:[%s5 + $0x18] sm:$0xff]
        %753 = vrot.lane.b32.xlu0 %v729, 34
        %v754 = vpop.permute.xlu0 %753
        %755 = vrot.lane.b32.xlu0 %v731, 34
        %v756 = vpop.permute.xlu0 %755
        %757 = vrot.lane.b32.xlu0 %v733, 34
        %v758 = vpop.permute.xlu0 %757
        %759 = vrot.lane.b32.xlu0 %v735, 34
        %v760 = vpop.permute.xlu0 %759
        %761 = vrot.lane.b32.xlu0 %v730, 34
        %v762 = vpop.permute.xlu0 %761
        %763 = vrot.lane.b32.xlu0 %v732, 34
        %v764 = vpop.permute.xlu0 %763
        %765 = vrot.lane.b32.xlu0 %v734, 34
        %v766 = vpop.permute.xlu0 %765
        %767 = vrot.lane.b32.xlu0 %v736, 34
        %v768 = vpop.permute.xlu0 %767
        %v769 = vlaneseq
        %v770 = vand.u32 %v769, 127
        %vm771 = vcmp.lt.s32.totalorder %v770, 34
        %v772 = vsel %vm771, %v754, %v762
        %v773 = vsel %vm771, %v756, %v764
        %v774 = vsel %vm771, %v758, %v766
        %v775 = vsel %vm771, %v760, %v768
        %v776 = vsel %vm771, %v762, %v754
        %v777 = vsel %vm771, %v764, %v756
        %v778 = vsel %vm771, %v766, %v758
        %v779 = vsel %vm771, %v768, %v760
        %v780 = vlaneseq
        %v781 = vshrl.u32 %v780, 7
        %v782 = vsub.s32 0, %v781
        %v783 = vrot.slane %v321, %v782
        %v784 = vlaneseq
        %v785 = vshrl.u32 %v784, 7
        %v786 = vsub.s32 0, %v785
        %v787 = vrot.slane %v322, %v786
        %v788 = vmul.f32 %v776, %v783
        %v789 = vmul.f32 %v772, %v787
        %v790 = vmul.f32 %v777, %v783
        %v791 = vmul.f32 %v773, %v787
        %v792 = vmul.f32 %v778, %v783
        %v793 = vmul.f32 %v774, %v787
        %v794 = vmul.f32 %v779, %v783
        %v795 = vmul.f32 %v775, %v787
        %796 = vrot.lane.b32.xlu0 %v729, 32
        %v797 = vpop.permute.xlu0 %796
        %798 = vrot.lane.b32.xlu0 %v731, 32
        %v799 = vpop.permute.xlu0 %798
        %800 = vrot.lane.b32.xlu0 %v733, 32
        %v801 = vpop.permute.xlu0 %800
        %802 = vrot.lane.b32.xlu0 %v735, 32
        %v803 = vpop.permute.xlu0 %802
        %804 = vrot.lane.b32.xlu0 %v730, 32
        %v805 = vpop.permute.xlu0 %804
        %806 = vrot.lane.b32.xlu0 %v732, 32
        %v807 = vpop.permute.xlu0 %806
        %808 = vrot.lane.b32.xlu0 %v734, 32
        %v809 = vpop.permute.xlu0 %808
        %810 = vrot.lane.b32.xlu0 %v736, 32
        %v811 = vpop.permute.xlu0 %810
        %vm812 = vcmp.lt.s32.totalorder %v770, 32
        %v813 = vsel %vm812, %v797, %v805
        %v814 = vsel %vm812, %v799, %v807
        %v815 = vsel %vm812, %v801, %v809
        %v816 = vsel %vm812, %v803, %v811
        %v817 = vsel %vm812, %v805, %v797
        %v818 = vsel %vm812, %v807, %v799
        %v819 = vsel %vm812, %v809, %v801
        %v820 = vsel %vm812, %v811, %v803
        %v821 = vlaneseq
        %v822 = vshrl.u32 %v821, 7
        %v823 = vsub.s32 1, %v822
        %v824 = vrot.slane %v321, %v823
        %v825 = vlaneseq
        %v826 = vshrl.u32 %v825, 7
        %v827 = vsub.s32 1, %v826
        %v828 = vrot.slane %v322, %v827
        %v829 = vmul.f32 %v817, %v824
        %v830 = vmul.f32 %v813, %v828
        %v831 = vmul.f32 %v818, %v824
        %v832 = vmul.f32 %v814, %v828
        %v833 = vmul.f32 %v819, %v824
        %v834 = vmul.f32 %v815, %v828
        %v835 = vmul.f32 %v820, %v824
        %v836 = vmul.f32 %v816, %v828
        %837 = vrot.lane.b32.xlu0 %v729, 30
        %v838 = vpop.permute.xlu0 %837
        %839 = vrot.lane.b32.xlu0 %v731, 30
        %v840 = vpop.permute.xlu0 %839
        %841 = vrot.lane.b32.xlu0 %v733, 30
        %v842 = vpop.permute.xlu0 %841
        %843 = vrot.lane.b32.xlu0 %v735, 30
        %v844 = vpop.permute.xlu0 %843
        %845 = vrot.lane.b32.xlu0 %v730, 30
        %v846 = vpop.permute.xlu0 %845
        %847 = vrot.lane.b32.xlu0 %v732, 30
        %v848 = vpop.permute.xlu0 %847
        %849 = vrot.lane.b32.xlu0 %v734, 30
        %v850 = vpop.permute.xlu0 %849
        %851 = vrot.lane.b32.xlu0 %v736, 30
        %v852 = vpop.permute.xlu0 %851
        %vm853 = vcmp.lt.s32.totalorder %v770, 30
        %v854 = vsel %vm853, %v838, %v846
        %v855 = vsel %vm853, %v840, %v848
        %v856 = vsel %vm853, %v842, %v850
        %v857 = vsel %vm853, %v844, %v852
        %v858 = vsel %vm853, %v846, %v838
        %v859 = vsel %vm853, %v848, %v840
        %v860 = vsel %vm853, %v850, %v842
        %v861 = vsel %vm853, %v852, %v844
        %v862 = vlaneseq
        %v863 = vshrl.u32 %v862, 7
        %v864 = vsub.s32 2, %v863
        %v865 = vrot.slane %v321, %v864
        %v866 = vlaneseq
        %v867 = vshrl.u32 %v866, 7
        %v868 = vsub.s32 2, %v867
        %v869 = vrot.slane %v322, %v868
        %v870 = vmul.f32 %v858, %v865
        %v871 = vmul.f32 %v854, %v869
        %v872 = vmul.f32 %v859, %v865
        %v873 = vmul.f32 %v855, %v869
        %v874 = vmul.f32 %v860, %v865
        %v875 = vmul.f32 %v856, %v869
        %v876 = vmul.f32 %v861, %v865
        %v877 = vmul.f32 %v857, %v869
        %878 = vrot.lane.b32.xlu0 %v729, 2
        %v879 = vpop.permute.xlu0 %878
        %880 = vrot.lane.b32.xlu0 %v731, 2
        %v881 = vpop.permute.xlu0 %880
        %882 = vrot.lane.b32.xlu0 %v733, 2
        %v883 = vpop.permute.xlu0 %882
        %884 = vrot.lane.b32.xlu0 %v735, 2
        %v885 = vpop.permute.xlu0 %884
        %886 = vrot.lane.b32.xlu0 %v730, 2
        %v887 = vpop.permute.xlu0 %886
        %888 = vrot.lane.b32.xlu0 %v732, 2
        %v889 = vpop.permute.xlu0 %888
        %890 = vrot.lane.b32.xlu0 %v734, 2
        %v891 = vpop.permute.xlu0 %890
        %892 = vrot.lane.b32.xlu0 %v736, 2
        %v893 = vpop.permute.xlu0 %892
        %vm894 = vcmp.lt.s32.totalorder %v770, 2
        %v895 = vsel %vm894, %v879, %v887
        %v896 = vsel %vm894, %v881, %v889
        %v897 = vsel %vm894, %v883, %v891
        %v898 = vsel %vm894, %v885, %v893
        %v899 = vsel %vm894, %v887, %v879
        %v900 = vsel %vm894, %v889, %v881
        %v901 = vsel %vm894, %v891, %v883
        %v902 = vsel %vm894, %v893, %v885
        %v903 = vlaneseq
        %v904 = vshrl.u32 %v903, 7
        %v905 = vsub.s32 3, %v904
        %v906 = vrot.slane %v321, %v905
        %v907 = vlaneseq
        %v908 = vshrl.u32 %v907, 7
        %v909 = vsub.s32 3, %v908
        %v910 = vrot.slane %v322, %v909
        %v911 = vmul.f32 %v899, %v906
        %v912 = vmul.f32 %v895, %v910
        %v913 = vmul.f32 %v900, %v906
        %v914 = vmul.f32 %v896, %v910
        %v915 = vmul.f32 %v901, %v906
        %v916 = vmul.f32 %v897, %v910
        %v917 = vmul.f32 %v902, %v906
        %v918 = vmul.f32 %v898, %v910
        %919 = vrot.lane.b32.xlu0 %v729, 126
        %v920 = vpop.permute.xlu0 %919
        %921 = vrot.lane.b32.xlu0 %v731, 126
        %v922 = vpop.permute.xlu0 %921
        %923 = vrot.lane.b32.xlu0 %v733, 126
        %v924 = vpop.permute.xlu0 %923
        %925 = vrot.lane.b32.xlu0 %v735, 126
        %v926 = vpop.permute.xlu0 %925
        %927 = vrot.lane.b32.xlu0 %v730, 126
        %v928 = vpop.permute.xlu0 %927
        %929 = vrot.lane.b32.xlu0 %v732, 126
        %v930 = vpop.permute.xlu0 %929
        %931 = vrot.lane.b32.xlu0 %v734, 126
        %v932 = vpop.permute.xlu0 %931
        %933 = vrot.lane.b32.xlu0 %v736, 126
        %v934 = vpop.permute.xlu0 %933
        %vm935 = vcmp.lt.s32.totalorder %v770, 126
        %v936 = vsel %vm935, %v920, %v928
        %v937 = vsel %vm935, %v922, %v930
        %v938 = vsel %vm935, %v924, %v932
        %v939 = vsel %vm935, %v926, %v934
        %v940 = vsel %vm935, %v928, %v920
        %v941 = vsel %vm935, %v930, %v922
        %v942 = vsel %vm935, %v932, %v924
        %v943 = vsel %vm935, %v934, %v926
        %v944 = vlaneseq
        %v945 = vshrl.u32 %v944, 7
        %v946 = vsub.s32 5, %v945
        %v947 = vrot.slane %v321, %v946
        %v948 = vlaneseq
        %v949 = vshrl.u32 %v948, 7
        %v950 = vsub.s32 5, %v949
        %v951 = vrot.slane %v322, %v950
        %v952 = vmul.f32 %v936, %v947
        %v953 = vmul.f32 %v940, %v951
        %v954 = vmul.f32 %v937, %v947
        %v955 = vmul.f32 %v941, %v951
        %v956 = vmul.f32 %v938, %v947
        %v957 = vmul.f32 %v942, %v951
        %v958 = vmul.f32 %v939, %v947
        %v959 = vmul.f32 %v943, %v951
        %960 = vrot.lane.b32.xlu0 %v729, 98
        %v961 = vpop.permute.xlu0 %960
        %962 = vrot.lane.b32.xlu0 %v731, 98
        %v963 = vpop.permute.xlu0 %962
        %964 = vrot.lane.b32.xlu0 %v733, 98
        %v965 = vpop.permute.xlu0 %964
        %966 = vrot.lane.b32.xlu0 %v735, 98
        %v967 = vpop.permute.xlu0 %966
        %968 = vrot.lane.b32.xlu0 %v730, 98
        %v969 = vpop.permute.xlu0 %968
        %970 = vrot.lane.b32.xlu0 %v732, 98
        %v971 = vpop.permute.xlu0 %970
        %972 = vrot.lane.b32.xlu0 %v734, 98
        %v973 = vpop.permute.xlu0 %972
        %974 = vrot.lane.b32.xlu0 %v736, 98
        %v975 = vpop.permute.xlu0 %974
        %vm976 = vcmp.lt.s32.totalorder %v770, 98
        %v977 = vsel %vm976, %v961, %v969
        %v978 = vsel %vm976, %v963, %v971
        %v979 = vsel %vm976, %v965, %v973
        %v980 = vsel %vm976, %v967, %v975
        %v981 = vsel %vm976, %v969, %v961
        %v982 = vsel %vm976, %v971, %v963
        %v983 = vsel %vm976, %v973, %v965
        %v984 = vsel %vm976, %v975, %v967
        %v985 = vlaneseq
        %v986 = vshrl.u32 %v985, 7
        %v987 = vsub.s32 6, %v986
        %v988 = vrot.slane %v321, %v987
        %v989 = vlaneseq
        %v990 = vshrl.u32 %v989, 7
        %v991 = vsub.s32 6, %v990
        %v992 = vrot.slane %v322, %v991
        %v993 = vmul.f32 %v977, %v988
        %v994 = vmul.f32 %v981, %v992
        %v995 = vmul.f32 %v978, %v988
        %v996 = vmul.f32 %v982, %v992
        %v997 = vmul.f32 %v979, %v988
        %v998 = vmul.f32 %v983, %v992
        %v999 = vmul.f32 %v980, %v988
        %v1000 = vmul.f32 %v984, %v992
        %1001 = vrot.lane.b32.xlu0 %v729, 96
        %v1002 = vpop.permute.xlu0 %1001
        %1003 = vrot.lane.b32.xlu0 %v731, 96
        %v1004 = vpop.permute.xlu0 %1003
        %1005 = vrot.lane.b32.xlu0 %v733, 96
        %v1006 = vpop.permute.xlu0 %1005
        %1007 = vrot.lane.b32.xlu0 %v735, 96
        %v1008 = vpop.permute.xlu0 %1007
        %1009 = vrot.lane.b32.xlu0 %v730, 96
        %v1010 = vpop.permute.xlu0 %1009
        %1011 = vrot.lane.b32.xlu0 %v732, 96
        %v1012 = vpop.permute.xlu0 %1011
        %1013 = vrot.lane.b32.xlu0 %v734, 96
        %v1014 = vpop.permute.xlu0 %1013
        %1015 = vrot.lane.b32.xlu0 %v736, 96
        %v1016 = vpop.permute.xlu0 %1015
        %vm1017 = vcmp.lt.s32.totalorder %v770, 96
        %v1018 = vsel %vm1017, %v1002, %v1010
        %v1019 = vsel %vm1017, %v1004, %v1012
        %v1020 = vsel %vm1017, %v1006, %v1014
        %v1021 = vsel %vm1017, %v1008, %v1016
        %v1022 = vsel %vm1017, %v1010, %v1002
        %v1023 = vsel %vm1017, %v1012, %v1004
        %v1024 = vsel %vm1017, %v1014, %v1006
        %v1025 = vsel %vm1017, %v1016, %v1008
        %v1026 = vlaneseq
        %v1027 = vshrl.u32 %v1026, 7
        %v1028 = vsub.s32 7, %v1027
        %v1029 = vrot.slane %v321, %v1028
        %v1030 = vlaneseq
        %v1031 = vshrl.u32 %v1030, 7
        %v1032 = vsub.s32 7, %v1031
        %v1033 = vrot.slane %v322, %v1032
        %v1034 = vmul.f32 %v1018, %v1029
        %v1035 = vmul.f32 %v1022, %v1033
        %v1036 = vmul.f32 %v1019, %v1029
        %v1037 = vmul.f32 %v1023, %v1033
        %v1038 = vmul.f32 %v1020, %v1029
        %v1039 = vmul.f32 %v1024, %v1033
        %v1040 = vmul.f32 %v1021, %v1029
        %v1041 = vmul.f32 %v1025, %v1033
        %1042 = vrot.lane.b32.xlu0 %v729, 94
        %v1043 = vpop.permute.xlu0 %1042
        %1044 = vrot.lane.b32.xlu0 %v731, 94
        %v1045 = vpop.permute.xlu0 %1044
        %1046 = vrot.lane.b32.xlu0 %v733, 94
        %v1047 = vpop.permute.xlu0 %1046
        %1048 = vrot.lane.b32.xlu0 %v735, 94
        %v1049 = vpop.permute.xlu0 %1048
        %1050 = vrot.lane.b32.xlu0 %v730, 94
        %v1051 = vpop.permute.xlu0 %1050
        %1052 = vrot.lane.b32.xlu0 %v732, 94
        %v1053 = vpop.permute.xlu0 %1052
        %1054 = vrot.lane.b32.xlu0 %v734, 94
        %v1055 = vpop.permute.xlu0 %1054
        %1056 = vrot.lane.b32.xlu0 %v736, 94
        %v1057 = vpop.permute.xlu0 %1056
        %vm1058 = vcmp.lt.s32.totalorder %v770, 94
        %v1059 = vsel %vm1058, %v1043, %v1051
        %v1060 = vsel %vm1058, %v1045, %v1053
        %v1061 = vsel %vm1058, %v1047, %v1055
        %v1062 = vsel %vm1058, %v1049, %v1057
        %v1063 = vsel %vm1058, %v1051, %v1043
        %v1064 = vsel %vm1058, %v1053, %v1045
        %v1065 = vsel %vm1058, %v1055, %v1047
        %v1066 = vsel %vm1058, %v1057, %v1049
        %v1067 = vlaneseq
        %v1068 = vshrl.u32 %v1067, 7
        %v1069 = vsub.s32 0, %v1068
        %v1070 = vrot.slane %v323, %v1069
        %v1071 = vlaneseq
        %v1072 = vshrl.u32 %v1071, 7
        %v1073 = vsub.s32 0, %v1072
        %v1074 = vrot.slane %v324, %v1073
        %v1075 = vmul.f32 %v1059, %v1070
        %v1076 = vmul.f32 %v1063, %v1074
        %v1077 = vmul.f32 %v1060, %v1070
        %v1078 = vmul.f32 %v1064, %v1074
        %v1079 = vmul.f32 %v1061, %v1070
        %v1080 = vmul.f32 %v1065, %v1074
        %v1081 = vmul.f32 %v1062, %v1070
        %v1082 = vmul.f32 %v1066, %v1074
        %1084 = vset.pattern.permute.xlu0 0
        %1085 = vperm.xlu0 %1084, %v749
        %v1086 = vpop.permute.xlu0 %1085
        %1089 = vset.pattern.permute.xlu0 0
        %1090 = vperm.xlu0 %1089, %v750
        %v1091 = vpop.permute.xlu0 %1090
        %1094 = vset.pattern.permute.xlu0 0
        %1095 = vperm.xlu0 %1094, %v751
        %v1096 = vpop.permute.xlu0 %1095
        %1099 = vset.pattern.permute.xlu0 0
        %1100 = vperm.xlu0 %1099, %v752
        %v1101 = vpop.permute.xlu0 %1100
        %vm1103 = vcmask 261120
        %v1105 = vsel %vm1103, %v739, 0
        %v1108 = vsel %vm1103, %v742, 0
        %v1111 = vsel %vm1103, %v745, 0
        %v1114 = vsel %vm1103, %v748, 0
        %1116 = vmatprep.subr.mxu0 %v789
        %1117 = vmatpush1.msra.mxu0 %v788
        %1118 = vmatprep.subr.mxu0 %v791
        %1119 = vmatpush1.msra.mxu0 %v790
        %1120 = vmatprep.subr.mxu0 %v793
        %1121 = vmatpush1.msra.mxu0 %v792
        %1122 = vmatprep.subr.mxu0 %v795
        %1123 = vmatpush1.msra.mxu0 %v794
        %1124 = vmatprep.subr.mxu0 %v830
        %1125 = vmatpush1.msra.mxu0 %v829
        %1126 = vmatprep.subr.mxu0 %v832
        %1127 = vmatpush1.msra.mxu0 %v831
        %1128 = vmatprep.subr.mxu0 %v834
        %1129 = vmatpush1.msra.mxu0 %v833
        %1130 = vmatprep.subr.mxu0 %v836
        %1131 = vmatpush1.msra.mxu0 %v835
        %1132 = vmatprep.subr.mxu0 %v871
        %1133 = vmatpush1.msra.mxu0 %v870
        %1134 = vmatprep.subr.mxu0 %v873
        %1135 = vmatpush1.msra.mxu0 %v872
        %1136 = vmatprep.subr.mxu0 %v875
        %1137 = vmatpush1.msra.mxu0 %v874
        %1138 = vmatprep.subr.mxu0 %v877
        %1139 = vmatpush1.msra.mxu0 %v876
        %1140 = vmatprep.subr.mxu0 %v912
        %1141 = vmatpush1.msra.mxu0 %v911
        %1142 = vmatprep.subr.mxu0 %v914
        %1143 = vmatpush1.msra.mxu0 %v913
        %1144 = vmatprep.subr.mxu0 %v916
        %1145 = vmatpush1.msra.mxu0 %v915
        %1146 = vmatprep.subr.mxu0 %v918
        %1147 = vmatpush1.msra.mxu0 %v917
        %1148 = vmatprep.subr.mxu0 %v730
        %1149 = vmatpush1.msra.mxu0 %v729
        %1150 = vmatprep.subr.mxu0 %v732
        %1151 = vmatpush1.msra.mxu0 %v731
        %1152 = vmatprep.subr.mxu0 %v734
        %1153 = vmatpush1.msra.mxu0 %v733
        %1154 = vmatprep.subr.mxu0 %v736
        %1155 = vmatpush1.msra.mxu0 %v735
        %1156 = vmatprep.subr.mxu0 %v953
        %1157 = vmatpush1.msra.mxu0 %v952
        %1158 = vmatprep.subr.mxu0 %v955
        %1159 = vmatpush1.msra.mxu0 %v954
        %1160 = vmatprep.subr.mxu0 %v957
        %1161 = vmatpush1.msra.mxu0 %v956
        %1162 = vmatprep.subr.mxu0 %v959
        %1163 = vmatpush1.msra.mxu0 %v958
        %1164 = vmatprep.subr.mxu0 %v994
        %1165 = vmatpush1.msra.mxu0 %v993
        %1166 = vmatprep.subr.mxu0 %v996
        %1167 = vmatpush1.msra.mxu0 %v995
        %1168 = vmatprep.subr.mxu0 %v998
        %1169 = vmatpush1.msra.mxu0 %v997
        %1170 = vmatprep.subr.mxu0 %v1000
        %1171 = vmatpush1.msra.mxu0 %v999
        %1172 = vmatprep.subr.mxu0 %v1035
        %1173 = vmatpush1.msra.mxu0 %v1034
        %1174 = vmatprep.subr.mxu0 %v1037
        %1175 = vmatpush1.msra.mxu0 %v1036
        %1176 = vmatprep.subr.mxu0 %v1039
        %1177 = vmatpush1.msra.mxu0 %v1038
        %1178 = vmatprep.subr.mxu0 %v1041
        %1179 = vmatpush1.msra.mxu0 %v1040
        %1180 = vmatprep.mubr.f32.mxu0 %v738
        %1181 = vmatmul.mubr.f32.gmra.mrb[0].mxu0 %v737
        %v1182 = vpop.f32.mrb[0].mxu0
        %v1183 = vadd.f32 %v1086, %v1182
        %v1184 = vpop.f32.mrb[0].mxu0
        %v1185 = vadd.f32 %v1086, %v1184
        %1186 = vmatprep.mubr.f32.mxu0 %v741
        %1187 = vmatmul.mubr.f32.gmra.mrb[0].mxu0 %v740
        %v1188 = vpop.f32.mrb[0].mxu0
        %v1189 = vadd.f32 %v1091, %v1188
        %v1190 = vpop.f32.mrb[0].mxu0
        %v1191 = vadd.f32 %v1091, %v1190
        %1192 = vmatprep.mubr.f32.mxu0 %v744
        %1193 = vmatmul.mubr.f32.gmra.mrb[0].mxu0 %v743
        %v1194 = vpop.f32.mrb[0].mxu0
        %v1195 = vadd.f32 %v1096, %v1194
        %v1196 = vpop.f32.mrb[0].mxu0
        %v1197 = vadd.f32 %v1096, %v1196
        %1198 = vmatprep.mubr.f32.mxu0 %v747
        %1199 = vmatmul.mubr.f32.gmra.mrb[0].mxu0 %v746
        %v1200 = vpop.f32.mrb[0].mxu0
        %v1201 = vadd.f32 %v1101, %v1200
        %v1202 = vpop.f32.mrb[0].mxu0
        %v1203 = vadd.f32 %v1101, %v1202
        %1204 = vdwg.mxu0
        %1205 = vmatprep.subr.mxu0 %v1076
        %1206 = vmatpush1.msra.mxu0 %v1075
        %1207 = vmatprep.subr.mxu0 %v1078
        %1208 = vmatpush1.msra.mxu0 %v1077
        %1209 = vmatprep.subr.mxu0 %v1080
        %1210 = vmatpush1.msra.mxu0 %v1079
        %1211 = vmatprep.subr.mxu0 %v1082
        %1212 = vmatpush1.msra.mxu0 %v1081
        %1213 = vmatprep.subr.mxu0 0.0
        %1214 = vmatpush1.msra.mxu0 0.0
        %1215 = vmatprep.subr.mxu0 0.0
        %1216 = vmatpush1.msra.mxu0 0.0
        %1217 = vmatprep.subr.mxu0 0.0
        %1218 = vmatpush1.msra.mxu0 0.0
        %1219 = vmatprep.subr.mxu0 0.0
        %1220 = vmatpush1.msra.mxu0 0.0
        %1221 = vmatprep.subr.mxu0 0.0
        %1222 = vmatpush1.msra.mxu0 0.0
        %1223 = vmatprep.subr.mxu0 0.0
        %1224 = vmatpush1.msra.mxu0 0.0
        %1225 = vmatprep.subr.mxu0 0.0
        %1226 = vmatpush1.msra.mxu0 0.0
        %1227 = vmatprep.subr.mxu0 0.0
        %1228 = vmatpush1.msra.mxu0 0.0
        %1229 = vmatprep.subr.mxu0 0.0
        %1230 = vmatpush1.msra.mxu0 0.0
        %1231 = vmatprep.subr.mxu0 0.0
        %1232 = vmatpush1.msra.mxu0 0.0
        %1233 = vmatprep.subr.mxu0 0.0
        %1234 = vmatpush1.msra.mxu0 0.0
        %1235 = vmatprep.subr.mxu0 0.0
        %1236 = vmatpush1.msra.mxu0 0.0
        %1237 = vmatprep.subr.mxu0 0.0
        %1238 = vmatpush1.msra.mxu0 0.0
        %1239 = vmatprep.subr.mxu0 0.0
        %1240 = vmatpush1.msra.mxu0 0.0
        %1241 = vmatprep.subr.mxu0 0.0
        %1242 = vmatpush1.msra.mxu0 0.0
        %1243 = vmatprep.subr.mxu0 0.0
        %1244 = vmatpush1.msra.mxu0 0.0
        %1245 = vmatprep.subr.mxu0 0.0
        %1246 = vmatpush1.msra.mxu0 0.0
        %1247 = vmatprep.subr.mxu0 0.0
        %1248 = vmatpush1.msra.mxu0 0.0
        %1249 = vmatprep.subr.mxu0 0.0
        %1250 = vmatpush1.msra.mxu0 0.0
        %1251 = vmatprep.subr.mxu0 0.0
        %1252 = vmatpush1.msra.mxu0 0.0
        %1253 = vmatprep.subr.mxu0 0.0
        %1254 = vmatpush1.msra.mxu0 0.0
        %1255 = vmatprep.subr.mxu0 0.0
        %1256 = vmatpush1.msra.mxu0 0.0
        %1257 = vmatprep.subr.mxu0 0.0
        %1258 = vmatpush1.msra.mxu0 0.0
        %1259 = vmatprep.subr.mxu0 0.0
        %1260 = vmatpush1.msra.mxu0 0.0
        %1261 = vmatprep.subr.mxu0 0.0
        %1262 = vmatpush1.msra.mxu0 0.0
        %1263 = vmatprep.subr.mxu0 0.0
        %1264 = vmatpush1.msra.mxu0 0.0
        %1265 = vmatprep.subr.mxu0 0.0
        %1266 = vmatpush1.msra.mxu0 0.0
        %1267 = vmatprep.subr.mxu0 0.0
        %1268 = vmatpush1.msra.mxu0 0.0
        %1269 = vmatprep.mubr.f32.mxu0 0.0
        %1270 = vmatmul.mubr.f32.gmra.mrb[0].mxu0 %v1105
        %v1271 = vpop.f32.mrb[0].mxu0
        %v1272 = vadd.f32 %v1183, %v1271
        %v1273 = vpop.f32.mrb[0].mxu0
        %v1274 = vadd.f32 %v1185, %v1273
        %1275 = vmatprep.mubr.f32.mxu0 0.0
        %1276 = vmatmul.mubr.f32.gmra.mrb[0].mxu0 %v1108
        %v1277 = vpop.f32.mrb[0].mxu0
        %v1278 = vadd.f32 %v1189, %v1277
        %v1279 = vpop.f32.mrb[0].mxu0
        %v1280 = vadd.f32 %v1191, %v1279
        %1281 = vmatprep.mubr.f32.mxu0 0.0
        %1282 = vmatmul.mubr.f32.gmra.mrb[0].mxu0 %v1111
        %v1283 = vpop.f32.mrb[0].mxu0
        %v1284 = vadd.f32 %v1195, %v1283
        %v1285 = vpop.f32.mrb[0].mxu0
        %v1286 = vadd.f32 %v1197, %v1285
        %1287 = vmatprep.mubr.f32.mxu0 0.0
        %1288 = vmatmul.mubr.f32.gmra.mrb[0].mxu0 %v1114
        %v1289 = vpop.f32.mrb[0].mxu0
        %v1290 = vadd.f32 %v1201, %v1289
        %v1291 = vpop.f32.mrb[0].mxu0
        %v1292 = vadd.f32 %v1203, %v1291
        %1293 = vdwg.mxu0
        %v1294 = vmax.f32 %v1272, 0.0
        %v1295 = vmax.f32 %v1274, 0.0
        %v1296 = vmax.f32 %v1278, 0.0
        %v1297 = vmax.f32 %v1280, 0.0
        %v1298 = vmax.f32 %v1284, 0.0
        %v1299 = vmax.f32 %v1286, 0.0
        %v1300 = vmax.f32 %v1290, 0.0
        %v1301 = vmax.f32 %v1292, 0.0
        %s1302 = scalar_lea.vmem [#allocation3], 96
        %v1303 = vld [vmem:[%s1302] sm:$0xff]
        %v1304 = vld [vmem:[%s1302 + $0x8] sm:$0xff]
        %v1305 = vld [vmem:[%s1302 + $0x10] sm:$0xff]
        %v1306 = vld [vmem:[%s1302 + $0x18] sm:$0xff]
        %v1307 = vld [vmem:[%s1302 + $0x20] sm:$0xff]
        %v1308 = vld [vmem:[%s1302 + $0x28] sm:$0xff]
        %v1309 = vld [vmem:[%s1302 + $0x30] sm:$0xff]
        %v1310 = vld [vmem:[%s1302 + $0x38] sm:$0xff]
        %v1311 = vld [vmem:[%s1302 + $0x40] sm:$0xff]
        %v1312 = vld [vmem:[%s1302 + $0x48] sm:$0xff]
        %v1313 = vld [vmem:[%s1302 + $0x50] sm:$0xff]
        %v1314 = vld [vmem:[%s1302 + $0x58] sm:$0xff]
        %s1315 = scalar_lea.vmem %s5, 32
        %v1316 = vld [vmem:[%s1315] sm:$0xff]
        %v1317 = vld [vmem:[%s1315 + $0x8] sm:$0xff]
        %v1318 = vld [vmem:[%s1315 + $0x10] sm:$0xff]
        %v1319 = vld [vmem:[%s1315 + $0x18] sm:$0xff]
        %1320 = vrot.lane.b32.xlu0 %v1294, 34
        %v1321 = vpop.permute.xlu0 %1320
        %1322 = vrot.lane.b32.xlu0 %v1296, 34
        %v1323 = vpop.permute.xlu0 %1322
        %1324 = vrot.lane.b32.xlu0 %v1298, 34
        %v1325 = vpop.permute.xlu0 %1324
        %1326 = vrot.lane.b32.xlu0 %v1300, 34
        %v1327 = vpop.permute.xlu0 %1326
        %1328 = vrot.lane.b32.xlu0 %v1295, 34
        %v1329 = vpop.permute.xlu0 %1328
        %1330 = vrot.lane.b32.xlu0 %v1297, 34
        %v1331 = vpop.permute.xlu0 %1330
        %1332 = vrot.lane.b32.xlu0 %v1299, 34
        %v1333 = vpop.permute.xlu0 %1332
        %1334 = vrot.lane.b32.xlu0 %v1301, 34
        %v1335 = vpop.permute.xlu0 %1334
        %v1336 = vsel %vm771, %v1321, %v1329
        %v1337 = vsel %vm771, %v1323, %v1331
        %v1338 = vsel %vm771, %v1325, %v1333
        %v1339 = vsel %vm771, %v1327, %v1335
        %v1340 = vsel %vm771, %v1329, %v1321
        %v1341 = vsel %vm771, %v1331, %v1323
        %v1342 = vsel %vm771, %v1333, %v1325
        %v1343 = vsel %vm771, %v1335, %v1327
        %v1344 = vmul.f32 %v1340, %v783
        %v1345 = vmul.f32 %v1336, %v787
        %v1346 = vmul.f32 %v1341, %v783
        %v1347 = vmul.f32 %v1337, %v787
        %v1348 = vmul.f32 %v1342, %v783
        %v1349 = vmul.f32 %v1338, %v787
        %v1350 = vmul.f32 %v1343, %v783
        %v1351 = vmul.f32 %v1339, %v787
        %1352 = vrot.lane.b32.xlu0 %v1294, 32
        %v1353 = vpop.permute.xlu0 %1352
        %1354 = vrot.lane.b32.xlu0 %v1296, 32
        %v1355 = vpop.permute.xlu0 %1354
        %1356 = vrot.lane.b32.xlu0 %v1298, 32
        %v1357 = vpop.permute.xlu0 %1356
        %1358 = vrot.lane.b32.xlu0 %v1300, 32
        %v1359 = vpop.permute.xlu0 %1358
        %1360 = vrot.lane.b32.xlu0 %v1295, 32
        %v1361 = vpop.permute.xlu0 %1360
        %1362 = vrot.lane.b32.xlu0 %v1297, 32
        %v1363 = vpop.permute.xlu0 %1362
        %1364 = vrot.lane.b32.xlu0 %v1299, 32
        %v1365 = vpop.permute.xlu0 %1364
        %1366 = vrot.lane.b32.xlu0 %v1301, 32
        %v1367 = vpop.permute.xlu0 %1366
        %v1368 = vsel %vm812, %v1353, %v1361
        %v1369 = vsel %vm812, %v1355, %v1363
        %v1370 = vsel %vm812, %v1357, %v1365
        %v1371 = vsel %vm812, %v1359, %v1367
        %v1372 = vsel %vm812, %v1361, %v1353
        %v1373 = vsel %vm812, %v1363, %v1355
        %v1374 = vsel %vm812, %v1365, %v1357
        %v1375 = vsel %vm812, %v1367, %v1359
        %v1376 = vmul.f32 %v1372, %v824
        %v1377 = vmul.f32 %v1368, %v828
        %v1378 = vmul.f32 %v1373, %v824
        %v1379 = vmul.f32 %v1369, %v828
        %v1380 = vmul.f32 %v1374, %v824
        %v1381 = vmul.f32 %v1370, %v828
        %v1382 = vmul.f32 %v1375, %v824
        %v1383 = vmul.f32 %v1371, %v828
        %1384 = vrot.lane.b32.xlu0 %v1294, 30
        %v1385 = vpop.permute.xlu0 %1384
        %1386 = vrot.lane.b32.xlu0 %v1296, 30
        %v1387 = vpop.permute.xlu0 %1386
        %1388 = vrot.lane.b32.xlu0 %v1298, 30
        %v1389 = vpop.permute.xlu0 %1388
        %1390 = vrot.lane.b32.xlu0 %v1300, 30
        %v1391 = vpop.permute.xlu0 %1390
        %1392 = vrot.lane.b32.xlu0 %v1295, 30
        %v1393 = vpop.permute.xlu0 %1392
        %1394 = vrot.lane.b32.xlu0 %v1297, 30
        %v1395 = vpop.permute.xlu0 %1394
        %1396 = vrot.lane.b32.xlu0 %v1299, 30
        %v1397 = vpop.permute.xlu0 %1396
        %1398 = vrot.lane.b32.xlu0 %v1301, 30
        %v1399 = vpop.permute.xlu0 %1398
        %v1400 = vsel %vm853, %v1385, %v1393
        %v1401 = vsel %vm853, %v1387, %v1395
        %v1402 = vsel %vm853, %v1389, %v1397
        %v1403 = vsel %vm853, %v1391, %v1399
        %v1404 = vsel %vm853, %v1393, %v1385
        %v1405 = vsel %vm853, %v1395, %v1387
        %v1406 = vsel %vm853, %v1397, %v1389
        %v1407 = vsel %vm853, %v1399, %v1391
        %v1408 = vmul.f32 %v1404, %v865
        %v1409 = vmul.f32 %v1400, %v869
        %v1410 = vmul.f32 %v1405, %v865
        %v1411 = vmul.f32 %v1401, %v869
        %v1412 = vmul.f32 %v1406, %v865
        %v1413 = vmul.f32 %v1402, %v869
        %v1414 = vmul.f32 %v1407, %v865
        %v1415 = vmul.f32 %v1403, %v869
        %1416 = vrot.lane.b32.xlu0 %v1294, 2
        %v1417 = vpop.permute.xlu0 %1416
        %1418 = vrot.lane.b32.xlu0 %v1296, 2
        %v1419 = vpop.permute.xlu0 %1418
        %1420 = vrot.lane.b32.xlu0 %v1298, 2
        %v1421 = vpop.permute.xlu0 %1420
        %1422 = vrot.lane.b32.xlu0 %v1300, 2
        %v1423 = vpop.permute.xlu0 %1422
        %1424 = vrot.lane.b32.xlu0 %v1295, 2
        %v1425 = vpop.permute.xlu0 %1424
        %1426 = vrot.lane.b32.xlu0 %v1297, 2
        %v1427 = vpop.permute.xlu0 %1426
        %1428 = vrot.lane.b32.xlu0 %v1299, 2
        %v1429 = vpop.permute.xlu0 %1428
        %1430 = vrot.lane.b32.xlu0 %v1301, 2
        %v1431 = vpop.permute.xlu0 %1430
        %v1432 = vsel %vm894, %v1417, %v1425
        %v1433 = vsel %vm894, %v1419, %v1427
        %v1434 = vsel %vm894, %v1421, %v1429
        %v1435 = vsel %vm894, %v1423, %v1431
        %v1436 = vsel %vm894, %v1425, %v1417
        %v1437 = vsel %vm894, %v1427, %v1419
        %v1438 = vsel %vm894, %v1429, %v1421
        %v1439 = vsel %vm894, %v1431, %v1423
        %v1440 = vmul.f32 %v1436, %v906
        %v1441 = vmul.f32 %v1432, %v910
        %v1442 = vmul.f32 %v1437, %v906
        %v1443 = vmul.f32 %v1433, %v910
        %v1444 = vmul.f32 %v1438, %v906
        %v1445 = vmul.f32 %v1434, %v910
        %v1446 = vmul.f32 %v1439, %v906
        %v1447 = vmul.f32 %v1435, %v910
        %1448 = vrot.lane.b32.xlu0 %v1294, 126
        %v1449 = vpop.permute.xlu0 %1448
        %1450 = vrot.lane.b32.xlu0 %v1296, 126
        %v1451 = vpop.permute.xlu0 %1450
        %1452 = vrot.lane.b32.xlu0 %v1298, 126
        %v1453 = vpop.permute.xlu0 %1452
        %1454 = vrot.lane.b32.xlu0 %v1300, 126
        %v1455 = vpop.permute.xlu0 %1454
        %1456 = vrot.lane.b32.xlu0 %v1295, 126
        %v1457 = vpop.permute.xlu0 %1456
        %1458 = vrot.lane.b32.xlu0 %v1297, 126
        %v1459 = vpop.permute.xlu0 %1458
        %1460 = vrot.lane.b32.xlu0 %v1299, 126
        %v1461 = vpop.permute.xlu0 %1460
        %1462 = vrot.lane.b32.xlu0 %v1301, 126
        %v1463 = vpop.permute.xlu0 %1462
        %v1464 = vsel %vm935, %v1449, %v1457
        %v1465 = vsel %vm935, %v1451, %v1459
        %v1466 = vsel %vm935, %v1453, %v1461
        %v1467 = vsel %vm935, %v1455, %v1463
        %v1468 = vsel %vm935, %v1457, %v1449
        %v1469 = vsel %vm935, %v1459, %v1451
        %v1470 = vsel %vm935, %v1461, %v1453
        %v1471 = vsel %vm935, %v1463, %v1455
        %v1472 = vmul.f32 %v1464, %v947
        %v1473 = vmul.f32 %v1468, %v951
        %v1474 = vmul.f32 %v1465, %v947
        %v1475 = vmul.f32 %v1469, %v951
        %v1476 = vmul.f32 %v1466, %v947
        %v1477 = vmul.f32 %v1470, %v951
        %v1478 = vmul.f32 %v1467, %v947
        %v1479 = vmul.f32 %v1471, %v951
        %1480 = vrot.lane.b32.xlu0 %v1294, 98
        %v1481 = vpop.permute.xlu0 %1480
        %1482 = vrot.lane.b32.xlu0 %v1296, 98
        %v1483 = vpop.permute.xlu0 %1482
        %1484 = vrot.lane.b32.xlu0 %v1298, 98
        %v1485 = vpop.permute.xlu0 %1484
        %1486 = vrot.lane.b32.xlu0 %v1300, 98
        %v1487 = vpop.permute.xlu0 %1486
        %1488 = vrot.lane.b32.xlu0 %v1295, 98
        %v1489 = vpop.permute.xlu0 %1488
        %1490 = vrot.lane.b32.xlu0 %v1297, 98
        %v1491 = vpop.permute.xlu0 %1490
        %1492 = vrot.lane.b32.xlu0 %v1299, 98
        %v1493 = vpop.permute.xlu0 %1492
        %1494 = vrot.lane.b32.xlu0 %v1301, 98
        %v1495 = vpop.permute.xlu0 %1494
        %v1496 = vsel %vm976, %v1481, %v1489
        %v1497 = vsel %vm976, %v1483, %v1491
        %v1498 = vsel %vm976, %v1485, %v1493
        %v1499 = vsel %vm976, %v1487, %v1495
        %v1500 = vsel %vm976, %v1489, %v1481
        %v1501 = vsel %vm976, %v1491, %v1483
        %v1502 = vsel %vm976, %v1493, %v1485
        %v1503 = vsel %vm976, %v1495, %v1487
        %v1504 = vmul.f32 %v1496, %v988
        %v1505 = vmul.f32 %v1500, %v992
        %v1506 = vmul.f32 %v1497, %v988
        %v1507 = vmul.f32 %v1501, %v992
        %v1508 = vmul.f32 %v1498, %v988
        %v1509 = vmul.f32 %v1502, %v992
        %v1510 = vmul.f32 %v1499, %v988
        %v1511 = vmul.f32 %v1503, %v992
        %1512 = vrot.lane.b32.xlu0 %v1294, 96
        %v1513 = vpop.permute.xlu0 %1512
        %1514 = vrot.lane.b32.xlu0 %v1296, 96
        %v1515 = vpop.permute.xlu0 %1514
        %1516 = vrot.lane.b32.xlu0 %v1298, 96
        %v1517 = vpop.permute.xlu0 %1516
        %1518 = vrot.lane.b32.xlu0 %v1300, 96
        %v1519 = vpop.permute.xlu0 %1518
        %1520 = vrot.lane.b32.xlu0 %v1295, 96
        %v1521 = vpop.permute.xlu0 %1520
        %1522 = vrot.lane.b32.xlu0 %v1297, 96
        %v1523 = vpop.permute.xlu0 %1522
        %1524 = vrot.lane.b32.xlu0 %v1299, 96
        %v1525 = vpop.permute.xlu0 %1524
        %1526 = vrot.lane.b32.xlu0 %v1301, 96
        %v1527 = vpop.permute.xlu0 %1526
        %v1528 = vsel %vm1017, %v1513, %v1521
        %v1529 = vsel %vm1017, %v1515, %v1523
        %v1530 = vsel %vm1017, %v1517, %v1525
        %v1531 = vsel %vm1017, %v1519, %v1527
        %v1532 = vsel %vm1017, %v1521, %v1513
        %v1533 = vsel %vm1017, %v1523, %v1515
        %v1534 = vsel %vm1017, %v1525, %v1517
        %v1535 = vsel %vm1017, %v1527, %v1519
        %v1536 = vmul.f32 %v1528, %v1029
        %v1537 = vmul.f32 %v1532, %v1033
        %v1538 = vmul.f32 %v1529, %v1029
        %v1539 = vmul.f32 %v1533, %v1033
        %v1540 = vmul.f32 %v1530, %v1029
        %v1541 = vmul.f32 %v1534, %v1033
        %v1542 = vmul.f32 %v1531, %v1029
        %v1543 = vmul.f32 %v1535, %v1033
        %1544 = vrot.lane.b32.xlu0 %v1294, 94
        %v1545 = vpop.permute.xlu0 %1544
        %1546 = vrot.lane.b32.xlu0 %v1296, 94
        %v1547 = vpop.permute.xlu0 %1546
        %1548 = vrot.lane.b32.xlu0 %v1298, 94
        %v1549 = vpop.permute.xlu0 %1548
        %1550 = vrot.lane.b32.xlu0 %v1300, 94
        %v1551 = vpop.permute.xlu0 %1550
        %1552 = vrot.lane.b32.xlu0 %v1295, 94
        %v1553 = vpop.permute.xlu0 %1552
        %1554 = vrot.lane.b32.xlu0 %v1297, 94
        %v1555 = vpop.permute.xlu0 %1554
        %1556 = vrot.lane.b32.xlu0 %v1299, 94
        %v1557 = vpop.permute.xlu0 %1556
        %1558 = vrot.lane.b32.xlu0 %v1301, 94
        %v1559 = vpop.permute.xlu0 %1558
        %v1560 = vsel %vm1058, %v1545, %v1553
        %v1561 = vsel %vm1058, %v1547, %v1555
        %v1562 = vsel %vm1058, %v1549, %v1557
        %v1563 = vsel %vm1058, %v1551, %v1559
        %v1564 = vsel %vm1058, %v1553, %v1545
        %v1565 = vsel %vm1058, %v1555, %v1547
        %v1566 = vsel %vm1058, %v1557, %v1549
        %v1567 = vsel %vm1058, %v1559, %v1551
        %v1568 = vmul.f32 %v1560, %v1070
        %v1569 = vmul.f32 %v1564, %v1074
        %v1570 = vmul.f32 %v1561, %v1070
        %v1571 = vmul.f32 %v1565, %v1074
        %v1572 = vmul.f32 %v1562, %v1070
        %v1573 = vmul.f32 %v1566, %v1074
        %v1574 = vmul.f32 %v1563, %v1070
        %v1575 = vmul.f32 %v1567, %v1074
        %1577 = vset.pattern.permute.xlu0 0
        %1578 = vperm.xlu0 %1577, %v1316
        %v1579 = vpop.permute.xlu0 %1578
        %1582 = vset.pattern.permute.xlu0 0
        %1583 = vperm.xlu0 %1582, %v1317
        %v1584 = vpop.permute.xlu0 %1583
        %1587 = vset.pattern.permute.xlu0 0
        %1588 = vperm.xlu0 %1587, %v1318
        %v1589 = vpop.permute.xlu0 %1588
        %1592 = vset.pattern.permute.xlu0 0
        %1593 = vperm.xlu0 %1592, %v1319
        %v1594 = vpop.permute.xlu0 %1593
        %v1597 = vsel %vm1103, %v1305, 0
        %v1600 = vsel %vm1103, %v1308, 0
        %v1603 = vsel %vm1103, %v1311, 0
        %v1606 = vsel %vm1103, %v1314, 0
        %1608 = vmatprep.subr.mxu0 %v1345
        %1609 = vmatpush1.msra.mxu0 %v1344
        %1610 = vmatprep.subr.mxu0 %v1347
        %1611 = vmatpush1.msra.mxu0 %v1346
        %1612 = vmatprep.subr.mxu0 %v1349
        %1613 = vmatpush1.msra.mxu0 %v1348
        %1614 = vmatprep.subr.mxu0 %v1351
        %1615 = vmatpush1.msra.mxu0 %v1350
        %1616 = vmatprep.subr.mxu0 %v1377
        %1617 = vmatpush1.msra.mxu0 %v1376
        %1618 = vmatprep.subr.mxu0 %v1379
        %1619 = vmatpush1.msra.mxu0 %v1378
        %1620 = vmatprep.subr.mxu0 %v1381
        %1621 = vmatpush1.msra.mxu0 %v1380
        %1622 = vmatprep.subr.mxu0 %v1383
        %1623 = vmatpush1.msra.mxu0 %v1382
        %1624 = vmatprep.subr.mxu0 %v1409
        %1625 = vmatpush1.msra.mxu0 %v1408
        %1626 = vmatprep.subr.mxu0 %v1411
        %1627 = vmatpush1.msra.mxu0 %v1410
        %1628 = vmatprep.subr.mxu0 %v1413
        %1629 = vmatpush1.msra.mxu0 %v1412
        %1630 = vmatprep.subr.mxu0 %v1415
        %1631 = vmatpush1.msra.mxu0 %v1414
        %1632 = vmatprep.subr.mxu0 %v1441
        %1633 = vmatpush1.msra.mxu0 %v1440
        %1634 = vmatprep.subr.mxu0 %v1443
        %1635 = vmatpush1.msra.mxu0 %v1442
        %1636 = vmatprep.subr.mxu0 %v1445
        %1637 = vmatpush1.msra.mxu0 %v1444
        %1638 = vmatprep.subr.mxu0 %v1447
        %1639 = vmatpush1.msra.mxu0 %v1446
        %1640 = vmatprep.subr.mxu0 %v1295
        %1641 = vmatpush1.msra.mxu0 %v1294
        %1642 = vmatprep.subr.mxu0 %v1297
        %1643 = vmatpush1.msra.mxu0 %v1296
        %1644 = vmatprep.subr.mxu0 %v1299
        %1645 = vmatpush1.msra.mxu0 %v1298
        %1646 = vmatprep.subr.mxu0 %v1301
        %1647 = vmatpush1.msra.mxu0 %v1300
        %1648 = vmatprep.subr.mxu0 %v1473
        %1649 = vmatpush1.msra.mxu0 %v1472
        %1650 = vmatprep.subr.mxu0 %v1475
        %1651 = vmatpush1.msra.mxu0 %v1474
        %1652 = vmatprep.subr.mxu0 %v1477
        %1653 = vmatpush1.msra.mxu0 %v1476
        %1654 = vmatprep.subr.mxu0 %v1479
        %1655 = vmatpush1.msra.mxu0 %v1478
        %1656 = vmatprep.subr.mxu0 %v1505
        %1657 = vmatpush1.msra.mxu0 %v1504
        %1658 = vmatprep.subr.mxu0 %v1507
        %1659 = vmatpush1.msra.mxu0 %v1506
        %1660 = vmatprep.subr.mxu0 %v1509
        %1661 = vmatpush1.msra.mxu0 %v1508
        %1662 = vmatprep.subr.mxu0 %v1511
        %1663 = vmatpush1.msra.mxu0 %v1510
        %1664 = vmatprep.subr.mxu0 %v1537
        %1665 = vmatpush1.msra.mxu0 %v1536
        %1666 = vmatprep.subr.mxu0 %v1539
        %1667 = vmatpush1.msra.mxu0 %v1538
        %1668 = vmatprep.subr.mxu0 %v1541
        %1669 = vmatpush1.msra.mxu0 %v1540
        %1670 = vmatprep.subr.mxu0 %v1543
        %1671 = vmatpush1.msra.mxu0 %v1542
        %1672 = vmatprep.mubr.f32.mxu0 %v1304
        %1673 = vmatmul.mubr.f32.gmra.mrb[0].mxu0 %v1303
        %v1674 = vpop.f32.mrb[0].mxu0
        %v1675 = vadd.f32 %v1579, %v1674
        %v1676 = vpop.f32.mrb[0].mxu0
        %v1677 = vadd.f32 %v1579, %v1676
        %1678 = vmatprep.mubr.f32.mxu0 %v1307
        %1679 = vmatmul.mubr.f32.gmra.mrb[0].mxu0 %v1306
        %v1680 = vpop.f32.mrb[0].mxu0
        %v1681 = vadd.f32 %v1584, %v1680
        %v1682 = vpop.f32.mrb[0].mxu0
        %v1683 = vadd.f32 %v1584, %v1682
        %1684 = vmatprep.mubr.f32.mxu0 %v1310
        %1685 = vmatmul.mubr.f32.gmra.mrb[0].mxu0 %v1309
        %v1686 = vpop.f32.mrb[0].mxu0
        %v1687 = vadd.f32 %v1589, %v1686
        %v1688 = vpop.f32.mrb[0].mxu0
        %v1689 = vadd.f32 %v1589, %v1688
        %1690 = vmatprep.mubr.f32.mxu0 %v1313
        %1691 = vmatmul.mubr.f32.gmra.mrb[0].mxu0 %v1312
        %v1692 = vpop.f32.mrb[0].mxu0
        %v1693 = vadd.f32 %v1594, %v1692
        %v1694 = vpop.f32.mrb[0].mxu0
        %v1695 = vadd.f32 %v1594, %v1694
        %1696 = vdwg.mxu0
        %1697 = vmatprep.subr.mxu0 %v1569
        %1698 = vmatpush1.msra.mxu0 %v1568
        %1699 = vmatprep.subr.mxu0 %v1571
        %1700 = vmatpush1.msra.mxu0 %v1570
        %1701 = vmatprep.subr.mxu0 %v1573
        %1702 = vmatpush1.msra.mxu0 %v1572
        %1703 = vmatprep.subr.mxu0 %v1575
        %1704 = vmatpush1.msra.mxu0 %v1574
        %1705 = vmatprep.subr.mxu0 0.0
        %1706 = vmatpush1.msra.mxu0 0.0
        %1707 = vmatprep.subr.mxu0 0.0
        %1708 = vmatpush1.msra.mxu0 0.0
        %1709 = vmatprep.subr.mxu0 0.0
        %1710 = vmatpush1.msra.mxu0 0.0
        %1711 = vmatprep.subr.mxu0 0.0
        %1712 = vmatpush1.msra.mxu0 0.0
        %1713 = vmatprep.subr.mxu0 0.0
        %1714 = vmatpush1.msra.mxu0 0.0
        %1715 = vmatprep.subr.mxu0 0.0
        %1716 = vmatpush1.msra.mxu0 0.0
        %1717 = vmatprep.subr.mxu0 0.0
        %1718 = vmatpush1.msra.mxu0 0.0
        %1719 = vmatprep.subr.mxu0 0.0
        %1720 = vmatpush1.msra.mxu0 0.0
        %1721 = vmatprep.subr.mxu0 0.0
        %1722 = vmatpush1.msra.mxu0 0.0
        %1723 = vmatprep.subr.mxu0 0.0
        %1724 = vmatpush1.msra.mxu0 0.0
        %1725 = vmatprep.subr.mxu0 0.0
        %1726 = vmatpush1.msra.mxu0 0.0
        %1727 = vmatprep.subr.mxu0 0.0
        %1728 = vmatpush1.msra.mxu0 0.0
        %1729 = vmatprep.subr.mxu0 0.0
        %1730 = vmatpush1.msra.mxu0 0.0
        %1731 = vmatprep.subr.mxu0 0.0
        %1732 = vmatpush1.msra.mxu0 0.0
        %1733 = vmatprep.subr.mxu0 0.0
        %1734 = vmatpush1.msra.mxu0 0.0
        %1735 = vmatprep.subr.mxu0 0.0
        %1736 = vmatpush1.msra.mxu0 0.0
        %1737 = vmatprep.subr.mxu0 0.0
        %1738 = vmatpush1.msra.mxu0 0.0
        %1739 = vmatprep.subr.mxu0 0.0
        %1740 = vmatpush1.msra.mxu0 0.0
        %1741 = vmatprep.subr.mxu0 0.0
        %1742 = vmatpush1.msra.mxu0 0.0
        %1743 = vmatprep.subr.mxu0 0.0
        %1744 = vmatpush1.msra.mxu0 0.0
        %1745 = vmatprep.subr.mxu0 0.0
        %1746 = vmatpush1.msra.mxu0 0.0
        %1747 = vmatprep.subr.mxu0 0.0
        %1748 = vmatpush1.msra.mxu0 0.0
        %1749 = vmatprep.subr.mxu0 0.0
        %1750 = vmatpush1.msra.mxu0 0.0
        %1751 = vmatprep.subr.mxu0 0.0
        %1752 = vmatpush1.msra.mxu0 0.0
        %1753 = vmatprep.subr.mxu0 0.0
        %1754 = vmatpush1.msra.mxu0 0.0
        %1755 = vmatprep.subr.mxu0 0.0
        %1756 = vmatpush1.msra.mxu0 0.0
        %1757 = vmatprep.subr.mxu0 0.0
        %1758 = vmatpush1.msra.mxu0 0.0
        %1759 = vmatprep.subr.mxu0 0.0
        %1760 = vmatpush1.msra.mxu0 0.0
        %1761 = vmatprep.mubr.f32.mxu0 0.0
        %1762 = vmatmul.mubr.f32.gmra.mrb[0].mxu0 %v1597
        %v1763 = vpop.f32.mrb[0].mxu0
        %v1764 = vadd.f32 %v1675, %v1763
        %v1765 = vpop.f32.mrb[0].mxu0
        %v1766 = vadd.f32 %v1677, %v1765
        %1767 = vmatprep.mubr.f32.mxu0 0.0
        %1768 = vmatmul.mubr.f32.gmra.mrb[0].mxu0 %v1600
        %v1769 = vpop.f32.mrb[0].mxu0
        %v1770 = vadd.f32 %v1681, %v1769
        %v1771 = vpop.f32.mrb[0].mxu0
        %v1772 = vadd.f32 %v1683, %v1771
        %1773 = vmatprep.mubr.f32.mxu0 0.0
        %1774 = vmatmul.mubr.f32.gmra.mrb[0].mxu0 %v1603
        %v1775 = vpop.f32.mrb[0].mxu0
        %v1776 = vadd.f32 %v1687, %v1775
        %v1777 = vpop.f32.mrb[0].mxu0
        %v1778 = vadd.f32 %v1689, %v1777
        %1779 = vmatprep.mubr.f32.mxu0 0.0
        %1780 = vmatmul.mubr.f32.gmra.mrb[0].mxu0 %v1606
        %v1781 = vpop.f32.mrb[0].mxu0
        %v1782 = vadd.f32 %v1693, %v1781
        %v1783 = vpop.f32.mrb[0].mxu0
        %v1784 = vadd.f32 %v1695, %v1783
        %1785 = vdwg.mxu0
        %v1786 = vmax.f32 %v1764, 0.0
        %v1787 = vmax.f32 %v1766, 0.0
        %v1788 = vmax.f32 %v1770, 0.0
        %v1789 = vmax.f32 %v1772, 0.0
        %v1790 = vmax.f32 %v1776, 0.0
        %v1791 = vmax.f32 %v1778, 0.0
        %v1792 = vmax.f32 %v1782, 0.0
        %v1793 = vmax.f32 %v1784, 0.0
        %s1794 = scalar_lea.vmem [#allocation3], 192
        %v1795 = vld [vmem:[%s1794] sm:$0xff]
        %v1796 = vld [vmem:[%s1794 + $0x8] sm:$0xff]
        %v1797 = vld [vmem:[%s1794 + $0x10] sm:$0xff]
        %v1798 = vld [vmem:[%s1794 + $0x18] sm:$0xff]
        %v1799 = vld [vmem:[%s1794 + $0x20] sm:$0xff]
        %v1800 = vld [vmem:[%s1794 + $0x28] sm:$0xff]
        %v1801 = vld [vmem:[%s1794 + $0x30] sm:$0xff]
        %v1802 = vld [vmem:[%s1794 + $0x38] sm:$0xff]
        %v1803 = vld [vmem:[%s1794 + $0x40] sm:$0xff]
        %v1804 = vld [vmem:[%s1794 + $0x48] sm:$0xff]
        %v1805 = vld [vmem:[%s1794 + $0x50] sm:$0xff]
        %v1806 = vld [vmem:[%s1794 + $0x58] sm:$0xff]
        %s1807 = scalar_lea.vmem %s5, 64
        %v1808 = vld [vmem:[%s1807] sm:$0xff]
        %v1809 = vld [vmem:[%s1807 + $0x8] sm:$0xff]
        %v1810 = vld [vmem:[%s1807 + $0x10] sm:$0xff]
        %v1811 = vld [vmem:[%s1807 + $0x18] sm:$0xff]
        %1812 = vrot.lane.b32.xlu0 %v1786, 34
        %v1813 = vpop.permute.xlu0 %1812
        %1814 = vrot.lane.b32.xlu0 %v1788, 34
        %v1815 = vpop.permute.xlu0 %1814
        %1816 = vrot.lane.b32.xlu0 %v1790, 34
        %v1817 = vpop.permute.xlu0 %1816
        %1818 = vrot.lane.b32.xlu0 %v1792, 34
        %v1819 = vpop.permute.xlu0 %1818
        %1820 = vrot.lane.b32.xlu0 %v1787, 34
        %v1821 = vpop.permute.xlu0 %1820
        %1822 = vrot.lane.b32.xlu0 %v1789, 34
        %v1823 = vpop.permute.xlu0 %1822
        %1824 = vrot.lane.b32.xlu0 %v1791, 34
        %v1825 = vpop.permute.xlu0 %1824
        %1826 = vrot.lane.b32.xlu0 %v1793, 34
        %v1827 = vpop.permute.xlu0 %1826
        %v1828 = vsel %vm771, %v1813, %v1821
        %v1829 = vsel %vm771, %v1815, %v1823
        %v1830 = vsel %vm771, %v1817, %v1825
        %v1831 = vsel %vm771, %v1819, %v1827
        %v1832 = vsel %vm771, %v1821, %v1813
        %v1833 = vsel %vm771, %v1823, %v1815
        %v1834 = vsel %vm771, %v1825, %v1817
        %v1835 = vsel %vm771, %v1827, %v1819
        %v1836 = vmul.f32 %v1832, %v783
        %v1837 = vmul.f32 %v1828, %v787
        %v1838 = vmul.f32 %v1833, %v783
        %v1839 = vmul.f32 %v1829, %v787
        %v1840 = vmul.f32 %v1834, %v783
        %v1841 = vmul.f32 %v1830, %v787
        %v1842 = vmul.f32 %v1835, %v783
        %v1843 = vmul.f32 %v1831, %v787
        %1844 = vrot.lane.b32.xlu0 %v1786, 32
        %v1845 = vpop.permute.xlu0 %1844
        %1846 = vrot.lane.b32.xlu0 %v1788, 32
        %v1847 = vpop.permute.xlu0 %1846
        %1848 = vrot.lane.b32.xlu0 %v1790, 32
        %v1849 = vpop.permute.xlu0 %1848
        %1850 = vrot.lane.b32.xlu0 %v1792, 32
        %v1851 = vpop.permute.xlu0 %1850
        %1852 = vrot.lane.b32.xlu0 %v1787, 32
        %v1853 = vpop.permute.xlu0 %1852
        %1854 = vrot.lane.b32.xlu0 %v1789, 32
        %v1855 = vpop.permute.xlu0 %1854
        %1856 = vrot.lane.b32.xlu0 %v1791, 32
        %v1857 = vpop.permute.xlu0 %1856
        %1858 = vrot.lane.b32.xlu0 %v1793, 32
        %v1859 = vpop.permute.xlu0 %1858
        %v1860 = vsel %vm812, %v1845, %v1853
        %v1861 = vsel %vm812, %v1847, %v1855
        %v1862 = vsel %vm812, %v1849, %v1857
        %v1863 = vsel %vm812, %v1851, %v1859
        %v1864 = vsel %vm812, %v1853, %v1845
        %v1865 = vsel %vm812, %v1855, %v1847
        %v1866 = vsel %vm812, %v1857, %v1849
        %v1867 = vsel %vm812, %v1859, %v1851
        %v1868 = vmul.f32 %v1864, %v824
        %v1869 = vmul.f32 %v1860, %v828
        %v1870 = vmul.f32 %v1865, %v824
        %v1871 = vmul.f32 %v1861, %v828
        %v1872 = vmul.f32 %v1866, %v824
        %v1873 = vmul.f32 %v1862, %v828
        %v1874 = vmul.f32 %v1867, %v824
        %v1875 = vmul.f32 %v1863, %v828
        %1876 = vrot.lane.b32.xlu0 %v1786, 30
        %v1877 = vpop.permute.xlu0 %1876
        %1878 = vrot.lane.b32.xlu0 %v1788, 30
        %v1879 = vpop.permute.xlu0 %1878
        %1880 = vrot.lane.b32.xlu0 %v1790, 30
        %v1881 = vpop.permute.xlu0 %1880
        %1882 = vrot.lane.b32.xlu0 %v1792, 30
        %v1883 = vpop.permute.xlu0 %1882
        %1884 = vrot.lane.b32.xlu0 %v1787, 30
        %v1885 = vpop.permute.xlu0 %1884
        %1886 = vrot.lane.b32.xlu0 %v1789, 30
        %v1887 = vpop.permute.xlu0 %1886
        %1888 = vrot.lane.b32.xlu0 %v1791, 30
        %v1889 = vpop.permute.xlu0 %1888
        %1890 = vrot.lane.b32.xlu0 %v1793, 30
        %v1891 = vpop.permute.xlu0 %1890
        %v1892 = vsel %vm853, %v1877, %v1885
        %v1893 = vsel %vm853, %v1879, %v1887
        %v1894 = vsel %vm853, %v1881, %v1889
        %v1895 = vsel %vm853, %v1883, %v1891
        %v1896 = vsel %vm853, %v1885, %v1877
        %v1897 = vsel %vm853, %v1887, %v1879
        %v1898 = vsel %vm853, %v1889, %v1881
        %v1899 = vsel %vm853, %v1891, %v1883
        %v1900 = vmul.f32 %v1896, %v865
        %v1901 = vmul.f32 %v1892, %v869
        %v1902 = vmul.f32 %v1897, %v865
        %v1903 = vmul.f32 %v1893, %v869
        %v1904 = vmul.f32 %v1898, %v865
        %v1905 = vmul.f32 %v1894, %v869
        %v1906 = vmul.f32 %v1899, %v865
        %v1907 = vmul.f32 %v1895, %v869
        %1908 = vrot.lane.b32.xlu0 %v1786, 2
        %v1909 = vpop.permute.xlu0 %1908
        %1910 = vrot.lane.b32.xlu0 %v1788, 2
        %v1911 = vpop.permute.xlu0 %1910
        %1912 = vrot.lane.b32.xlu0 %v1790, 2
        %v1913 = vpop.permute.xlu0 %1912
        %1914 = vrot.lane.b32.xlu0 %v1792, 2
        %v1915 = vpop.permute.xlu0 %1914
        %1916 = vrot.lane.b32.xlu0 %v1787, 2
        %v1917 = vpop.permute.xlu0 %1916
        %1918 = vrot.lane.b32.xlu0 %v1789, 2
        %v1919 = vpop.permute.xlu0 %1918
        %1920 = vrot.lane.b32.xlu0 %v1791, 2
        %v1921 = vpop.permute.xlu0 %1920
        %1922 = vrot.lane.b32.xlu0 %v1793, 2
        %v1923 = vpop.permute.xlu0 %1922
        %v1924 = vsel %vm894, %v1909, %v1917
        %v1925 = vsel %vm894, %v1911, %v1919
        %v1926 = vsel %vm894, %v1913, %v1921
        %v1927 = vsel %vm894, %v1915, %v1923
        %v1928 = vsel %vm894, %v1917, %v1909
        %v1929 = vsel %vm894, %v1919, %v1911
        %v1930 = vsel %vm894, %v1921, %v1913
        %v1931 = vsel %vm894, %v1923, %v1915
        %v1932 = vmul.f32 %v1928, %v906
        %v1933 = vmul.f32 %v1924, %v910
        %v1934 = vmul.f32 %v1929, %v906
        %v1935 = vmul.f32 %v1925, %v910
        %v1936 = vmul.f32 %v1930, %v906
        %v1937 = vmul.f32 %v1926, %v910
        %v1938 = vmul.f32 %v1931, %v906
        %v1939 = vmul.f32 %v1927, %v910
        %1940 = vrot.lane.b32.xlu0 %v1786, 126
        %v1941 = vpop.permute.xlu0 %1940
        %1942 = vrot.lane.b32.xlu0 %v1788, 126
        %v1943 = vpop.permute.xlu0 %1942
        %1944 = vrot.lane.b32.xlu0 %v1790, 126
        %v1945 = vpop.permute.xlu0 %1944
        %1946 = vrot.lane.b32.xlu0 %v1792, 126
        %v1947 = vpop.permute.xlu0 %1946
        %1948 = vrot.lane.b32.xlu0 %v1787, 126
        %v1949 = vpop.permute.xlu0 %1948
        %1950 = vrot.lane.b32.xlu0 %v1789, 126
        %v1951 = vpop.permute.xlu0 %1950
        %1952 = vrot.lane.b32.xlu0 %v1791, 126
        %v1953 = vpop.permute.xlu0 %1952
        %1954 = vrot.lane.b32.xlu0 %v1793, 126
        %v1955 = vpop.permute.xlu0 %1954
        %v1956 = vsel %vm935, %v1941, %v1949
        %v1957 = vsel %vm935, %v1943, %v1951
        %v1958 = vsel %vm935, %v1945, %v1953
        %v1959 = vsel %vm935, %v1947, %v1955
        %v1960 = vsel %vm935, %v1949, %v1941
        %v1961 = vsel %vm935, %v1951, %v1943
        %v1962 = vsel %vm935, %v1953, %v1945
        %v1963 = vsel %vm935, %v1955, %v1947
        %v1964 = vmul.f32 %v1956, %v947
        %v1965 = vmul.f32 %v1960, %v951
        %v1966 = vmul.f32 %v1957, %v947
        %v1967 = vmul.f32 %v1961, %v951
        %v1968 = vmul.f32 %v1958, %v947
        %v1969 = vmul.f32 %v1962, %v951
        %v1970 = vmul.f32 %v1959, %v947
        %v1971 = vmul.f32 %v1963, %v951
        %1972 = vrot.lane.b32.xlu0 %v1786, 98
        %v1973 = vpop.permute.xlu0 %1972
        %1974 = vrot.lane.b32.xlu0 %v1788, 98
        %v1975 = vpop.permute.xlu0 %1974
        %1976 = vrot.lane.b32.xlu0 %v1790, 98
        %v1977 = vpop.permute.xlu0 %1976
        %1978 = vrot.lane.b32.xlu0 %v1792, 98
        %v1979 = vpop.permute.xlu0 %1978
        %1980 = vrot.lane.b32.xlu0 %v1787, 98
        %v1981 = vpop.permute.xlu0 %1980
        %1982 = vrot.lane.b32.xlu0 %v1789, 98
        %v1983 = vpop.permute.xlu0 %1982
        %1984 = vrot.lane.b32.xlu0 %v1791, 98
        %v1985 = vpop.permute.xlu0 %1984
        %1986 = vrot.lane.b32.xlu0 %v1793, 98
        %v1987 = vpop.permute.xlu0 %1986
        %v1988 = vsel %vm976, %v1973, %v1981
        %v1989 = vsel %vm976, %v1975, %v1983
        %v1990 = vsel %vm976, %v1977, %v1985
        %v1991 = vsel %vm976, %v1979, %v1987
        %v1992 = vsel %vm976, %v1981, %v1973
        %v1993 = vsel %vm976, %v1983, %v1975
        %v1994 = vsel %vm976, %v1985, %v1977
        %v1995 = vsel %vm976, %v1987, %v1979
        %v1996 = vmul.f32 %v1988, %v988
        %v1997 = vmul.f32 %v1992, %v992
        %v1998 = vmul.f32 %v1989, %v988
        %v1999 = vmul.f32 %v1993, %v992
        %v2000 = vmul.f32 %v1990, %v988
        %v2001 = vmul.f32 %v1994, %v992
        %v2002 = vmul.f32 %v1991, %v988
        %v2003 = vmul.f32 %v1995, %v992
        %2004 = vrot.lane.b32.xlu0 %v1786, 96
        %v2005 = vpop.permute.xlu0 %2004
        %2006 = vrot.lane.b32.xlu0 %v1788, 96
        %v2007 = vpop.permute.xlu0 %2006
        %2008 = vrot.lane.b32.xlu0 %v1790, 96
        %v2009 = vpop.permute.xlu0 %2008
        %2010 = vrot.lane.b32.xlu0 %v1792, 96
        %v2011 = vpop.permute.xlu0 %2010
        %2012 = vrot.lane.b32.xlu0 %v1787, 96
        %v2013 = vpop.permute.xlu0 %2012
        %2014 = vrot.lane.b32.xlu0 %v1789, 96
        %v2015 = vpop.permute.xlu0 %2014
        %2016 = vrot.lane.b32.xlu0 %v1791, 96
        %v2017 = vpop.permute.xlu0 %2016
        %2018 = vrot.lane.b32.xlu0 %v1793, 96
        %v2019 = vpop.permute.xlu0 %2018
        %v2020 = vsel %vm1017, %v2005, %v2013
        %v2021 = vsel %vm1017, %v2007, %v2015
        %v2022 = vsel %vm1017, %v2009, %v2017
        %v2023 = vsel %vm1017, %v2011, %v2019
        %v2024 = vsel %vm1017, %v2013, %v2005
        %v2025 = vsel %vm1017, %v2015, %v2007
        %v2026 = vsel %vm1017, %v2017, %v2009
        %v2027 = vsel %vm1017, %v2019, %v2011
        %v2028 = vmul.f32 %v2020, %v1029
        %v2029 = vmul.f32 %v2024, %v1033
        %v2030 = vmul.f32 %v2021, %v1029
        %v2031 = vmul.f32 %v2025, %v1033
        %v2032 = vmul.f32 %v2022, %v1029
        %v2033 = vmul.f32 %v2026, %v1033
        %v2034 = vmul.f32 %v2023, %v1029
        %v2035 = vmul.f32 %v2027, %v1033
        %2036 = vrot.lane.b32.xlu0 %v1786, 94
        %v2037 = vpop.permute.xlu0 %2036
        %2038 = vrot.lane.b32.xlu0 %v1788, 94
        %v2039 = vpop.permute.xlu0 %2038
        %2040 = vrot.lane.b32.xlu0 %v1790, 94
        %v2041 = vpop.permute.xlu0 %2040
        %2042 = vrot.lane.b32.xlu0 %v1792, 94
        %v2043 = vpop.permute.xlu0 %2042
        %2044 = vrot.lane.b32.xlu0 %v1787, 94
        %v2045 = vpop.permute.xlu0 %2044
        %2046 = vrot.lane.b32.xlu0 %v1789, 94
        %v2047 = vpop.permute.xlu0 %2046
        %2048 = vrot.lane.b32.xlu0 %v1791, 94
        %v2049 = vpop.permute.xlu0 %2048
        %2050 = vrot.lane.b32.xlu0 %v1793, 94
        %v2051 = vpop.permute.xlu0 %2050
        %v2052 = vsel %vm1058, %v2037, %v2045
        %v2053 = vsel %vm1058, %v2039, %v2047
        %v2054 = vsel %vm1058, %v2041, %v2049
        %v2055 = vsel %vm1058, %v2043, %v2051
        %v2056 = vsel %vm1058, %v2045, %v2037
        %v2057 = vsel %vm1058, %v2047, %v2039
        %v2058 = vsel %vm1058, %v2049, %v2041
        %v2059 = vsel %vm1058, %v2051, %v2043
        %v2060 = vmul.f32 %v2052, %v1070
        %v2061 = vmul.f32 %v2056, %v1074
        %v2062 = vmul.f32 %v2053, %v1070
        %v2063 = vmul.f32 %v2057, %v1074
        %v2064 = vmul.f32 %v2054, %v1070
        %v2065 = vmul.f32 %v2058, %v1074
        %v2066 = vmul.f32 %v2055, %v1070
        %v2067 = vmul.f32 %v2059, %v1074
        %2069 = vset.pattern.permute.xlu0 0
        %2070 = vperm.xlu0 %2069, %v1808
        %v2071 = vpop.permute.xlu0 %2070
        %2074 = vset.pattern.permute.xlu0 0
        %2075 = vperm.xlu0 %2074, %v1809
        %v2076 = vpop.permute.xlu0 %2075
        %2079 = vset.pattern.permute.xlu0 0
        %2080 = vperm.xlu0 %2079, %v1810
        %v2081 = vpop.permute.xlu0 %2080
        %2084 = vset.pattern.permute.xlu0 0
        %2085 = vperm.xlu0 %2084, %v1811
        %v2086 = vpop.permute.xlu0 %2085
        %v2089 = vsel %vm1103, %v1797, 0
        %v2092 = vsel %vm1103, %v1800, 0
        %v2095 = vsel %vm1103, %v1803, 0
        %v2098 = vsel %vm1103, %v1806, 0
        %2100 = vmatprep.subr.mxu0 %v1837
        %2101 = vmatpush1.msra.mxu0 %v1836
        %2102 = vmatprep.subr.mxu0 %v1839
        %2103 = vmatpush1.msra.mxu0 %v1838
        %2104 = vmatprep.subr.mxu0 %v1841
        %2105 = vmatpush1.msra.mxu0 %v1840
        %2106 = vmatprep.subr.mxu0 %v1843
        %2107 = vmatpush1.msra.mxu0 %v1842
        %2108 = vmatprep.subr.mxu0 %v1869
        %2109 = vmatpush1.msra.mxu0 %v1868
        %2110 = vmatprep.subr.mxu0 %v1871
        %2111 = vmatpush1.msra.mxu0 %v1870
        %2112 = vmatprep.subr.mxu0 %v1873
        %2113 = vmatpush1.msra.mxu0 %v1872
        %2114 = vmatprep.subr.mxu0 %v1875
        %2115 = vmatpush1.msra.mxu0 %v1874
        %2116 = vmatprep.subr.mxu0 %v1901
        %2117 = vmatpush1.msra.mxu0 %v1900
        %2118 = vmatprep.subr.mxu0 %v1903
        %2119 = vmatpush1.msra.mxu0 %v1902
        %2120 = vmatprep.subr.mxu0 %v1905
        %2121 = vmatpush1.msra.mxu0 %v1904
        %2122 = vmatprep.subr.mxu0 %v1907
        %2123 = vmatpush1.msra.mxu0 %v1906
        %2124 = vmatprep.subr.mxu0 %v1933
        %2125 = vmatpush1.msra.mxu0 %v1932
        %2126 = vmatprep.subr.mxu0 %v1935
        %2127 = vmatpush1.msra.mxu0 %v1934
        %2128 = vmatprep.subr.mxu0 %v1937
        %2129 = vmatpush1.msra.mxu0 %v1936
        %2130 = vmatprep.subr.mxu0 %v1939
        %2131 = vmatpush1.msra.mxu0 %v1938
        %2132 = vmatprep.subr.mxu0 %v1787
        %2133 = vmatpush1.msra.mxu0 %v1786
        %2134 = vmatprep.subr.mxu0 %v1789
        %2135 = vmatpush1.msra.mxu0 %v1788
        %2136 = vmatprep.subr.mxu0 %v1791
        %2137 = vmatpush1.msra.mxu0 %v1790
        %2138 = vmatprep.subr.mxu0 %v1793
        %2139 = vmatpush1.msra.mxu0 %v1792
        %2140 = vmatprep.subr.mxu0 %v1965
        %2141 = vmatpush1.msra.mxu0 %v1964
        %2142 = vmatprep.subr.mxu0 %v1967
        %2143 = vmatpush1.msra.mxu0 %v1966
        %2144 = vmatprep.subr.mxu0 %v1969
        %2145 = vmatpush1.msra.mxu0 %v1968
        %2146 = vmatprep.subr.mxu0 %v1971
        %2147 = vmatpush1.msra.mxu0 %v1970
        %2148 = vmatprep.subr.mxu0 %v1997
        %2149 = vmatpush1.msra.mxu0 %v1996
        %2150 = vmatprep.subr.mxu0 %v1999
        %2151 = vmatpush1.msra.mxu0 %v1998
        %2152 = vmatprep.subr.mxu0 %v2001
        %2153 = vmatpush1.msra.mxu0 %v2000
        %2154 = vmatprep.subr.mxu0 %v2003
        %2155 = vmatpush1.msra.mxu0 %v2002
        %2156 = vmatprep.subr.mxu0 %v2029
        %2157 = vmatpush1.msra.mxu0 %v2028
        %2158 = vmatprep.subr.mxu0 %v2031
        %2159 = vmatpush1.msra.mxu0 %v2030
        %2160 = vmatprep.subr.mxu0 %v2033
        %2161 = vmatpush1.msra.mxu0 %v2032
        %2162 = vmatprep.subr.mxu0 %v2035
        %2163 = vmatpush1.msra.mxu0 %v2034
        %2164 = vmatprep.mubr.f32.mxu0 %v1796
        %2165 = vmatmul.mubr.f32.gmra.mrb[0].mxu0 %v1795
        %v2166 = vpop.f32.mrb[0].mxu0
        %v2167 = vadd.f32 %v2071, %v2166
        %v2168 = vpop.f32.mrb[0].mxu0
        %v2169 = vadd.f32 %v2071, %v2168
        %2170 = vmatprep.mubr.f32.mxu0 %v1799
        %2171 = vmatmul.mubr.f32.gmra.mrb[0].mxu0 %v1798
        %v2172 = vpop.f32.mrb[0].mxu0
        %v2173 = vadd.f32 %v2076, %v2172
        %v2174 = vpop.f32.mrb[0].mxu0
        %v2175 = vadd.f32 %v2076, %v2174
        %2176 = vmatprep.mubr.f32.mxu0 %v1802
        %2177 = vmatmul.mubr.f32.gmra.mrb[0].mxu0 %v1801
        %v2178 = vpop.f32.mrb[0].mxu0
        %v2179 = vadd.f32 %v2081, %v2178
        %v2180 = vpop.f32.mrb[0].mxu0
        %v2181 = vadd.f32 %v2081, %v2180
        %2182 = vmatprep.mubr.f32.mxu0 %v1805
        %2183 = vmatmul.mubr.f32.gmra.mrb[0].mxu0 %v1804
        %v2184 = vpop.f32.mrb[0].mxu0
        %v2185 = vadd.f32 %v2086, %v2184
        %v2186 = vpop.f32.mrb[0].mxu0
        %v2187 = vadd.f32 %v2086, %v2186
        %2188 = vdwg.mxu0
        %2189 = vmatprep.subr.mxu0 %v2061
        %2190 = vmatpush1.msra.mxu0 %v2060
        %2191 = vmatprep.subr.mxu0 %v2063
        %2192 = vmatpush1.msra.mxu0 %v2062
        %2193 = vmatprep.subr.mxu0 %v2065
        %2194 = vmatpush1.msra.mxu0 %v2064
        %2195 = vmatprep.subr.mxu0 %v2067
        %2196 = vmatpush1.msra.mxu0 %v2066
        %2197 = vmatprep.subr.mxu0 0.0
        %2198 = vmatpush1.msra.mxu0 0.0
        %2199 = vmatprep.subr.mxu0 0.0
        %2200 = vmatpush1.msra.mxu0 0.0
        %2201 = vmatprep.subr.mxu0 0.0
        %2202 = vmatpush1.msra.mxu0 0.0
        %2203 = vmatprep.subr.mxu0 0.0
        %2204 = vmatpush1.msra.mxu0 0.0
        %2205 = vmatprep.subr.mxu0 0.0
        %2206 = vmatpush1.msra.mxu0 0.0
        %2207 = vmatprep.subr.mxu0 0.0
        %2208 = vmatpush1.msra.mxu0 0.0
        %2209 = vmatprep.subr.mxu0 0.0
        %2210 = vmatpush1.msra.mxu0 0.0
        %2211 = vmatprep.subr.mxu0 0.0
        %2212 = vmatpush1.msra.mxu0 0.0
        %2213 = vmatprep.subr.mxu0 0.0
        %2214 = vmatpush1.msra.mxu0 0.0
        %2215 = vmatprep.subr.mxu0 0.0
        %2216 = vmatpush1.msra.mxu0 0.0
        %2217 = vmatprep.subr.mxu0 0.0
        %2218 = vmatpush1.msra.mxu0 0.0
        %2219 = vmatprep.subr.mxu0 0.0
        %2220 = vmatpush1.msra.mxu0 0.0
        %2221 = vmatprep.subr.mxu0 0.0
        %2222 = vmatpush1.msra.mxu0 0.0
        %2223 = vmatprep.subr.mxu0 0.0
        %2224 = vmatpush1.msra.mxu0 0.0
        %2225 = vmatprep.subr.mxu0 0.0
        %2226 = vmatpush1.msra.mxu0 0.0
        %2227 = vmatprep.subr.mxu0 0.0
        %2228 = vmatpush1.msra.mxu0 0.0
        %2229 = vmatprep.subr.mxu0 0.0
        %2230 = vmatpush1.msra.mxu0 0.0
        %2231 = vmatprep.subr.mxu0 0.0
        %2232 = vmatpush1.msra.mxu0 0.0
        %2233 = vmatprep.subr.mxu0 0.0
        %2234 = vmatpush1.msra.mxu0 0.0
        %2235 = vmatprep.subr.mxu0 0.0
        %2236 = vmatpush1.msra.mxu0 0.0
        %2237 = vmatprep.subr.mxu0 0.0
        %2238 = vmatpush1.msra.mxu0 0.0
        %2239 = vmatprep.subr.mxu0 0.0
        %2240 = vmatpush1.msra.mxu0 0.0
        %2241 = vmatprep.subr.mxu0 0.0
        %2242 = vmatpush1.msra.mxu0 0.0
        %2243 = vmatprep.subr.mxu0 0.0
        %2244 = vmatpush1.msra.mxu0 0.0
        %2245 = vmatprep.subr.mxu0 0.0
        %2246 = vmatpush1.msra.mxu0 0.0
        %2247 = vmatprep.subr.mxu0 0.0
        %2248 = vmatpush1.msra.mxu0 0.0
        %2249 = vmatprep.subr.mxu0 0.0
        %2250 = vmatpush1.msra.mxu0 0.0
        %2251 = vmatprep.subr.mxu0 0.0
        %2252 = vmatpush1.msra.mxu0 0.0
        %2253 = vmatprep.mubr.f32.mxu0 0.0
        %2254 = vmatmul.mubr.f32.gmra.mrb[0].mxu0 %v2089
        %v2255 = vpop.f32.mrb[0].mxu0
        %v2256 = vadd.f32 %v2167, %v2255
        %v2257 = vpop.f32.mrb[0].mxu0
        %v2258 = vadd.f32 %v2169, %v2257
        %2259 = vmatprep.mubr.f32.mxu0 0.0
        %2260 = vmatmul.mubr.f32.gmra.mrb[0].mxu0 %v2092
        %v2261 = vpop.f32.mrb[0].mxu0
        %v2262 = vadd.f32 %v2173, %v2261
        %v2263 = vpop.f32.mrb[0].mxu0
        %v2264 = vadd.f32 %v2175, %v2263
        %2265 = vmatprep.mubr.f32.mxu0 0.0
        %2266 = vmatmul.mubr.f32.gmra.mrb[0].mxu0 %v2095
        %v2267 = vpop.f32.mrb[0].mxu0
        %v2268 = vadd.f32 %v2179, %v2267
        %v2269 = vpop.f32.mrb[0].mxu0
        %v2270 = vadd.f32 %v2181, %v2269
        %2271 = vmatprep.mubr.f32.mxu0 0.0
        %2272 = vmatmul.mubr.f32.gmra.mrb[0].mxu0 %v2098
        %v2273 = vpop.f32.mrb[0].mxu0
        %v2274 = vadd.f32 %v2185, %v2273
        %v2275 = vpop.f32.mrb[0].mxu0
        %v2276 = vadd.f32 %v2187, %v2275
        %2277 = vdwg.mxu0
        %v2278 = vmax.f32 %v2256, 0.0
        %v2279 = vmax.f32 %v2258, 0.0
        %v2280 = vmax.f32 %v2262, 0.0
        %v2281 = vmax.f32 %v2264, 0.0
        %v2282 = vmax.f32 %v2268, 0.0
        %v2283 = vmax.f32 %v2270, 0.0
        %v2284 = vmax.f32 %v2274, 0.0
        %v2285 = vmax.f32 %v2276, 0.0
        %s2286 = scalar_lea.vmem [#allocation3], 288
        %v2287 = vld [vmem:[%s2286] sm:$0xff]
        %v2288 = vld [vmem:[%s2286 + $0x8] sm:$0xff]
        %v2289 = vld [vmem:[%s2286 + $0x10] sm:$0xff]
        %v2290 = vld [vmem:[%s2286 + $0x18] sm:$0xff]
        %v2291 = vld [vmem:[%s2286 + $0x20] sm:$0xff]
        %v2292 = vld [vmem:[%s2286 + $0x28] sm:$0xff]
        %v2293 = vld [vmem:[%s2286 + $0x30] sm:$0xff]
        %v2294 = vld [vmem:[%s2286 + $0x38] sm:$0xff]
        %v2295 = vld [vmem:[%s2286 + $0x40] sm:$0xff]
        %v2296 = vld [vmem:[%s2286 + $0x48] sm:$0xff]
        %v2297 = vld [vmem:[%s2286 + $0x50] sm:$0xff]
        %v2298 = vld [vmem:[%s2286 + $0x58] sm:$0xff]
        %s2299 = scalar_lea.vmem %s5, 96
        %v2300 = vld [vmem:[%s2299] sm:$0xff]
        %v2301 = vld [vmem:[%s2299 + $0x8] sm:$0xff]
        %v2302 = vld [vmem:[%s2299 + $0x10] sm:$0xff]
        %v2303 = vld [vmem:[%s2299 + $0x18] sm:$0xff]
        %2304 = vrot.lane.b32.xlu0 %v2278, 34
        %v2305 = vpop.permute.xlu0 %2304
        %2306 = vrot.lane.b32.xlu0 %v2280, 34
        %v2307 = vpop.permute.xlu0 %2306
        %2308 = vrot.lane.b32.xlu0 %v2282, 34
        %v2309 = vpop.permute.xlu0 %2308
        %2310 = vrot.lane.b32.xlu0 %v2284, 34
        %v2311 = vpop.permute.xlu0 %2310
        %2312 = vrot.lane.b32.xlu0 %v2279, 34
        %v2313 = vpop.permute.xlu0 %2312
        %2314 = vrot.lane.b32.xlu0 %v2281, 34
        %v2315 = vpop.permute.xlu0 %2314
        %2316 = vrot.lane.b32.xlu0 %v2283, 34
        %v2317 = vpop.permute.xlu0 %2316
        %2318 = vrot.lane.b32.xlu0 %v2285, 34
        %v2319 = vpop.permute.xlu0 %2318
        %v2320 = vsel %vm771, %v2305, %v2313
        %v2321 = vsel %vm771, %v2307, %v2315
        %v2322 = vsel %vm771, %v2309, %v2317
        %v2323 = vsel %vm771, %v2311, %v2319
        %v2324 = vsel %vm771, %v2313, %v2305
        %v2325 = vsel %vm771, %v2315, %v2307
        %v2326 = vsel %vm771, %v2317, %v2309
        %v2327 = vsel %vm771, %v2319, %v2311
        %v2328 = vmul.f32 %v2324, %v783
        %v2329 = vmul.f32 %v2320, %v787
        %v2330 = vmul.f32 %v2325, %v783
        %v2331 = vmul.f32 %v2321, %v787
        %v2332 = vmul.f32 %v2326, %v783
        %v2333 = vmul.f32 %v2322, %v787
        %v2334 = vmul.f32 %v2327, %v783
        %v2335 = vmul.f32 %v2323, %v787
        %2336 = vrot.lane.b32.xlu0 %v2278, 32
        %v2337 = vpop.permute.xlu0 %2336
        %2338 = vrot.lane.b32.xlu0 %v2280, 32
        %v2339 = vpop.permute.xlu0 %2338
        %2340 = vrot.lane.b32.xlu0 %v2282, 32
        %v2341 = vpop.permute.xlu0 %2340
        %2342 = vrot.lane.b32.xlu0 %v2284, 32
        %v2343 = vpop.permute.xlu0 %2342
        %2344 = vrot.lane.b32.xlu0 %v2279, 32
        %v2345 = vpop.permute.xlu0 %2344
        %2346 = vrot.lane.b32.xlu0 %v2281, 32
        %v2347 = vpop.permute.xlu0 %2346
        %2348 = vrot.lane.b32.xlu0 %v2283, 32
        %v2349 = vpop.permute.xlu0 %2348
        %2350 = vrot.lane.b32.xlu0 %v2285, 32
        %v2351 = vpop.permute.xlu0 %2350
        %v2352 = vsel %vm812, %v2337, %v2345
        %v2353 = vsel %vm812, %v2339, %v2347
        %v2354 = vsel %vm812, %v2341, %v2349
        %v2355 = vsel %vm812, %v2343, %v2351
        %v2356 = vsel %vm812, %v2345, %v2337
        %v2357 = vsel %vm812, %v2347, %v2339
        %v2358 = vsel %vm812, %v2349, %v2341
        %v2359 = vsel %vm812, %v2351, %v2343
        %v2360 = vmul.f32 %v2356, %v824
        %v2361 = vmul.f32 %v2352, %v828
        %v2362 = vmul.f32 %v2357, %v824
        %v2363 = vmul.f32 %v2353, %v828
        %v2364 = vmul.f32 %v2358, %v824
        %v2365 = vmul.f32 %v2354, %v828
        %v2366 = vmul.f32 %v2359, %v824
        %v2367 = vmul.f32 %v2355, %v828
        %2368 = vrot.lane.b32.xlu0 %v2278, 30
        %v2369 = vpop.permute.xlu0 %2368
        %2370 = vrot.lane.b32.xlu0 %v2280, 30
        %v2371 = vpop.permute.xlu0 %2370
        %2372 = vrot.lane.b32.xlu0 %v2282, 30
        %v2373 = vpop.permute.xlu0 %2372
        %2374 = vrot.lane.b32.xlu0 %v2284, 30
        %v2375 = vpop.permute.xlu0 %2374
        %2376 = vrot.lane.b32.xlu0 %v2279, 30
        %v2377 = vpop.permute.xlu0 %2376
        %2378 = vrot.lane.b32.xlu0 %v2281, 30
        %v2379 = vpop.permute.xlu0 %2378
        %2380 = vrot.lane.b32.xlu0 %v2283, 30
        %v2381 = vpop.permute.xlu0 %2380
        %2382 = vrot.lane.b32.xlu0 %v2285, 30
        %v2383 = vpop.permute.xlu0 %2382
        %v2384 = vsel %vm853, %v2369, %v2377
        %v2385 = vsel %vm853, %v2371, %v2379
        %v2386 = vsel %vm853, %v2373, %v2381
        %v2387 = vsel %vm853, %v2375, %v2383
        %v2388 = vsel %vm853, %v2377, %v2369
        %v2389 = vsel %vm853, %v2379, %v2371
        %v2390 = vsel %vm853, %v2381, %v2373
        %v2391 = vsel %vm853, %v2383, %v2375
        %v2392 = vmul.f32 %v2388, %v865
        %v2393 = vmul.f32 %v2384, %v869
        %v2394 = vmul.f32 %v2389, %v865
        %v2395 = vmul.f32 %v2385, %v869
        %v2396 = vmul.f32 %v2390, %v865
        %v2397 = vmul.f32 %v2386, %v869
        %v2398 = vmul.f32 %v2391, %v865
        %v2399 = vmul.f32 %v2387, %v869
        %2400 = vrot.lane.b32.xlu0 %v2278, 2
        %v2401 = vpop.permute.xlu0 %2400
        %2402 = vrot.lane.b32.xlu0 %v2280, 2
        %v2403 = vpop.permute.xlu0 %2402
        %2404 = vrot.lane.b32.xlu0 %v2282, 2
        %v2405 = vpop.permute.xlu0 %2404
        %2406 = vrot.lane.b32.xlu0 %v2284, 2
        %v2407 = vpop.permute.xlu0 %2406
        %2408 = vrot.lane.b32.xlu0 %v2279, 2
        %v2409 = vpop.permute.xlu0 %2408
        %2410 = vrot.lane.b32.xlu0 %v2281, 2
        %v2411 = vpop.permute.xlu0 %2410
        %2412 = vrot.lane.b32.xlu0 %v2283, 2
        %v2413 = vpop.permute.xlu0 %2412
        %2414 = vrot.lane.b32.xlu0 %v2285, 2
        %v2415 = vpop.permute.xlu0 %2414
        %v2416 = vsel %vm894, %v2401, %v2409
        %v2417 = vsel %vm894, %v2403, %v2411
        %v2418 = vsel %vm894, %v2405, %v2413
        %v2419 = vsel %vm894, %v2407, %v2415
        %v2420 = vsel %vm894, %v2409, %v2401
        %v2421 = vsel %vm894, %v2411, %v2403
        %v2422 = vsel %vm894, %v2413, %v2405
        %v2423 = vsel %vm894, %v2415, %v2407
        %v2424 = vmul.f32 %v2420, %v906
        %v2425 = vmul.f32 %v2416, %v910
        %v2426 = vmul.f32 %v2421, %v906
        %v2427 = vmul.f32 %v2417, %v910
        %v2428 = vmul.f32 %v2422, %v906
        %v2429 = vmul.f32 %v2418, %v910
        %v2430 = vmul.f32 %v2423, %v906
        %v2431 = vmul.f32 %v2419, %v910
        %2432 = vrot.lane.b32.xlu0 %v2278, 126
        %v2433 = vpop.permute.xlu0 %2432
        %2434 = vrot.lane.b32.xlu0 %v2280, 126
        %v2435 = vpop.permute.xlu0 %2434
        %2436 = vrot.lane.b32.xlu0 %v2282, 126
        %v2437 = vpop.permute.xlu0 %2436
        %2438 = vrot.lane.b32.xlu0 %v2284, 126
        %v2439 = vpop.permute.xlu0 %2438
        %2440 = vrot.lane.b32.xlu0 %v2279, 126
        %v2441 = vpop.permute.xlu0 %2440
        %2442 = vrot.lane.b32.xlu0 %v2281, 126
        %v2443 = vpop.permute.xlu0 %2442
        %2444 = vrot.lane.b32.xlu0 %v2283, 126
        %v2445 = vpop.permute.xlu0 %2444
        %2446 = vrot.lane.b32.xlu0 %v2285, 126
        %v2447 = vpop.permute.xlu0 %2446
        %v2448 = vsel %vm935, %v2433, %v2441
        %v2449 = vsel %vm935, %v2435, %v2443
        %v2450 = vsel %vm935, %v2437, %v2445
        %v2451 = vsel %vm935, %v2439, %v2447
        %v2452 = vsel %vm935, %v2441, %v2433
        %v2453 = vsel %vm935, %v2443, %v2435
        %v2454 = vsel %vm935, %v2445, %v2437
        %v2455 = vsel %vm935, %v2447, %v2439
        %v2456 = vmul.f32 %v2448, %v947
        %v2457 = vmul.f32 %v2452, %v951
        %v2458 = vmul.f32 %v2449, %v947
        %v2459 = vmul.f32 %v2453, %v951
        %v2460 = vmul.f32 %v2450, %v947
        %v2461 = vmul.f32 %v2454, %v951
        %v2462 = vmul.f32 %v2451, %v947
        %v2463 = vmul.f32 %v2455, %v951
        %2464 = vrot.lane.b32.xlu0 %v2278, 98
        %v2465 = vpop.permute.xlu0 %2464
        %2466 = vrot.lane.b32.xlu0 %v2280, 98
        %v2467 = vpop.permute.xlu0 %2466
        %2468 = vrot.lane.b32.xlu0 %v2282, 98
        %v2469 = vpop.permute.xlu0 %2468
        %2470 = vrot.lane.b32.xlu0 %v2284, 98
        %v2471 = vpop.permute.xlu0 %2470
        %2472 = vrot.lane.b32.xlu0 %v2279, 98
        %v2473 = vpop.permute.xlu0 %2472
        %2474 = vrot.lane.b32.xlu0 %v2281, 98
        %v2475 = vpop.permute.xlu0 %2474
        %2476 = vrot.lane.b32.xlu0 %v2283, 98
        %v2477 = vpop.permute.xlu0 %2476
        %2478 = vrot.lane.b32.xlu0 %v2285, 98
        %v2479 = vpop.permute.xlu0 %2478
        %v2480 = vsel %vm976, %v2465, %v2473
        %v2481 = vsel %vm976, %v2467, %v2475
        %v2482 = vsel %vm976, %v2469, %v2477
        %v2483 = vsel %vm976, %v2471, %v2479
        %v2484 = vsel %vm976, %v2473, %v2465
        %v2485 = vsel %vm976, %v2475, %v2467
        %v2486 = vsel %vm976, %v2477, %v2469
        %v2487 = vsel %vm976, %v2479, %v2471
        %v2488 = vmul.f32 %v2480, %v988
        %v2489 = vmul.f32 %v2484, %v992
        %v2490 = vmul.f32 %v2481, %v988
        %v2491 = vmul.f32 %v2485, %v992
        %v2492 = vmul.f32 %v2482, %v988
        %v2493 = vmul.f32 %v2486, %v992
        %v2494 = vmul.f32 %v2483, %v988
        %v2495 = vmul.f32 %v2487, %v992
        %2496 = vrot.lane.b32.xlu0 %v2278, 96
        %v2497 = vpop.permute.xlu0 %2496
        %2498 = vrot.lane.b32.xlu0 %v2280, 96
        %v2499 = vpop.permute.xlu0 %2498
        %2500 = vrot.lane.b32.xlu0 %v2282, 96
        %v2501 = vpop.permute.xlu0 %2500
        %2502 = vrot.lane.b32.xlu0 %v2284, 96
        %v2503 = vpop.permute.xlu0 %2502
        %2504 = vrot.lane.b32.xlu0 %v2279, 96
        %v2505 = vpop.permute.xlu0 %2504
        %2506 = vrot.lane.b32.xlu0 %v2281, 96
        %v2507 = vpop.permute.xlu0 %2506
        %2508 = vrot.lane.b32.xlu0 %v2283, 96
        %v2509 = vpop.permute.xlu0 %2508
        %2510 = vrot.lane.b32.xlu0 %v2285, 96
        %v2511 = vpop.permute.xlu0 %2510
        %v2512 = vsel %vm1017, %v2497, %v2505
        %v2513 = vsel %vm1017, %v2499, %v2507
        %v2514 = vsel %vm1017, %v2501, %v2509
        %v2515 = vsel %vm1017, %v2503, %v2511
        %v2516 = vsel %vm1017, %v2505, %v2497
        %v2517 = vsel %vm1017, %v2507, %v2499
        %v2518 = vsel %vm1017, %v2509, %v2501
        %v2519 = vsel %vm1017, %v2511, %v2503
        %v2520 = vmul.f32 %v2512, %v1029
        %v2521 = vmul.f32 %v2516, %v1033
        %v2522 = vmul.f32 %v2513, %v1029
        %v2523 = vmul.f32 %v2517, %v1033
        %v2524 = vmul.f32 %v2514, %v1029
        %v2525 = vmul.f32 %v2518, %v1033
        %v2526 = vmul.f32 %v2515, %v1029
        %v2527 = vmul.f32 %v2519, %v1033
        %2528 = vrot.lane.b32.xlu0 %v2278, 94
        %v2529 = vpop.permute.xlu0 %2528
        %2530 = vrot.lane.b32.xlu0 %v2280, 94
        %v2531 = vpop.permute.xlu0 %2530
        %2532 = vrot.lane.b32.xlu0 %v2282, 94
        %v2533 = vpop.permute.xlu0 %2532
        %2534 = vrot.lane.b32.xlu0 %v2284, 94
        %v2535 = vpop.permute.xlu0 %2534
        %2536 = vrot.lane.b32.xlu0 %v2279, 94
        %v2537 = vpop.permute.xlu0 %2536
        %2538 = vrot.lane.b32.xlu0 %v2281, 94
        %v2539 = vpop.permute.xlu0 %2538
        %2540 = vrot.lane.b32.xlu0 %v2283, 94
        %v2541 = vpop.permute.xlu0 %2540
        %2542 = vrot.lane.b32.xlu0 %v2285, 94
        %v2543 = vpop.permute.xlu0 %2542
        %v2544 = vsel %vm1058, %v2529, %v2537
        %v2545 = vsel %vm1058, %v2531, %v2539
        %v2546 = vsel %vm1058, %v2533, %v2541
        %v2547 = vsel %vm1058, %v2535, %v2543
        %v2548 = vsel %vm1058, %v2537, %v2529
        %v2549 = vsel %vm1058, %v2539, %v2531
        %v2550 = vsel %vm1058, %v2541, %v2533
        %v2551 = vsel %vm1058, %v2543, %v2535
        %v2552 = vmul.f32 %v2544, %v1070
        %v2553 = vmul.f32 %v2548, %v1074
        %v2554 = vmul.f32 %v2545, %v1070
        %v2555 = vmul.f32 %v2549, %v1074
        %v2556 = vmul.f32 %v2546, %v1070
        %v2557 = vmul.f32 %v2550, %v1074
        %v2558 = vmul.f32 %v2547, %v1070
        %v2559 = vmul.f32 %v2551, %v1074
        %2561 = vset.pattern.permute.xlu0 0
        %2562 = vperm.xlu0 %2561, %v2300
        %v2563 = vpop.permute.xlu0 %2562
        %2566 = vset.pattern.permute.xlu0 0
        %2567 = vperm.xlu0 %2566, %v2301
        %v2568 = vpop.permute.xlu0 %2567
        %2571 = vset.pattern.permute.xlu0 0
        %2572 = vperm.xlu0 %2571, %v2302
        %v2573 = vpop.permute.xlu0 %2572
        %2576 = vset.pattern.permute.xlu0 0
        %2577 = vperm.xlu0 %2576, %v2303
        %v2578 = vpop.permute.xlu0 %2577
        %v2581 = vsel %vm1103, %v2289, 0
        %v2584 = vsel %vm1103, %v2292, 0
        %v2587 = vsel %vm1103, %v2295, 0
        %v2590 = vsel %vm1103, %v2298, 0
        %2592 = vmatprep.subr.mxu0 %v2329
        %2593 = vmatpush1.msra.mxu0 %v2328
        %2594 = vmatprep.subr.mxu0 %v2331
        %2595 = vmatpush1.msra.mxu0 %v2330
        %2596 = vmatprep.subr.mxu0 %v2333
        %2597 = vmatpush1.msra.mxu0 %v2332
        %2598 = vmatprep.subr.mxu0 %v2335
        %2599 = vmatpush1.msra.mxu0 %v2334
        %2600 = vmatprep.subr.mxu0 %v2361
        %2601 = vmatpush1.msra.mxu0 %v2360
        %2602 = vmatprep.subr.mxu0 %v2363
        %2603 = vmatpush1.msra.mxu0 %v2362
        %2604 = vmatprep.subr.mxu0 %v2365
        %2605 = vmatpush1.msra.mxu0 %v2364
        %2606 = vmatprep.subr.mxu0 %v2367
        %2607 = vmatpush1.msra.mxu0 %v2366
        %2608 = vmatprep.subr.mxu0 %v2393
        %2609 = vmatpush1.msra.mxu0 %v2392
        %2610 = vmatprep.subr.mxu0 %v2395
        %2611 = vmatpush1.msra.mxu0 %v2394
        %2612 = vmatprep.subr.mxu0 %v2397
        %2613 = vmatpush1.msra.mxu0 %v2396
        %2614 = vmatprep.subr.mxu0 %v2399
        %2615 = vmatpush1.msra.mxu0 %v2398
        %2616 = vmatprep.subr.mxu0 %v2425
        %2617 = vmatpush1.msra.mxu0 %v2424
        %2618 = vmatprep.subr.mxu0 %v2427
        %2619 = vmatpush1.msra.mxu0 %v2426
        %2620 = vmatprep.subr.mxu0 %v2429
        %2621 = vmatpush1.msra.mxu0 %v2428
        %2622 = vmatprep.subr.mxu0 %v2431
        %2623 = vmatpush1.msra.mxu0 %v2430
        %2624 = vmatprep.subr.mxu0 %v2279
        %2625 = vmatpush1.msra.mxu0 %v2278
        %2626 = vmatprep.subr.mxu0 %v2281
        %2627 = vmatpush1.msra.mxu0 %v2280
        %2628 = vmatprep.subr.mxu0 %v2283
        %2629 = vmatpush1.msra.mxu0 %v2282
        %2630 = vmatprep.subr.mxu0 %v2285
        %2631 = vmatpush1.msra.mxu0 %v2284
        %2632 = vmatprep.subr.mxu0 %v2457
        %2633 = vmatpush1.msra.mxu0 %v2456
        %2634 = vmatprep.subr.mxu0 %v2459
        %2635 = vmatpush1.msra.mxu0 %v2458
        %2636 = vmatprep.subr.mxu0 %v2461
        %2637 = vmatpush1.msra.mxu0 %v2460
        %2638 = vmatprep.subr.mxu0 %v2463
        %2639 = vmatpush1.msra.mxu0 %v2462
        %2640 = vmatprep.subr.mxu0 %v2489
        %2641 = vmatpush1.msra.mxu0 %v2488
        %2642 = vmatprep.subr.mxu0 %v2491
        %2643 = vmatpush1.msra.mxu0 %v2490
        %2644 = vmatprep.subr.mxu0 %v2493
        %2645 = vmatpush1.msra.mxu0 %v2492
        %2646 = vmatprep.subr.mxu0 %v2495
        %2647 = vmatpush1.msra.mxu0 %v2494
        %2648 = vmatprep.subr.mxu0 %v2521
        %2649 = vmatpush1.msra.mxu0 %v2520
        %2650 = vmatprep.subr.mxu0 %v2523
        %2651 = vmatpush1.msra.mxu0 %v2522
        %2652 = vmatprep.subr.mxu0 %v2525
        %2653 = vmatpush1.msra.mxu0 %v2524
        %2654 = vmatprep.subr.mxu0 %v2527
        %2655 = vmatpush1.msra.mxu0 %v2526
        %2656 = vmatprep.mubr.f32.mxu0 %v2288
        %2657 = vmatmul.mubr.f32.gmra.mrb[0].mxu0 %v2287
        %v2658 = vpop.f32.mrb[0].mxu0
        %v2659 = vadd.f32 %v2563, %v2658
        %v2660 = vpop.f32.mrb[0].mxu0
        %v2661 = vadd.f32 %v2563, %v2660
        %2662 = vmatprep.mubr.f32.mxu0 %v2291
        %2663 = vmatmul.mubr.f32.gmra.mrb[0].mxu0 %v2290
        %v2664 = vpop.f32.mrb[0].mxu0
        %v2665 = vadd.f32 %v2568, %v2664
        %v2666 = vpop.f32.mrb[0].mxu0
        %v2667 = vadd.f32 %v2568, %v2666
        %2668 = vmatprep.mubr.f32.mxu0 %v2294
        %2669 = vmatmul.mubr.f32.gmra.mrb[0].mxu0 %v2293
        %v2670 = vpop.f32.mrb[0].mxu0
        %v2671 = vadd.f32 %v2573, %v2670
        %v2672 = vpop.f32.mrb[0].mxu0
        %v2673 = vadd.f32 %v2573, %v2672
        %2674 = vmatprep.mubr.f32.mxu0 %v2297
        %2675 = vmatmul.mubr.f32.gmra.mrb[0].mxu0 %v2296
        %v2676 = vpop.f32.mrb[0].mxu0
        %v2677 = vadd.f32 %v2578, %v2676
        %v2678 = vpop.f32.mrb[0].mxu0
        %v2679 = vadd.f32 %v2578, %v2678
        %2680 = vdwg.mxu0
        %2681 = vmatprep.subr.mxu0 %v2553
        %2682 = vmatpush1.msra.mxu0 %v2552
        %2683 = vmatprep.subr.mxu0 %v2555
        %2684 = vmatpush1.msra.mxu0 %v2554
        %2685 = vmatprep.subr.mxu0 %v2557
        %2686 = vmatpush1.msra.mxu0 %v2556
        %2687 = vmatprep.subr.mxu0 %v2559
        %2688 = vmatpush1.msra.mxu0 %v2558
        %2689 = vmatprep.subr.mxu0 0.0
        %2690 = vmatpush1.msra.mxu0 0.0
        %2691 = vmatprep.subr.mxu0 0.0
        %2692 = vmatpush1.msra.mxu0 0.0
        %2693 = vmatprep.subr.mxu0 0.0
        %2694 = vmatpush1.msra.mxu0 0.0
        %2695 = vmatprep.subr.mxu0 0.0
        %2696 = vmatpush1.msra.mxu0 0.0
        %2697 = vmatprep.subr.mxu0 0.0
        %2698 = vmatpush1.msra.mxu0 0.0
        %2699 = vmatprep.subr.mxu0 0.0
        %2700 = vmatpush1.msra.mxu0 0.0
        %2701 = vmatprep.subr.mxu0 0.0
        %2702 = vmatpush1.msra.mxu0 0.0
        %2703 = vmatprep.subr.mxu0 0.0
        %2704 = vmatpush1.msra.mxu0 0.0
        %2705 = vmatprep.subr.mxu0 0.0
        %2706 = vmatpush1.msra.mxu0 0.0
        %2707 = vmatprep.subr.mxu0 0.0
        %2708 = vmatpush1.msra.mxu0 0.0
        %2709 = vmatprep.subr.mxu0 0.0
        %2710 = vmatpush1.msra.mxu0 0.0
        %2711 = vmatprep.subr.mxu0 0.0
        %2712 = vmatpush1.msra.mxu0 0.0
        %2713 = vmatprep.subr.mxu0 0.0
        %2714 = vmatpush1.msra.mxu0 0.0
        %2715 = vmatprep.subr.mxu0 0.0
        %2716 = vmatpush1.msra.mxu0 0.0
        %2717 = vmatprep.subr.mxu0 0.0
        %2718 = vmatpush1.msra.mxu0 0.0
        %2719 = vmatprep.subr.mxu0 0.0
        %2720 = vmatpush1.msra.mxu0 0.0
        %2721 = vmatprep.subr.mxu0 0.0
        %2722 = vmatpush1.msra.mxu0 0.0
        %2723 = vmatprep.subr.mxu0 0.0
        %2724 = vmatpush1.msra.mxu0 0.0
        %2725 = vmatprep.subr.mxu0 0.0
        %2726 = vmatpush1.msra.mxu0 0.0
        %2727 = vmatprep.subr.mxu0 0.0
        %2728 = vmatpush1.msra.mxu0 0.0
        %2729 = vmatprep.subr.mxu0 0.0
        %2730 = vmatpush1.msra.mxu0 0.0
        %2731 = vmatprep.subr.mxu0 0.0
        %2732 = vmatpush1.msra.mxu0 0.0
        %2733 = vmatprep.subr.mxu0 0.0
        %2734 = vmatpush1.msra.mxu0 0.0
        %2735 = vmatprep.subr.mxu0 0.0
        %2736 = vmatpush1.msra.mxu0 0.0
        %2737 = vmatprep.subr.mxu0 0.0
        %2738 = vmatpush1.msra.mxu0 0.0
        %2739 = vmatprep.subr.mxu0 0.0
        %2740 = vmatpush1.msra.mxu0 0.0
        %2741 = vmatprep.subr.mxu0 0.0
        %2742 = vmatpush1.msra.mxu0 0.0
        %2743 = vmatprep.subr.mxu0 0.0
        %2744 = vmatpush1.msra.mxu0 0.0
        %2745 = vmatprep.mubr.f32.mxu0 0.0
        %2746 = vmatmul.mubr.f32.gmra.mrb[0].mxu0 %v2581
        %v2747 = vpop.f32.mrb[0].mxu0
        %v2748 = vadd.f32 %v2659, %v2747
        %v2749 = vpop.f32.mrb[0].mxu0
        %v2750 = vadd.f32 %v2661, %v2749
        %2751 = vmatprep.mubr.f32.mxu0 0.0
        %2752 = vmatmul.mubr.f32.gmra.mrb[0].mxu0 %v2584
        %v2753 = vpop.f32.mrb[0].mxu0
        %v2754 = vadd.f32 %v2665, %v2753
        %v2755 = vpop.f32.mrb[0].mxu0
        %v2756 = vadd.f32 %v2667, %v2755
        %2757 = vmatprep.mubr.f32.mxu0 0.0
        %2758 = vmatmul.mubr.f32.gmra.mrb[0].mxu0 %v2587
        %v2759 = vpop.f32.mrb[0].mxu0
        %v2760 = vadd.f32 %v2671, %v2759
        %v2761 = vpop.f32.mrb[0].mxu0
        %v2762 = vadd.f32 %v2673, %v2761
        %2763 = vmatprep.mubr.f32.mxu0 0.0
        %2764 = vmatmul.mubr.f32.gmra.mrb[0].mxu0 %v2590
        %v2765 = vpop.f32.mrb[0].mxu0
        %v2766 = vadd.f32 %v2677, %v2765
        %v2767 = vpop.f32.mrb[0].mxu0
        %v2768 = vadd.f32 %v2679, %v2767
        %2769 = vdwg.mxu0
        %v2770 = vmax.f32 %v2748, 0.0
        %v2771 = vmax.f32 %v2750, 0.0
        %v2772 = vmax.f32 %v2754, 0.0
        %v2773 = vmax.f32 %v2756, 0.0
        %v2774 = vmax.f32 %v2760, 0.0
        %v2775 = vmax.f32 %v2762, 0.0
        %v2776 = vmax.f32 %v2766, 0.0
        %v2777 = vmax.f32 %v2768, 0.0
        %s2778 = scalar_lea.vmem [#allocation3], 384
        %v2779 = vld [vmem:[%s2778] sm:$0xff]
        %v2780 = vld [vmem:[%s2778 + $0x8] sm:$0xff]
        %v2781 = vld [vmem:[%s2778 + $0x10] sm:$0xff]
        %v2782 = vld [vmem:[%s2778 + $0x18] sm:$0xff]
        %v2783 = vld [vmem:[%s2778 + $0x20] sm:$0xff]
        %v2784 = vld [vmem:[%s2778 + $0x28] sm:$0xff]
        %v2785 = vld [vmem:[%s2778 + $0x30] sm:$0xff]
        %v2786 = vld [vmem:[%s2778 + $0x38] sm:$0xff]
        %v2787 = vld [vmem:[%s2778 + $0x40] sm:$0xff]
        %v2788 = vld [vmem:[%s2778 + $0x48] sm:$0xff]
        %v2789 = vld [vmem:[%s2778 + $0x50] sm:$0xff]
        %v2790 = vld [vmem:[%s2778 + $0x58] sm:$0xff]
        %s2791 = scalar_lea.vmem %s5, 128
        %v2792 = vld [vmem:[%s2791] sm:$0xff]
        %v2793 = vld [vmem:[%s2791 + $0x8] sm:$0xff]
        %v2794 = vld [vmem:[%s2791 + $0x10] sm:$0xff]
        %v2795 = vld [vmem:[%s2791 + $0x18] sm:$0xff]
        %2796 = vrot.lane.b32.xlu0 %v2770, 34
        %v2797 = vpop.permute.xlu0 %2796
        %2798 = vrot.lane.b32.xlu0 %v2772, 34
        %v2799 = vpop.permute.xlu0 %2798
        %2800 = vrot.lane.b32.xlu0 %v2774, 34
        %v2801 = vpop.permute.xlu0 %2800
        %2802 = vrot.lane.b32.xlu0 %v2776, 34
        %v2803 = vpop.permute.xlu0 %2802
        %2804 = vrot.lane.b32.xlu0 %v2771, 34
        %v2805 = vpop.permute.xlu0 %2804
        %2806 = vrot.lane.b32.xlu0 %v2773, 34
        %v2807 = vpop.permute.xlu0 %2806
        %2808 = vrot.lane.b32.xlu0 %v2775, 34
        %v2809 = vpop.permute.xlu0 %2808
        %2810 = vrot.lane.b32.xlu0 %v2777, 34
        %v2811 = vpop.permute.xlu0 %2810
        %v2812 = vsel %vm771, %v2797, %v2805
        %v2813 = vsel %vm771, %v2799, %v2807
        %v2814 = vsel %vm771, %v2801, %v2809
        %v2815 = vsel %vm771, %v2803, %v2811
        %v2816 = vsel %vm771, %v2805, %v2797
        %v2817 = vsel %vm771, %v2807, %v2799
        %v2818 = vsel %vm771, %v2809, %v2801
        %v2819 = vsel %vm771, %v2811, %v2803
        %v2820 = vmul.f32 %v2816, %v783
        %v2821 = vmul.f32 %v2812, %v787
        %v2822 = vmul.f32 %v2817, %v783
        %v2823 = vmul.f32 %v2813, %v787
        %v2824 = vmul.f32 %v2818, %v783
        %v2825 = vmul.f32 %v2814, %v787
        %v2826 = vmul.f32 %v2819, %v783
        %v2827 = vmul.f32 %v2815, %v787
        %2828 = vrot.lane.b32.xlu0 %v2770, 32
        %v2829 = vpop.permute.xlu0 %2828
        %2830 = vrot.lane.b32.xlu0 %v2772, 32
        %v2831 = vpop.permute.xlu0 %2830
        %2832 = vrot.lane.b32.xlu0 %v2774, 32
        %v2833 = vpop.permute.xlu0 %2832
        %2834 = vrot.lane.b32.xlu0 %v2776, 32
        %v2835 = vpop.permute.xlu0 %2834
        %2836 = vrot.lane.b32.xlu0 %v2771, 32
        %v2837 = vpop.permute.xlu0 %2836
        %2838 = vrot.lane.b32.xlu0 %v2773, 32
        %v2839 = vpop.permute.xlu0 %2838
        %2840 = vrot.lane.b32.xlu0 %v2775, 32
        %v2841 = vpop.permute.xlu0 %2840
        %2842 = vrot.lane.b32.xlu0 %v2777, 32
        %v2843 = vpop.permute.xlu0 %2842
        %v2844 = vsel %vm812, %v2829, %v2837
        %v2845 = vsel %vm812, %v2831, %v2839
        %v2846 = vsel %vm812, %v2833, %v2841
        %v2847 = vsel %vm812, %v2835, %v2843
        %v2848 = vsel %vm812, %v2837, %v2829
        %v2849 = vsel %vm812, %v2839, %v2831
        %v2850 = vsel %vm812, %v2841, %v2833
        %v2851 = vsel %vm812, %v2843, %v2835
        %v2852 = vmul.f32 %v2848, %v824
        %v2853 = vmul.f32 %v2844, %v828
        %v2854 = vmul.f32 %v2849, %v824
        %v2855 = vmul.f32 %v2845, %v828
        %v2856 = vmul.f32 %v2850, %v824
        %v2857 = vmul.f32 %v2846, %v828
        %v2858 = vmul.f32 %v2851, %v824
        %v2859 = vmul.f32 %v2847, %v828
        %2860 = vrot.lane.b32.xlu0 %v2770, 30
        %v2861 = vpop.permute.xlu0 %2860
        %2862 = vrot.lane.b32.xlu0 %v2772, 30
        %v2863 = vpop.permute.xlu0 %2862
        %2864 = vrot.lane.b32.xlu0 %v2774, 30
        %v2865 = vpop.permute.xlu0 %2864
        %2866 = vrot.lane.b32.xlu0 %v2776, 30
        %v2867 = vpop.permute.xlu0 %2866
        %2868 = vrot.lane.b32.xlu0 %v2771, 30
        %v2869 = vpop.permute.xlu0 %2868
        %2870 = vrot.lane.b32.xlu0 %v2773, 30
        %v2871 = vpop.permute.xlu0 %2870
        %2872 = vrot.lane.b32.xlu0 %v2775, 30
        %v2873 = vpop.permute.xlu0 %2872
        %2874 = vrot.lane.b32.xlu0 %v2777, 30
        %v2875 = vpop.permute.xlu0 %2874
        %v2876 = vsel %vm853, %v2861, %v2869
        %v2877 = vsel %vm853, %v2863, %v2871
        %v2878 = vsel %vm853, %v2865, %v2873
        %v2879 = vsel %vm853, %v2867, %v2875
        %v2880 = vsel %vm853, %v2869, %v2861
        %v2881 = vsel %vm853, %v2871, %v2863
        %v2882 = vsel %vm853, %v2873, %v2865
        %v2883 = vsel %vm853, %v2875, %v2867
        %v2884 = vmul.f32 %v2880, %v865
        %v2885 = vmul.f32 %v2876, %v869
        %v2886 = vmul.f32 %v2881, %v865
        %v2887 = vmul.f32 %v2877, %v869
        %v2888 = vmul.f32 %v2882, %v865
        %v2889 = vmul.f32 %v2878, %v869
        %v2890 = vmul.f32 %v2883, %v865
        %v2891 = vmul.f32 %v2879, %v869
        %2892 = vrot.lane.b32.xlu0 %v2770, 2
        %v2893 = vpop.permute.xlu0 %2892
        %2894 = vrot.lane.b32.xlu0 %v2772, 2
        %v2895 = vpop.permute.xlu0 %2894
        %2896 = vrot.lane.b32.xlu0 %v2774, 2
        %v2897 = vpop.permute.xlu0 %2896
        %2898 = vrot.lane.b32.xlu0 %v2776, 2
        %v2899 = vpop.permute.xlu0 %2898
        %2900 = vrot.lane.b32.xlu0 %v2771, 2
        %v2901 = vpop.permute.xlu0 %2900
        %2902 = vrot.lane.b32.xlu0 %v2773, 2
        %v2903 = vpop.permute.xlu0 %2902
        %2904 = vrot.lane.b32.xlu0 %v2775, 2
        %v2905 = vpop.permute.xlu0 %2904
        %2906 = vrot.lane.b32.xlu0 %v2777, 2
        %v2907 = vpop.permute.xlu0 %2906
        %v2908 = vsel %vm894, %v2893, %v2901
        %v2909 = vsel %vm894, %v2895, %v2903
        %v2910 = vsel %vm894, %v2897, %v2905
        %v2911 = vsel %vm894, %v2899, %v2907
        %v2912 = vsel %vm894, %v2901, %v2893
        %v2913 = vsel %vm894, %v2903, %v2895
        %v2914 = vsel %vm894, %v2905, %v2897
        %v2915 = vsel %vm894, %v2907, %v2899
        %v2916 = vmul.f32 %v2912, %v906
        %v2917 = vmul.f32 %v2908, %v910
        %v2918 = vmul.f32 %v2913, %v906
        %v2919 = vmul.f32 %v2909, %v910
        %v2920 = vmul.f32 %v2914, %v906
        %v2921 = vmul.f32 %v2910, %v910
        %v2922 = vmul.f32 %v2915, %v906
        %v2923 = vmul.f32 %v2911, %v910
        %2924 = vrot.lane.b32.xlu0 %v2770, 126
        %v2925 = vpop.permute.xlu0 %2924
        %2926 = vrot.lane.b32.xlu0 %v2772, 126
        %v2927 = vpop.permute.xlu0 %2926
        %2928 = vrot.lane.b32.xlu0 %v2774, 126
        %v2929 = vpop.permute.xlu0 %2928
        %2930 = vrot.lane.b32.xlu0 %v2776, 126
        %v2931 = vpop.permute.xlu0 %2930
        %2932 = vrot.lane.b32.xlu0 %v2771, 126
        %v2933 = vpop.permute.xlu0 %2932
        %2934 = vrot.lane.b32.xlu0 %v2773, 126
        %v2935 = vpop.permute.xlu0 %2934
        %2936 = vrot.lane.b32.xlu0 %v2775, 126
        %v2937 = vpop.permute.xlu0 %2936
        %2938 = vrot.lane.b32.xlu0 %v2777, 126
        %v2939 = vpop.permute.xlu0 %2938
        %v2940 = vsel %vm935, %v2925, %v2933
        %v2941 = vsel %vm935, %v2927, %v2935
        %v2942 = vsel %vm935, %v2929, %v2937
        %v2943 = vsel %vm935, %v2931, %v2939
        %v2944 = vsel %vm935, %v2933, %v2925
        %v2945 = vsel %vm935, %v2935, %v2927
        %v2946 = vsel %vm935, %v2937, %v2929
        %v2947 = vsel %vm935, %v2939, %v2931
        %v2948 = vmul.f32 %v2940, %v947
        %v2949 = vmul.f32 %v2944, %v951
        %v2950 = vmul.f32 %v2941, %v947
        %v2951 = vmul.f32 %v2945, %v951
        %v2952 = vmul.f32 %v2942, %v947
        %v2953 = vmul.f32 %v2946, %v951
        %v2954 = vmul.f32 %v2943, %v947
        %v2955 = vmul.f32 %v2947, %v951
        %2956 = vrot.lane.b32.xlu0 %v2770, 98
        %v2957 = vpop.permute.xlu0 %2956
        %2958 = vrot.lane.b32.xlu0 %v2772, 98
        %v2959 = vpop.permute.xlu0 %2958
        %2960 = vrot.lane.b32.xlu0 %v2774, 98
        %v2961 = vpop.permute.xlu0 %2960
        %2962 = vrot.lane.b32.xlu0 %v2776, 98
        %v2963 = vpop.permute.xlu0 %2962
        %2964 = vrot.lane.b32.xlu0 %v2771, 98
        %v2965 = vpop.permute.xlu0 %2964
        %2966 = vrot.lane.b32.xlu0 %v2773, 98
        %v2967 = vpop.permute.xlu0 %2966
        %2968 = vrot.lane.b32.xlu0 %v2775, 98
        %v2969 = vpop.permute.xlu0 %2968
        %2970 = vrot.lane.b32.xlu0 %v2777, 98
        %v2971 = vpop.permute.xlu0 %2970
        %v2972 = vsel %vm976, %v2957, %v2965
        %v2973 = vsel %vm976, %v2959, %v2967
        %v2974 = vsel %vm976, %v2961, %v2969
        %v2975 = vsel %vm976, %v2963, %v2971
        %v2976 = vsel %vm976, %v2965, %v2957
        %v2977 = vsel %vm976, %v2967, %v2959
        %v2978 = vsel %vm976, %v2969, %v2961
        %v2979 = vsel %vm976, %v2971, %v2963
        %v2980 = vmul.f32 %v2972, %v988
        %v2981 = vmul.f32 %v2976, %v992
        %v2982 = vmul.f32 %v2973, %v988
        %v2983 = vmul.f32 %v2977, %v992
        %v2984 = vmul.f32 %v2974, %v988
        %v2985 = vmul.f32 %v2978, %v992
        %v2986 = vmul.f32 %v2975, %v988
        %v2987 = vmul.f32 %v2979, %v992
        %2988 = vrot.lane.b32.xlu0 %v2770, 96
        %v2989 = vpop.permute.xlu0 %2988
        %2990 = vrot.lane.b32.xlu0 %v2772, 96
        %v2991 = vpop.permute.xlu0 %2990
        %2992 = vrot.lane.b32.xlu0 %v2774, 96
        %v2993 = vpop.permute.xlu0 %2992
        %2994 = vrot.lane.b32.xlu0 %v2776, 96
        %v2995 = vpop.permute.xlu0 %2994
        %2996 = vrot.lane.b32.xlu0 %v2771, 96
        %v2997 = vpop.permute.xlu0 %2996
        %2998 = vrot.lane.b32.xlu0 %v2773, 96
        %v2999 = vpop.permute.xlu0 %2998
        %3000 = vrot.lane.b32.xlu0 %v2775, 96
        %v3001 = vpop.permute.xlu0 %3000
        %3002 = vrot.lane.b32.xlu0 %v2777, 96
        %v3003 = vpop.permute.xlu0 %3002
        %v3004 = vsel %vm1017, %v2989, %v2997
        %v3005 = vsel %vm1017, %v2991, %v2999
        %v3006 = vsel %vm1017, %v2993, %v3001
        %v3007 = vsel %vm1017, %v2995, %v3003
        %v3008 = vsel %vm1017, %v2997, %v2989
        %v3009 = vsel %vm1017, %v2999, %v2991
        %v3010 = vsel %vm1017, %v3001, %v2993
        %v3011 = vsel %vm1017, %v3003, %v2995
        %v3012 = vmul.f32 %v3004, %v1029
        %v3013 = vmul.f32 %v3008, %v1033
        %v3014 = vmul.f32 %v3005, %v1029
        %v3015 = vmul.f32 %v3009, %v1033
        %v3016 = vmul.f32 %v3006, %v1029
        %v3017 = vmul.f32 %v3010, %v1033
        %v3018 = vmul.f32 %v3007, %v1029
        %v3019 = vmul.f32 %v3011, %v1033
        %3020 = vrot.lane.b32.xlu0 %v2770, 94
        %v3021 = vpop.permute.xlu0 %3020
        %3022 = vrot.lane.b32.xlu0 %v2772, 94
        %v3023 = vpop.permute.xlu0 %3022
        %3024 = vrot.lane.b32.xlu0 %v2774, 94
        %v3025 = vpop.permute.xlu0 %3024
        %3026 = vrot.lane.b32.xlu0 %v2776, 94
        %v3027 = vpop.permute.xlu0 %3026
        %3028 = vrot.lane.b32.xlu0 %v2771, 94
        %v3029 = vpop.permute.xlu0 %3028
        %3030 = vrot.lane.b32.xlu0 %v2773, 94
        %v3031 = vpop.permute.xlu0 %3030
        %3032 = vrot.lane.b32.xlu0 %v2775, 94
        %v3033 = vpop.permute.xlu0 %3032
        %3034 = vrot.lane.b32.xlu0 %v2777, 94
        %v3035 = vpop.permute.xlu0 %3034
        %v3036 = vsel %vm1058, %v3021, %v3029
        %v3037 = vsel %vm1058, %v3023, %v3031
        %v3038 = vsel %vm1058, %v3025, %v3033
        %v3039 = vsel %vm1058, %v3027, %v3035
        %v3040 = vsel %vm1058, %v3029, %v3021
        %v3041 = vsel %vm1058, %v3031, %v3023
        %v3042 = vsel %vm1058, %v3033, %v3025
        %v3043 = vsel %vm1058, %v3035, %v3027
        %v3044 = vmul.f32 %v3036, %v1070
        %v3045 = vmul.f32 %v3040, %v1074
        %v3046 = vmul.f32 %v3037, %v1070
        %v3047 = vmul.f32 %v3041, %v1074
        %v3048 = vmul.f32 %v3038, %v1070
        %v3049 = vmul.f32 %v3042, %v1074
        %v3050 = vmul.f32 %v3039, %v1070
        %v3051 = vmul.f32 %v3043, %v1074
        %3053 = vset.pattern.permute.xlu0 0
        %3054 = vperm.xlu0 %3053, %v2792
        %v3055 = vpop.permute.xlu0 %3054
        %3058 = vset.pattern.permute.xlu0 0
        %3059 = vperm.xlu0 %3058, %v2793
        %v3060 = vpop.permute.xlu0 %3059
        %3063 = vset.pattern.permute.xlu0 0
        %3064 = vperm.xlu0 %3063, %v2794
        %v3065 = vpop.permute.xlu0 %3064
        %3068 = vset.pattern.permute.xlu0 0
        %3069 = vperm.xlu0 %3068, %v2795
        %v3070 = vpop.permute.xlu0 %3069
        %v3073 = vsel %vm1103, %v2781, 0
        %v3076 = vsel %vm1103, %v2784, 0
        %v3079 = vsel %vm1103, %v2787, 0
        %v3082 = vsel %vm1103, %v2790, 0
        %3084 = vmatprep.subr.mxu0 %v2821
        %3085 = vmatpush1.msra.mxu0 %v2820
        %3086 = vmatprep.subr.mxu0 %v2823
        %3087 = vmatpush1.msra.mxu0 %v2822
        %3088 = vmatprep.subr.mxu0 %v2825
        %3089 = vmatpush1.msra.mxu0 %v2824
        %3090 = vmatprep.subr.mxu0 %v2827
        %3091 = vmatpush1.msra.mxu0 %v2826
        %3092 = vmatprep.subr.mxu0 %v2853
        %3093 = vmatpush1.msra.mxu0 %v2852
        %3094 = vmatprep.subr.mxu0 %v2855
        %3095 = vmatpush1.msra.mxu0 %v2854
        %3096 = vmatprep.subr.mxu0 %v2857
        %3097 = vmatpush1.msra.mxu0 %v2856
        %3098 = vmatprep.subr.mxu0 %v2859
        %3099 = vmatpush1.msra.mxu0 %v2858
        %3100 = vmatprep.subr.mxu0 %v2885
        %3101 = vmatpush1.msra.mxu0 %v2884
        %3102 = vmatprep.subr.mxu0 %v2887
        %3103 = vmatpush1.msra.mxu0 %v2886
        %3104 = vmatprep.subr.mxu0 %v2889
        %3105 = vmatpush1.msra.mxu0 %v2888
        %3106 = vmatprep.subr.mxu0 %v2891
        %3107 = vmatpush1.msra.mxu0 %v2890
        %3108 = vmatprep.subr.mxu0 %v2917
        %3109 = vmatpush1.msra.mxu0 %v2916
        %3110 = vmatprep.subr.mxu0 %v2919
        %3111 = vmatpush1.msra.mxu0 %v2918
        %3112 = vmatprep.subr.mxu0 %v2921
        %3113 = vmatpush1.msra.mxu0 %v2920
        %3114 = vmatprep.subr.mxu0 %v2923
        %3115 = vmatpush1.msra.mxu0 %v2922
        %3116 = vmatprep.subr.mxu0 %v2771
        %3117 = vmatpush1.msra.mxu0 %v2770
        %3118 = vmatprep.subr.mxu0 %v2773
        %3119 = vmatpush1.msra.mxu0 %v2772
        %3120 = vmatprep.subr.mxu0 %v2775
        %3121 = vmatpush1.msra.mxu0 %v2774
        %3122 = vmatprep.subr.mxu0 %v2777
        %3123 = vmatpush1.msra.mxu0 %v2776
        %3124 = vmatprep.subr.mxu0 %v2949
        %3125 = vmatpush1.msra.mxu0 %v2948
        %3126 = vmatprep.subr.mxu0 %v2951
        %3127 = vmatpush1.msra.mxu0 %v2950
        %3128 = vmatprep.subr.mxu0 %v2953
        %3129 = vmatpush1.msra.mxu0 %v2952
        %3130 = vmatprep.subr.mxu0 %v2955
        %3131 = vmatpush1.msra.mxu0 %v2954
        %3132 = vmatprep.subr.mxu0 %v2981
        %3133 = vmatpush1.msra.mxu0 %v2980
        %3134 = vmatprep.subr.mxu0 %v2983
        %3135 = vmatpush1.msra.mxu0 %v2982
        %3136 = vmatprep.subr.mxu0 %v2985
        %3137 = vmatpush1.msra.mxu0 %v2984
        %3138 = vmatprep.subr.mxu0 %v2987
        %3139 = vmatpush1.msra.mxu0 %v2986
        %3140 = vmatprep.subr.mxu0 %v3013
        %3141 = vmatpush1.msra.mxu0 %v3012
        %3142 = vmatprep.subr.mxu0 %v3015
        %3143 = vmatpush1.msra.mxu0 %v3014
        %3144 = vmatprep.subr.mxu0 %v3017
        %3145 = vmatpush1.msra.mxu0 %v3016
        %3146 = vmatprep.subr.mxu0 %v3019
        %3147 = vmatpush1.msra.mxu0 %v3018
        %3148 = vmatprep.mubr.f32.mxu0 %v2780
        %3149 = vmatmul.mubr.f32.gmra.mrb[0].mxu0 %v2779
        %v3150 = vpop.f32.mrb[0].mxu0
        %v3151 = vadd.f32 %v3055, %v3150
        %v3152 = vpop.f32.mrb[0].mxu0
        %v3153 = vadd.f32 %v3055, %v3152
        %3154 = vmatprep.mubr.f32.mxu0 %v2783
        %3155 = vmatmul.mubr.f32.gmra.mrb[0].mxu0 %v2782
        %v3156 = vpop.f32.mrb[0].mxu0
        %v3157 = vadd.f32 %v3060, %v3156
        %v3158 = vpop.f32.mrb[0].mxu0
        %v3159 = vadd.f32 %v3060, %v3158
        %3160 = vmatprep.mubr.f32.mxu0 %v2786
        %3161 = vmatmul.mubr.f32.gmra.mrb[0].mxu0 %v2785
        %v3162 = vpop.f32.mrb[0].mxu0
        %v3163 = vadd.f32 %v3065, %v3162
        %v3164 = vpop.f32.mrb[0].mxu0
        %v3165 = vadd.f32 %v3065, %v3164
        %3166 = vmatprep.mubr.f32.mxu0 %v2789
        %3167 = vmatmul.mubr.f32.gmra.mrb[0].mxu0 %v2788
        %v3168 = vpop.f32.mrb[0].mxu0
        %v3169 = vadd.f32 %v3070, %v3168
        %v3170 = vpop.f32.mrb[0].mxu0
        %v3171 = vadd.f32 %v3070, %v3170
        %3172 = vdwg.mxu0
        %3173 = vmatprep.subr.mxu0 %v3045
        %3174 = vmatpush1.msra.mxu0 %v3044
        %3175 = vmatprep.subr.mxu0 %v3047
        %3176 = vmatpush1.msra.mxu0 %v3046
        %3177 = vmatprep.subr.mxu0 %v3049
        %3178 = vmatpush1.msra.mxu0 %v3048
        %3179 = vmatprep.subr.mxu0 %v3051
        %3180 = vmatpush1.msra.mxu0 %v3050
        %3181 = vmatprep.subr.mxu0 0.0
        %3182 = vmatpush1.msra.mxu0 0.0
        %3183 = vmatprep.subr.mxu0 0.0
        %3184 = vmatpush1.msra.mxu0 0.0
        %3185 = vmatprep.subr.mxu0 0.0
        %3186 = vmatpush1.msra.mxu0 0.0
        %3187 = vmatprep.subr.mxu0 0.0
        %3188 = vmatpush1.msra.mxu0 0.0
        %3189 = vmatprep.subr.mxu0 0.0
        %3190 = vmatpush1.msra.mxu0 0.0
        %3191 = vmatprep.subr.mxu0 0.0
        %3192 = vmatpush1.msra.mxu0 0.0
        %3193 = vmatprep.subr.mxu0 0.0
        %3194 = vmatpush1.msra.mxu0 0.0
        %3195 = vmatprep.subr.mxu0 0.0
        %3196 = vmatpush1.msra.mxu0 0.0
        %3197 = vmatprep.subr.mxu0 0.0
        %3198 = vmatpush1.msra.mxu0 0.0
        %3199 = vmatprep.subr.mxu0 0.0
        %3200 = vmatpush1.msra.mxu0 0.0
        %3201 = vmatprep.subr.mxu0 0.0
        %3202 = vmatpush1.msra.mxu0 0.0
        %3203 = vmatprep.subr.mxu0 0.0
        %3204 = vmatpush1.msra.mxu0 0.0
        %3205 = vmatprep.subr.mxu0 0.0
        %3206 = vmatpush1.msra.mxu0 0.0
        %3207 = vmatprep.subr.mxu0 0.0
        %3208 = vmatpush1.msra.mxu0 0.0
        %3209 = vmatprep.subr.mxu0 0.0
        %3210 = vmatpush1.msra.mxu0 0.0
        %3211 = vmatprep.subr.mxu0 0.0
        %3212 = vmatpush1.msra.mxu0 0.0
        %3213 = vmatprep.subr.mxu0 0.0
        %3214 = vmatpush1.msra.mxu0 0.0
        %3215 = vmatprep.subr.mxu0 0.0
        %3216 = vmatpush1.msra.mxu0 0.0
        %3217 = vmatprep.subr.mxu0 0.0
        %3218 = vmatpush1.msra.mxu0 0.0
        %3219 = vmatprep.subr.mxu0 0.0
        %3220 = vmatpush1.msra.mxu0 0.0
        %3221 = vmatprep.subr.mxu0 0.0
        %3222 = vmatpush1.msra.mxu0 0.0
        %3223 = vmatprep.subr.mxu0 0.0
        %3224 = vmatpush1.msra.mxu0 0.0
        %3225 = vmatprep.subr.mxu0 0.0
        %3226 = vmatpush1.msra.mxu0 0.0
        %3227 = vmatprep.subr.mxu0 0.0
        %3228 = vmatpush1.msra.mxu0 0.0
        %3229 = vmatprep.subr.mxu0 0.0
        %3230 = vmatpush1.msra.mxu0 0.0
        %3231 = vmatprep.subr.mxu0 0.0
        %3232 = vmatpush1.msra.mxu0 0.0
        %3233 = vmatprep.subr.mxu0 0.0
        %3234 = vmatpush1.msra.mxu0 0.0
        %3235 = vmatprep.subr.mxu0 0.0
        %3236 = vmatpush1.msra.mxu0 0.0
        %3237 = vmatprep.mubr.f32.mxu0 0.0
        %3238 = vmatmul.mubr.f32.gmra.mrb[0].mxu0 %v3073
        %v3239 = vpop.f32.mrb[0].mxu0
        %v3240 = vadd.f32 %v3151, %v3239
        %v3241 = vpop.f32.mrb[0].mxu0
        %v3242 = vadd.f32 %v3153, %v3241
        %3243 = vmatprep.mubr.f32.mxu0 0.0
        %3244 = vmatmul.mubr.f32.gmra.mrb[0].mxu0 %v3076
        %v3245 = vpop.f32.mrb[0].mxu0
        %v3246 = vadd.f32 %v3157, %v3245
        %v3247 = vpop.f32.mrb[0].mxu0
        %v3248 = vadd.f32 %v3159, %v3247
        %3249 = vmatprep.mubr.f32.mxu0 0.0
        %3250 = vmatmul.mubr.f32.gmra.mrb[0].mxu0 %v3079
        %v3251 = vpop.f32.mrb[0].mxu0
        %v3252 = vadd.f32 %v3163, %v3251
        %v3253 = vpop.f32.mrb[0].mxu0
        %v3254 = vadd.f32 %v3165, %v3253
        %3255 = vmatprep.mubr.f32.mxu0 0.0
        %3256 = vmatmul.mubr.f32.gmra.mrb[0].mxu0 %v3082
        %v3257 = vpop.f32.mrb[0].mxu0
        %v3258 = vadd.f32 %v3169, %v3257
        %v3259 = vpop.f32.mrb[0].mxu0
        %v3260 = vadd.f32 %v3171, %v3259
        %3261 = vdwg.mxu0
        %v3262 = vmax.f32 %v3240, 0.0
        %v3263 = vmax.f32 %v3242, 0.0
        %v3264 = vmax.f32 %v3246, 0.0
        %v3265 = vmax.f32 %v3248, 0.0
        %v3266 = vmax.f32 %v3252, 0.0
        %v3267 = vmax.f32 %v3254, 0.0
        %v3268 = vmax.f32 %v3258, 0.0
        %v3269 = vmax.f32 %v3260, 0.0
        %s3270 = scalar_lea.vmem [#allocation3], 480
        %v3271 = vld [vmem:[%s3270] sm:$0xff]
        %v3272 = vld [vmem:[%s3270 + $0x8] sm:$0xff]
        %v3273 = vld [vmem:[%s3270 + $0x10] sm:$0xff]
        %v3274 = vld [vmem:[%s3270 + $0x18] sm:$0xff]
        %v3275 = vld [vmem:[%s3270 + $0x20] sm:$0xff]
        %v3276 = vld [vmem:[%s3270 + $0x28] sm:$0xff]
        %v3277 = vld [vmem:[%s3270 + $0x30] sm:$0xff]
        %v3278 = vld [vmem:[%s3270 + $0x38] sm:$0xff]
        %v3279 = vld [vmem:[%s3270 + $0x40] sm:$0xff]
        %v3280 = vld [vmem:[%s3270 + $0x48] sm:$0xff]
        %v3281 = vld [vmem:[%s3270 + $0x50] sm:$0xff]
        %v3282 = vld [vmem:[%s3270 + $0x58] sm:$0xff]
        %s3283 = scalar_lea.vmem %s5, 160
        %v3284 = vld [vmem:[%s3283] sm:$0xff]
        %v3285 = vld [vmem:[%s3283 + $0x8] sm:$0xff]
        %v3286 = vld [vmem:[%s3283 + $0x10] sm:$0xff]
        %v3287 = vld [vmem:[%s3283 + $0x18] sm:$0xff]
        %3288 = vrot.lane.b32.xlu0 %v3262, 34
        %v3289 = vpop.permute.xlu0 %3288
        %3290 = vrot.lane.b32.xlu0 %v3264, 34
        %v3291 = vpop.permute.xlu0 %3290
        %3292 = vrot.lane.b32.xlu0 %v3266, 34
        %v3293 = vpop.permute.xlu0 %3292
        %3294 = vrot.lane.b32.xlu0 %v3268, 34
        %v3295 = vpop.permute.xlu0 %3294
        %3296 = vrot.lane.b32.xlu0 %v3263, 34
        %v3297 = vpop.permute.xlu0 %3296
        %3298 = vrot.lane.b32.xlu0 %v3265, 34
        %v3299 = vpop.permute.xlu0 %3298
        %3300 = vrot.lane.b32.xlu0 %v3267, 34
        %v3301 = vpop.permute.xlu0 %3300
        %3302 = vrot.lane.b32.xlu0 %v3269, 34
        %v3303 = vpop.permute.xlu0 %3302
        %v3304 = vsel %vm771, %v3289, %v3297
        %v3305 = vsel %vm771, %v3291, %v3299
        %v3306 = vsel %vm771, %v3293, %v3301
        %v3307 = vsel %vm771, %v3295, %v3303
        %v3308 = vsel %vm771, %v3297, %v3289
        %v3309 = vsel %vm771, %v3299, %v3291
        %v3310 = vsel %vm771, %v3301, %v3293
        %v3311 = vsel %vm771, %v3303, %v3295
        %v3312 = vmul.f32 %v3308, %v783
        %v3313 = vmul.f32 %v3304, %v787
        %v3314 = vmul.f32 %v3309, %v783
        %v3315 = vmul.f32 %v3305, %v787
        %v3316 = vmul.f32 %v3310, %v783
        %v3317 = vmul.f32 %v3306, %v787
        %v3318 = vmul.f32 %v3311, %v783
        %v3319 = vmul.f32 %v3307, %v787
        %3320 = vrot.lane.b32.xlu0 %v3262, 32
        %v3321 = vpop.permute.xlu0 %3320
        %3322 = vrot.lane.b32.xlu0 %v3264, 32
        %v3323 = vpop.permute.xlu0 %3322
        %3324 = vrot.lane.b32.xlu0 %v3266, 32
        %v3325 = vpop.permute.xlu0 %3324
        %3326 = vrot.lane.b32.xlu0 %v3268, 32
        %v3327 = vpop.permute.xlu0 %3326
        %3328 = vrot.lane.b32.xlu0 %v3263, 32
        %v3329 = vpop.permute.xlu0 %3328
        %3330 = vrot.lane.b32.xlu0 %v3265, 32
        %v3331 = vpop.permute.xlu0 %3330
        %3332 = vrot.lane.b32.xlu0 %v3267, 32
        %v3333 = vpop.permute.xlu0 %3332
        %3334 = vrot.lane.b32.xlu0 %v3269, 32
        %v3335 = vpop.permute.xlu0 %3334
        %v3336 = vsel %vm812, %v3321, %v3329
        %v3337 = vsel %vm812, %v3323, %v3331
        %v3338 = vsel %vm812, %v3325, %v3333
        %v3339 = vsel %vm812, %v3327, %v3335
        %v3340 = vsel %vm812, %v3329, %v3321
        %v3341 = vsel %vm812, %v3331, %v3323
        %v3342 = vsel %vm812, %v3333, %v3325
        %v3343 = vsel %vm812, %v3335, %v3327
        %v3344 = vmul.f32 %v3340, %v824
        %v3345 = vmul.f32 %v3336, %v828
        %v3346 = vmul.f32 %v3341, %v824
        %v3347 = vmul.f32 %v3337, %v828
        %v3348 = vmul.f32 %v3342, %v824
        %v3349 = vmul.f32 %v3338, %v828
        %v3350 = vmul.f32 %v3343, %v824
        %v3351 = vmul.f32 %v3339, %v828
        %3352 = vrot.lane.b32.xlu0 %v3262, 30
        %v3353 = vpop.permute.xlu0 %3352
        %3354 = vrot.lane.b32.xlu0 %v3264, 30
        %v3355 = vpop.permute.xlu0 %3354
        %3356 = vrot.lane.b32.xlu0 %v3266, 30
        %v3357 = vpop.permute.xlu0 %3356
        %3358 = vrot.lane.b32.xlu0 %v3268, 30
        %v3359 = vpop.permute.xlu0 %3358
        %3360 = vrot.lane.b32.xlu0 %v3263, 30
        %v3361 = vpop.permute.xlu0 %3360
        %3362 = vrot.lane.b32.xlu0 %v3265, 30
        %v3363 = vpop.permute.xlu0 %3362
        %3364 = vrot.lane.b32.xlu0 %v3267, 30
        %v3365 = vpop.permute.xlu0 %3364
        %3366 = vrot.lane.b32.xlu0 %v3269, 30
        %v3367 = vpop.permute.xlu0 %3366
        %v3368 = vsel %vm853, %v3353, %v3361
        %v3369 = vsel %vm853, %v3355, %v3363
        %v3370 = vsel %vm853, %v3357, %v3365
        %v3371 = vsel %vm853, %v3359, %v3367
        %v3372 = vsel %vm853, %v3361, %v3353
        %v3373 = vsel %vm853, %v3363, %v3355
        %v3374 = vsel %vm853, %v3365, %v3357
        %v3375 = vsel %vm853, %v3367, %v3359
        %v3376 = vmul.f32 %v3372, %v865
        %v3377 = vmul.f32 %v3368, %v869
        %v3378 = vmul.f32 %v3373, %v865
        %v3379 = vmul.f32 %v3369, %v869
        %v3380 = vmul.f32 %v3374, %v865
        %v3381 = vmul.f32 %v3370, %v869
        %v3382 = vmul.f32 %v3375, %v865
        %v3383 = vmul.f32 %v3371, %v869
        %3384 = vrot.lane.b32.xlu0 %v3262, 2
        %v3385 = vpop.permute.xlu0 %3384
        %3386 = vrot.lane.b32.xlu0 %v3264, 2
        %v3387 = vpop.permute.xlu0 %3386
        %3388 = vrot.lane.b32.xlu0 %v3266, 2
        %v3389 = vpop.permute.xlu0 %3388
        %3390 = vrot.lane.b32.xlu0 %v3268, 2
        %v3391 = vpop.permute.xlu0 %3390
        %3392 = vrot.lane.b32.xlu0 %v3263, 2
        %v3393 = vpop.permute.xlu0 %3392
        %3394 = vrot.lane.b32.xlu0 %v3265, 2
        %v3395 = vpop.permute.xlu0 %3394
        %3396 = vrot.lane.b32.xlu0 %v3267, 2
        %v3397 = vpop.permute.xlu0 %3396
        %3398 = vrot.lane.b32.xlu0 %v3269, 2
        %v3399 = vpop.permute.xlu0 %3398
        %v3400 = vsel %vm894, %v3385, %v3393
        %v3401 = vsel %vm894, %v3387, %v3395
        %v3402 = vsel %vm894, %v3389, %v3397
        %v3403 = vsel %vm894, %v3391, %v3399
        %v3404 = vsel %vm894, %v3393, %v3385
        %v3405 = vsel %vm894, %v3395, %v3387
        %v3406 = vsel %vm894, %v3397, %v3389
        %v3407 = vsel %vm894, %v3399, %v3391
        %v3408 = vmul.f32 %v3404, %v906
        %v3409 = vmul.f32 %v3400, %v910
        %v3410 = vmul.f32 %v3405, %v906
        %v3411 = vmul.f32 %v3401, %v910
        %v3412 = vmul.f32 %v3406, %v906
        %v3413 = vmul.f32 %v3402, %v910
        %v3414 = vmul.f32 %v3407, %v906
        %v3415 = vmul.f32 %v3403, %v910
        %3416 = vrot.lane.b32.xlu0 %v3262, 126
        %v3417 = vpop.permute.xlu0 %3416
        %3418 = vrot.lane.b32.xlu0 %v3264, 126
        %v3419 = vpop.permute.xlu0 %3418
        %3420 = vrot.lane.b32.xlu0 %v3266, 126
        %v3421 = vpop.permute.xlu0 %3420
        %3422 = vrot.lane.b32.xlu0 %v3268, 126
        %v3423 = vpop.permute.xlu0 %3422
        %3424 = vrot.lane.b32.xlu0 %v3263, 126
        %v3425 = vpop.permute.xlu0 %3424
        %3426 = vrot.lane.b32.xlu0 %v3265, 126
        %v3427 = vpop.permute.xlu0 %3426
        %3428 = vrot.lane.b32.xlu0 %v3267, 126
        %v3429 = vpop.permute.xlu0 %3428
        %3430 = vrot.lane.b32.xlu0 %v3269, 126
        %v3431 = vpop.permute.xlu0 %3430
        %v3432 = vsel %vm935, %v3417, %v3425
        %v3433 = vsel %vm935, %v3419, %v3427
        %v3434 = vsel %vm935, %v3421, %v3429
        %v3435 = vsel %vm935, %v3423, %v3431
        %v3436 = vsel %vm935, %v3425, %v3417
        %v3437 = vsel %vm935, %v3427, %v3419
        %v3438 = vsel %vm935, %v3429, %v3421
        %v3439 = vsel %vm935, %v3431, %v3423
        %v3440 = vmul.f32 %v3432, %v947
        %v3441 = vmul.f32 %v3436, %v951
        %v3442 = vmul.f32 %v3433, %v947
        %v3443 = vmul.f32 %v3437, %v951
        %v3444 = vmul.f32 %v3434, %v947
        %v3445 = vmul.f32 %v3438, %v951
        %v3446 = vmul.f32 %v3435, %v947
        %v3447 = vmul.f32 %v3439, %v951
        %3448 = vrot.lane.b32.xlu0 %v3262, 98
        %v3449 = vpop.permute.xlu0 %3448
        %3450 = vrot.lane.b32.xlu0 %v3264, 98
        %v3451 = vpop.permute.xlu0 %3450
        %3452 = vrot.lane.b32.xlu0 %v3266, 98
        %v3453 = vpop.permute.xlu0 %3452
        %3454 = vrot.lane.b32.xlu0 %v3268, 98
        %v3455 = vpop.permute.xlu0 %3454
        %3456 = vrot.lane.b32.xlu0 %v3263, 98
        %v3457 = vpop.permute.xlu0 %3456
        %3458 = vrot.lane.b32.xlu0 %v3265, 98
        %v3459 = vpop.permute.xlu0 %3458
        %3460 = vrot.lane.b32.xlu0 %v3267, 98
        %v3461 = vpop.permute.xlu0 %3460
        %3462 = vrot.lane.b32.xlu0 %v3269, 98
        %v3463 = vpop.permute.xlu0 %3462
        %v3464 = vsel %vm976, %v3449, %v3457
        %v3465 = vsel %vm976, %v3451, %v3459
        %v3466 = vsel %vm976, %v3453, %v3461
        %v3467 = vsel %vm976, %v3455, %v3463
        %v3468 = vsel %vm976, %v3457, %v3449
        %v3469 = vsel %vm976, %v3459, %v3451
        %v3470 = vsel %vm976, %v3461, %v3453
        %v3471 = vsel %vm976, %v3463, %v3455
        %v3472 = vmul.f32 %v3464, %v988
        %v3473 = vmul.f32 %v3468, %v992
        %v3474 = vmul.f32 %v3465, %v988
        %v3475 = vmul.f32 %v3469, %v992
        %v3476 = vmul.f32 %v3466, %v988
        %v3477 = vmul.f32 %v3470, %v992
        %v3478 = vmul.f32 %v3467, %v988
        %v3479 = vmul.f32 %v3471, %v992
        %3480 = vrot.lane.b32.xlu0 %v3262, 96
        %v3481 = vpop.permute.xlu0 %3480
        %3482 = vrot.lane.b32.xlu0 %v3264, 96
        %v3483 = vpop.permute.xlu0 %3482
        %3484 = vrot.lane.b32.xlu0 %v3266, 96
        %v3485 = vpop.permute.xlu0 %3484
        %3486 = vrot.lane.b32.xlu0 %v3268, 96
        %v3487 = vpop.permute.xlu0 %3486
        %3488 = vrot.lane.b32.xlu0 %v3263, 96
        %v3489 = vpop.permute.xlu0 %3488
        %3490 = vrot.lane.b32.xlu0 %v3265, 96
        %v3491 = vpop.permute.xlu0 %3490
        %3492 = vrot.lane.b32.xlu0 %v3267, 96
        %v3493 = vpop.permute.xlu0 %3492
        %3494 = vrot.lane.b32.xlu0 %v3269, 96
        %v3495 = vpop.permute.xlu0 %3494
        %v3496 = vsel %vm1017, %v3481, %v3489
        %v3497 = vsel %vm1017, %v3483, %v3491
        %v3498 = vsel %vm1017, %v3485, %v3493
        %v3499 = vsel %vm1017, %v3487, %v3495
        %v3500 = vsel %vm1017, %v3489, %v3481
        %v3501 = vsel %vm1017, %v3491, %v3483
        %v3502 = vsel %vm1017, %v3493, %v3485
        %v3503 = vsel %vm1017, %v3495, %v3487
        %v3504 = vmul.f32 %v3496, %v1029
        %v3505 = vmul.f32 %v3500, %v1033
        %v3506 = vmul.f32 %v3497, %v1029
        %v3507 = vmul.f32 %v3501, %v1033
        %v3508 = vmul.f32 %v3498, %v1029
        %v3509 = vmul.f32 %v3502, %v1033
        %v3510 = vmul.f32 %v3499, %v1029
        %v3511 = vmul.f32 %v3503, %v1033
        %3512 = vrot.lane.b32.xlu0 %v3262, 94
        %v3513 = vpop.permute.xlu0 %3512
        %3514 = vrot.lane.b32.xlu0 %v3264, 94
        %v3515 = vpop.permute.xlu0 %3514
        %3516 = vrot.lane.b32.xlu0 %v3266, 94
        %v3517 = vpop.permute.xlu0 %3516
        %3518 = vrot.lane.b32.xlu0 %v3268, 94
        %v3519 = vpop.permute.xlu0 %3518
        %3520 = vrot.lane.b32.xlu0 %v3263, 94
        %v3521 = vpop.permute.xlu0 %3520
        %3522 = vrot.lane.b32.xlu0 %v3265, 94
        %v3523 = vpop.permute.xlu0 %3522
        %3524 = vrot.lane.b32.xlu0 %v3267, 94
        %v3525 = vpop.permute.xlu0 %3524
        %3526 = vrot.lane.b32.xlu0 %v3269, 94
        %v3527 = vpop.permute.xlu0 %3526
        %v3528 = vsel %vm1058, %v3513, %v3521
        %v3529 = vsel %vm1058, %v3515, %v3523
        %v3530 = vsel %vm1058, %v3517, %v3525
        %v3531 = vsel %vm1058, %v3519, %v3527
        %v3532 = vsel %vm1058, %v3521, %v3513
        %v3533 = vsel %vm1058, %v3523, %v3515
        %v3534 = vsel %vm1058, %v3525, %v3517
        %v3535 = vsel %vm1058, %v3527, %v3519
        %v3536 = vmul.f32 %v3528, %v1070
        %v3537 = vmul.f32 %v3532, %v1074
        %v3538 = vmul.f32 %v3529, %v1070
        %v3539 = vmul.f32 %v3533, %v1074
        %v3540 = vmul.f32 %v3530, %v1070
        %v3541 = vmul.f32 %v3534, %v1074
        %v3542 = vmul.f32 %v3531, %v1070
        %v3543 = vmul.f32 %v3535, %v1074
        %3545 = vset.pattern.permute.xlu0 0
        %3546 = vperm.xlu0 %3545, %v3284
        %v3547 = vpop.permute.xlu0 %3546
        %3550 = vset.pattern.permute.xlu0 0
        %3551 = vperm.xlu0 %3550, %v3285
        %v3552 = vpop.permute.xlu0 %3551
        %3555 = vset.pattern.permute.xlu0 0
        %3556 = vperm.xlu0 %3555, %v3286
        %v3557 = vpop.permute.xlu0 %3556
        %3560 = vset.pattern.permute.xlu0 0
        %3561 = vperm.xlu0 %3560, %v3287
        %v3562 = vpop.permute.xlu0 %3561
        %v3565 = vsel %vm1103, %v3273, 0
        %v3568 = vsel %vm1103, %v3276, 0
        %v3571 = vsel %vm1103, %v3279, 0
        %v3574 = vsel %vm1103, %v3282, 0
        %3576 = vmatprep.subr.mxu0 %v3313
        %3577 = vmatpush1.msra.mxu0 %v3312
        %3578 = vmatprep.subr.mxu0 %v3315
        %3579 = vmatpush1.msra.mxu0 %v3314
        %3580 = vmatprep.subr.mxu0 %v3317
        %3581 = vmatpush1.msra.mxu0 %v3316
        %3582 = vmatprep.subr.mxu0 %v3319
        %3583 = vmatpush1.msra.mxu0 %v3318
        %3584 = vmatprep.subr.mxu0 %v3345
        %3585 = vmatpush1.msra.mxu0 %v3344
        %3586 = vmatprep.subr.mxu0 %v3347
        %3587 = vmatpush1.msra.mxu0 %v3346
        %3588 = vmatprep.subr.mxu0 %v3349
        %3589 = vmatpush1.msra.mxu0 %v3348
        %3590 = vmatprep.subr.mxu0 %v3351
        %3591 = vmatpush1.msra.mxu0 %v3350
        %3592 = vmatprep.subr.mxu0 %v3377
        %3593 = vmatpush1.msra.mxu0 %v3376
        %3594 = vmatprep.subr.mxu0 %v3379
        %3595 = vmatpush1.msra.mxu0 %v3378
        %3596 = vmatprep.subr.mxu0 %v3381
        %3597 = vmatpush1.msra.mxu0 %v3380
        %3598 = vmatprep.subr.mxu0 %v3383
        %3599 = vmatpush1.msra.mxu0 %v3382
        %3600 = vmatprep.subr.mxu0 %v3409
        %3601 = vmatpush1.msra.mxu0 %v3408
        %3602 = vmatprep.subr.mxu0 %v3411
        %3603 = vmatpush1.msra.mxu0 %v3410
        %3604 = vmatprep.subr.mxu0 %v3413
        %3605 = vmatpush1.msra.mxu0 %v3412
        %3606 = vmatprep.subr.mxu0 %v3415
        %3607 = vmatpush1.msra.mxu0 %v3414
        %3608 = vmatprep.subr.mxu0 %v3263
        %3609 = vmatpush1.msra.mxu0 %v3262
        %3610 = vmatprep.subr.mxu0 %v3265
        %3611 = vmatpush1.msra.mxu0 %v3264
        %3612 = vmatprep.subr.mxu0 %v3267
        %3613 = vmatpush1.msra.mxu0 %v3266
        %3614 = vmatprep.subr.mxu0 %v3269
        %3615 = vmatpush1.msra.mxu0 %v3268
        %3616 = vmatprep.subr.mxu0 %v3441
        %3617 = vmatpush1.msra.mxu0 %v3440
        %3618 = vmatprep.subr.mxu0 %v3443
        %3619 = vmatpush1.msra.mxu0 %v3442
        %3620 = vmatprep.subr.mxu0 %v3445
        %3621 = vmatpush1.msra.mxu0 %v3444
        %3622 = vmatprep.subr.mxu0 %v3447
        %3623 = vmatpush1.msra.mxu0 %v3446
        %3624 = vmatprep.subr.mxu0 %v3473
        %3625 = vmatpush1.msra.mxu0 %v3472
        %3626 = vmatprep.subr.mxu0 %v3475
        %3627 = vmatpush1.msra.mxu0 %v3474
        %3628 = vmatprep.subr.mxu0 %v3477
        %3629 = vmatpush1.msra.mxu0 %v3476
        %3630 = vmatprep.subr.mxu0 %v3479
        %3631 = vmatpush1.msra.mxu0 %v3478
        %3632 = vmatprep.subr.mxu0 %v3505
        %3633 = vmatpush1.msra.mxu0 %v3504
        %3634 = vmatprep.subr.mxu0 %v3507
        %3635 = vmatpush1.msra.mxu0 %v3506
        %3636 = vmatprep.subr.mxu0 %v3509
        %3637 = vmatpush1.msra.mxu0 %v3508
        %3638 = vmatprep.subr.mxu0 %v3511
        %3639 = vmatpush1.msra.mxu0 %v3510
        %3640 = vmatprep.mubr.f32.mxu0 %v3272
        %3641 = vmatmul.mubr.f32.gmra.mrb[0].mxu0 %v3271
        %v3642 = vpop.f32.mrb[0].mxu0
        %v3643 = vadd.f32 %v3547, %v3642
        %v3644 = vpop.f32.mrb[0].mxu0
        %v3645 = vadd.f32 %v3547, %v3644
        %3646 = vmatprep.mubr.f32.mxu0 %v3275
        %3647 = vmatmul.mubr.f32.gmra.mrb[0].mxu0 %v3274
        %v3648 = vpop.f32.mrb[0].mxu0
        %v3649 = vadd.f32 %v3552, %v3648
        %v3650 = vpop.f32.mrb[0].mxu0
        %v3651 = vadd.f32 %v3552, %v3650
        %3652 = vmatprep.mubr.f32.mxu0 %v3278
        %3653 = vmatmul.mubr.f32.gmra.mrb[0].mxu0 %v3277
        %v3654 = vpop.f32.mrb[0].mxu0
        %v3655 = vadd.f32 %v3557, %v3654
        %v3656 = vpop.f32.mrb[0].mxu0
        %v3657 = vadd.f32 %v3557, %v3656
        %3658 = vmatprep.mubr.f32.mxu0 %v3281
        %3659 = vmatmul.mubr.f32.gmra.mrb[0].mxu0 %v3280
        %v3660 = vpop.f32.mrb[0].mxu0
        %v3661 = vadd.f32 %v3562, %v3660
        %v3662 = vpop.f32.mrb[0].mxu0
        %v3663 = vadd.f32 %v3562, %v3662
        %3664 = vdwg.mxu0
        %3665 = vmatprep.subr.mxu0 %v3537
        %3666 = vmatpush1.msra.mxu0 %v3536
        %3667 = vmatprep.subr.mxu0 %v3539
        %3668 = vmatpush1.msra.mxu0 %v3538
        %3669 = vmatprep.subr.mxu0 %v3541
        %3670 = vmatpush1.msra.mxu0 %v3540
        %3671 = vmatprep.subr.mxu0 %v3543
        %3672 = vmatpush1.msra.mxu0 %v3542
        %3673 = vmatprep.subr.mxu0 0.0
        %3674 = vmatpush1.msra.mxu0 0.0
        %3675 = vmatprep.subr.mxu0 0.0
        %3676 = vmatpush1.msra.mxu0 0.0
        %3677 = vmatprep.subr.mxu0 0.0
        %3678 = vmatpush1.msra.mxu0 0.0
        %3679 = vmatprep.subr.mxu0 0.0
        %3680 = vmatpush1.msra.mxu0 0.0
        %3681 = vmatprep.subr.mxu0 0.0
        %3682 = vmatpush1.msra.mxu0 0.0
        %3683 = vmatprep.subr.mxu0 0.0
        %3684 = vmatpush1.msra.mxu0 0.0
        %3685 = vmatprep.subr.mxu0 0.0
        %3686 = vmatpush1.msra.mxu0 0.0
        %3687 = vmatprep.subr.mxu0 0.0
        %3688 = vmatpush1.msra.mxu0 0.0
        %3689 = vmatprep.subr.mxu0 0.0
        %3690 = vmatpush1.msra.mxu0 0.0
        %3691 = vmatprep.subr.mxu0 0.0
        %3692 = vmatpush1.msra.mxu0 0.0
        %3693 = vmatprep.subr.mxu0 0.0
        %3694 = vmatpush1.msra.mxu0 0.0
        %3695 = vmatprep.subr.mxu0 0.0
        %3696 = vmatpush1.msra.mxu0 0.0
        %3697 = vmatprep.subr.mxu0 0.0
        %3698 = vmatpush1.msra.mxu0 0.0
        %3699 = vmatprep.subr.mxu0 0.0
        %3700 = vmatpush1.msra.mxu0 0.0
        %3701 = vmatprep.subr.mxu0 0.0
        %3702 = vmatpush1.msra.mxu0 0.0
        %3703 = vmatprep.subr.mxu0 0.0
        %3704 = vmatpush1.msra.mxu0 0.0
        %3705 = vmatprep.subr.mxu0 0.0
        %3706 = vmatpush1.msra.mxu0 0.0
        %3707 = vmatprep.subr.mxu0 0.0
        %3708 = vmatpush1.msra.mxu0 0.0
        %3709 = vmatprep.subr.mxu0 0.0
        %3710 = vmatpush1.msra.mxu0 0.0
        %3711 = vmatprep.subr.mxu0 0.0
        %3712 = vmatpush1.msra.mxu0 0.0
        %3713 = vmatprep.subr.mxu0 0.0
        %3714 = vmatpush1.msra.mxu0 0.0
        %3715 = vmatprep.subr.mxu0 0.0
        %3716 = vmatpush1.msra.mxu0 0.0
        %3717 = vmatprep.subr.mxu0 0.0
        %3718 = vmatpush1.msra.mxu0 0.0
        %3719 = vmatprep.subr.mxu0 0.0
        %3720 = vmatpush1.msra.mxu0 0.0
        %3721 = vmatprep.subr.mxu0 0.0
        %3722 = vmatpush1.msra.mxu0 0.0
        %3723 = vmatprep.subr.mxu0 0.0
        %3724 = vmatpush1.msra.mxu0 0.0
        %3725 = vmatprep.subr.mxu0 0.0
        %3726 = vmatpush1.msra.mxu0 0.0
        %3727 = vmatprep.subr.mxu0 0.0
        %3728 = vmatpush1.msra.mxu0 0.0
        %3729 = vmatprep.mubr.f32.mxu0 0.0
        %3730 = vmatmul.mubr.f32.gmra.mrb[0].mxu0 %v3565
        %v3731 = vpop.f32.mrb[0].mxu0
        %v3732 = vadd.f32 %v3643, %v3731
        %v3733 = vpop.f32.mrb[0].mxu0
        %v3734 = vadd.f32 %v3645, %v3733
        %3735 = vmatprep.mubr.f32.mxu0 0.0
        %3736 = vmatmul.mubr.f32.gmra.mrb[0].mxu0 %v3568
        %v3737 = vpop.f32.mrb[0].mxu0
        %v3738 = vadd.f32 %v3649, %v3737
        %v3739 = vpop.f32.mrb[0].mxu0
        %v3740 = vadd.f32 %v3651, %v3739
        %3741 = vmatprep.mubr.f32.mxu0 0.0
        %3742 = vmatmul.mubr.f32.gmra.mrb[0].mxu0 %v3571
        %v3743 = vpop.f32.mrb[0].mxu0
        %v3744 = vadd.f32 %v3655, %v3743
        %v3745 = vpop.f32.mrb[0].mxu0
        %v3746 = vadd.f32 %v3657, %v3745
        %3747 = vmatprep.mubr.f32.mxu0 0.0
        %3748 = vmatmul.mubr.f32.gmra.mrb[0].mxu0 %v3574
        %v3749 = vpop.f32.mrb[0].mxu0
        %v3750 = vadd.f32 %v3661, %v3749
        %v3751 = vpop.f32.mrb[0].mxu0
        %v3752 = vadd.f32 %v3663, %v3751
        %3753 = vdwg.mxu0
        %v3754 = vmax.f32 %v3732, 0.0
        %v3755 = vmax.f32 %v3734, 0.0
        %v3756 = vmax.f32 %v3738, 0.0
        %v3757 = vmax.f32 %v3740, 0.0
        %v3758 = vmax.f32 %v3744, 0.0
        %v3759 = vmax.f32 %v3746, 0.0
        %v3760 = vmax.f32 %v3750, 0.0
        %v3761 = vmax.f32 %v3752, 0.0
        %v3762 = vld [vmem:[%s6] sm:$0x7]
        %v3763 = vld [vmem:[#allocation2] sm:$0x1]
        %3764 = vrot.lane.b32.xlu0 %v3754, 34
        %v3765 = vpop.permute.xlu0 %3764
        %3766 = vrot.lane.b32.xlu0 %v3756, 34
        %v3767 = vpop.permute.xlu0 %3766
        %3768 = vrot.lane.b32.xlu0 %v3758, 34
        %v3769 = vpop.permute.xlu0 %3768
        %3770 = vrot.lane.b32.xlu0 %v3760, 34
        %v3771 = vpop.permute.xlu0 %3770
        %3772 = vrot.lane.b32.xlu0 %v3755, 34
        %v3773 = vpop.permute.xlu0 %3772
        %3774 = vrot.lane.b32.xlu0 %v3757, 34
        %v3775 = vpop.permute.xlu0 %3774
        %3776 = vrot.lane.b32.xlu0 %v3759, 34
        %v3777 = vpop.permute.xlu0 %3776
        %3778 = vrot.lane.b32.xlu0 %v3761, 34
        %v3779 = vpop.permute.xlu0 %3778
        %v3780 = vsel %vm771, %v3765, %v3773
        %v3781 = vsel %vm771, %v3767, %v3775
        %v3782 = vsel %vm771, %v3769, %v3777
        %v3783 = vsel %vm771, %v3771, %v3779
        %v3784 = vsel %vm771, %v3773, %v3765
        %v3785 = vsel %vm771, %v3775, %v3767
        %v3786 = vsel %vm771, %v3777, %v3769
        %v3787 = vsel %vm771, %v3779, %v3771
        %v3788 = vmul.f32 %v3784, %v783
        %v3789 = vmul.f32 %v3780, %v787
        %v3790 = vmul.f32 %v3785, %v783
        %v3791 = vmul.f32 %v3781, %v787
        %v3792 = vmul.f32 %v3786, %v783
        %v3793 = vmul.f32 %v3782, %v787
        %v3794 = vmul.f32 %v3787, %v783
        %v3795 = vmul.f32 %v3783, %v787
        %3796 = vrot.lane.b32.xlu0 %v3754, 32
        %v3797 = vpop.permute.xlu0 %3796
        %3798 = vrot.lane.b32.xlu0 %v3756, 32
        %v3799 = vpop.permute.xlu0 %3798
        %3800 = vrot.lane.b32.xlu0 %v3758, 32
        %v3801 = vpop.permute.xlu0 %3800
        %3802 = vrot.lane.b32.xlu0 %v3760, 32
        %v3803 = vpop.permute.xlu0 %3802
        %3804 = vrot.lane.b32.xlu0 %v3755, 32
        %v3805 = vpop.permute.xlu0 %3804
        %3806 = vrot.lane.b32.xlu0 %v3757, 32
        %v3807 = vpop.permute.xlu0 %3806
        %3808 = vrot.lane.b32.xlu0 %v3759, 32
        %v3809 = vpop.permute.xlu0 %3808
        %3810 = vrot.lane.b32.xlu0 %v3761, 32
        %v3811 = vpop.permute.xlu0 %3810
        %v3812 = vsel %vm812, %v3797, %v3805
        %v3813 = vsel %vm812, %v3799, %v3807
        %v3814 = vsel %vm812, %v3801, %v3809
        %v3815 = vsel %vm812, %v3803, %v3811
        %v3816 = vsel %vm812, %v3805, %v3797
        %v3817 = vsel %vm812, %v3807, %v3799
        %v3818 = vsel %vm812, %v3809, %v3801
        %v3819 = vsel %vm812, %v3811, %v3803
        %v3820 = vmul.f32 %v3816, %v824
        %v3821 = vmul.f32 %v3812, %v828
        %v3822 = vmul.f32 %v3817, %v824
        %v3823 = vmul.f32 %v3813, %v828
        %v3824 = vmul.f32 %v3818, %v824
        %v3825 = vmul.f32 %v3814, %v828
        %v3826 = vmul.f32 %v3819, %v824
        %v3827 = vmul.f32 %v3815, %v828
        %3828 = vrot.lane.b32.xlu0 %v3754, 30
        %v3829 = vpop.permute.xlu0 %3828
        %3830 = vrot.lane.b32.xlu0 %v3756, 30
        %v3831 = vpop.permute.xlu0 %3830
        %3832 = vrot.lane.b32.xlu0 %v3758, 30
        %v3833 = vpop.permute.xlu0 %3832
        %3834 = vrot.lane.b32.xlu0 %v3760, 30
        %v3835 = vpop.permute.xlu0 %3834
        %3836 = vrot.lane.b32.xlu0 %v3755, 30
        %v3837 = vpop.permute.xlu0 %3836
        %3838 = vrot.lane.b32.xlu0 %v3757, 30
        %v3839 = vpop.permute.xlu0 %3838
        %3840 = vrot.lane.b32.xlu0 %v3759, 30
        %v3841 = vpop.permute.xlu0 %3840
        %3842 = vrot.lane.b32.xlu0 %v3761, 30
        %v3843 = vpop.permute.xlu0 %3842
        %v3844 = vsel %vm853, %v3829, %v3837
        %v3845 = vsel %vm853, %v3831, %v3839
        %v3846 = vsel %vm853, %v3833, %v3841
        %v3847 = vsel %vm853, %v3835, %v3843
        %v3848 = vsel %vm853, %v3837, %v3829
        %v3849 = vsel %vm853, %v3839, %v3831
        %v3850 = vsel %vm853, %v3841, %v3833
        %v3851 = vsel %vm853, %v3843, %v3835
        %v3852 = vmul.f32 %v3848, %v865
        %v3853 = vmul.f32 %v3844, %v869
        %v3854 = vmul.f32 %v3849, %v865
        %v3855 = vmul.f32 %v3845, %v869
        %v3856 = vmul.f32 %v3850, %v865
        %v3857 = vmul.f32 %v3846, %v869
        %v3858 = vmul.f32 %v3851, %v865
        %v3859 = vmul.f32 %v3847, %v869
        %3860 = vrot.lane.b32.xlu0 %v3754, 2
        %v3861 = vpop.permute.xlu0 %3860
        %3862 = vrot.lane.b32.xlu0 %v3756, 2
        %v3863 = vpop.permute.xlu0 %3862
        %3864 = vrot.lane.b32.xlu0 %v3758, 2
        %v3865 = vpop.permute.xlu0 %3864
        %3866 = vrot.lane.b32.xlu0 %v3760, 2
        %v3867 = vpop.permute.xlu0 %3866
        %3868 = vrot.lane.b32.xlu0 %v3755, 2
        %v3869 = vpop.permute.xlu0 %3868
        %3870 = vrot.lane.b32.xlu0 %v3757, 2
        %v3871 = vpop.permute.xlu0 %3870
        %3872 = vrot.lane.b32.xlu0 %v3759, 2
        %v3873 = vpop.permute.xlu0 %3872
        %3874 = vrot.lane.b32.xlu0 %v3761, 2
        %v3875 = vpop.permute.xlu0 %3874
        %v3876 = vsel %vm894, %v3861, %v3869
        %v3877 = vsel %vm894, %v3863, %v3871
        %v3878 = vsel %vm894, %v3865, %v3873
        %v3879 = vsel %vm894, %v3867, %v3875
        %v3880 = vsel %vm894, %v3869, %v3861
        %v3881 = vsel %vm894, %v3871, %v3863
        %v3882 = vsel %vm894, %v3873, %v3865
        %v3883 = vsel %vm894, %v3875, %v3867
        %v3884 = vmul.f32 %v3880, %v906
        %v3885 = vmul.f32 %v3876, %v910
        %v3886 = vmul.f32 %v3881, %v906
        %v3887 = vmul.f32 %v3877, %v910
        %v3888 = vmul.f32 %v3882, %v906
        %v3889 = vmul.f32 %v3878, %v910
        %v3890 = vmul.f32 %v3883, %v906
        %v3891 = vmul.f32 %v3879, %v910
        %3892 = vrot.lane.b32.xlu0 %v3754, 126
        %v3893 = vpop.permute.xlu0 %3892
        %3894 = vrot.lane.b32.xlu0 %v3756, 126
        %v3895 = vpop.permute.xlu0 %3894
        %3896 = vrot.lane.b32.xlu0 %v3758, 126
        %v3897 = vpop.permute.xlu0 %3896
        %3898 = vrot.lane.b32.xlu0 %v3760, 126
        %v3899 = vpop.permute.xlu0 %3898
        %3900 = vrot.lane.b32.xlu0 %v3755, 126
        %v3901 = vpop.permute.xlu0 %3900
        %3902 = vrot.lane.b32.xlu0 %v3757, 126
        %v3903 = vpop.permute.xlu0 %3902
        %3904 = vrot.lane.b32.xlu0 %v3759, 126
        %v3905 = vpop.permute.xlu0 %3904
        %3906 = vrot.lane.b32.xlu0 %v3761, 126
        %v3907 = vpop.permute.xlu0 %3906
        %v3908 = vsel %vm935, %v3893, %v3901
        %v3909 = vsel %vm935, %v3895, %v3903
        %v3910 = vsel %vm935, %v3897, %v3905
        %v3911 = vsel %vm935, %v3899, %v3907
        %v3912 = vsel %vm935, %v3901, %v3893
        %v3913 = vsel %vm935, %v3903, %v3895
        %v3914 = vsel %vm935, %v3905, %v3897
        %v3915 = vsel %vm935, %v3907, %v3899
        %v3916 = vmul.f32 %v3908, %v947
        %v3917 = vmul.f32 %v3912, %v951
        %v3918 = vmul.f32 %v3909, %v947
        %v3919 = vmul.f32 %v3913, %v951
        %v3920 = vmul.f32 %v3910, %v947
        %v3921 = vmul.f32 %v3914, %v951
        %v3922 = vmul.f32 %v3911, %v947
        %v3923 = vmul.f32 %v3915, %v951
        %3924 = vrot.lane.b32.xlu0 %v3754, 98
        %v3925 = vpop.permute.xlu0 %3924
        %3926 = vrot.lane.b32.xlu0 %v3756, 98
        %v3927 = vpop.permute.xlu0 %3926
        %3928 = vrot.lane.b32.xlu0 %v3758, 98
        %v3929 = vpop.permute.xlu0 %3928
        %3930 = vrot.lane.b32.xlu0 %v3760, 98
        %v3931 = vpop.permute.xlu0 %3930
        %3932 = vrot.lane.b32.xlu0 %v3755, 98
        %v3933 = vpop.permute.xlu0 %3932
        %3934 = vrot.lane.b32.xlu0 %v3757, 98
        %v3935 = vpop.permute.xlu0 %3934
        %3936 = vrot.lane.b32.xlu0 %v3759, 98
        %v3937 = vpop.permute.xlu0 %3936
        %3938 = vrot.lane.b32.xlu0 %v3761, 98
        %v3939 = vpop.permute.xlu0 %3938
        %v3940 = vsel %vm976, %v3925, %v3933
        %v3941 = vsel %vm976, %v3927, %v3935
        %v3942 = vsel %vm976, %v3929, %v3937
        %v3943 = vsel %vm976, %v3931, %v3939
        %v3944 = vsel %vm976, %v3933, %v3925
        %v3945 = vsel %vm976, %v3935, %v3927
        %v3946 = vsel %vm976, %v3937, %v3929
        %v3947 = vsel %vm976, %v3939, %v3931
        %v3948 = vmul.f32 %v3940, %v988
        %v3949 = vmul.f32 %v3944, %v992
        %v3950 = vmul.f32 %v3941, %v988
        %v3951 = vmul.f32 %v3945, %v992
        %v3952 = vmul.f32 %v3942, %v988
        %v3953 = vmul.f32 %v3946, %v992
        %v3954 = vmul.f32 %v3943, %v988
        %v3955 = vmul.f32 %v3947, %v992
        %3956 = vrot.lane.b32.xlu0 %v3754, 96
        %v3957 = vpop.permute.xlu0 %3956
        %3958 = vrot.lane.b32.xlu0 %v3756, 96
        %v3959 = vpop.permute.xlu0 %3958
        %3960 = vrot.lane.b32.xlu0 %v3758, 96
        %v3961 = vpop.permute.xlu0 %3960
        %3962 = vrot.lane.b32.xlu0 %v3760, 96
        %v3963 = vpop.permute.xlu0 %3962
        %3964 = vrot.lane.b32.xlu0 %v3755, 96
        %v3965 = vpop.permute.xlu0 %3964
        %3966 = vrot.lane.b32.xlu0 %v3757, 96
        %v3967 = vpop.permute.xlu0 %3966
        %3968 = vrot.lane.b32.xlu0 %v3759, 96
        %v3969 = vpop.permute.xlu0 %3968
        %3970 = vrot.lane.b32.xlu0 %v3761, 96
        %v3971 = vpop.permute.xlu0 %3970
        %v3972 = vsel %vm1017, %v3957, %v3965
        %v3973 = vsel %vm1017, %v3959, %v3967
        %v3974 = vsel %vm1017, %v3961, %v3969
        %v3975 = vsel %vm1017, %v3963, %v3971
        %v3976 = vsel %vm1017, %v3965, %v3957
        %v3977 = vsel %vm1017, %v3967, %v3959
        %v3978 = vsel %vm1017, %v3969, %v3961
        %v3979 = vsel %vm1017, %v3971, %v3963
        %v3980 = vmul.f32 %v3972, %v1029
        %v3981 = vmul.f32 %v3976, %v1033
        %v3982 = vmul.f32 %v3973, %v1029
        %v3983 = vmul.f32 %v3977, %v1033
        %v3984 = vmul.f32 %v3974, %v1029
        %v3985 = vmul.f32 %v3978, %v1033
        %v3986 = vmul.f32 %v3975, %v1029
        %v3987 = vmul.f32 %v3979, %v1033
        %3988 = vrot.lane.b32.xlu0 %v3754, 94
        %v3989 = vpop.permute.xlu0 %3988
        %3990 = vrot.lane.b32.xlu0 %v3756, 94
        %v3991 = vpop.permute.xlu0 %3990
        %3992 = vrot.lane.b32.xlu0 %v3758, 94
        %v3993 = vpop.permute.xlu0 %3992
        %3994 = vrot.lane.b32.xlu0 %v3760, 94
        %v3995 = vpop.permute.xlu0 %3994
        %3996 = vrot.lane.b32.xlu0 %v3755, 94
        %v3997 = vpop.permute.xlu0 %3996
        %3998 = vrot.lane.b32.xlu0 %v3757, 94
        %v3999 = vpop.permute.xlu0 %3998
        %4000 = vrot.lane.b32.xlu0 %v3759, 94
        %v4001 = vpop.permute.xlu0 %4000
        %4002 = vrot.lane.b32.xlu0 %v3761, 94
        %v4003 = vpop.permute.xlu0 %4002
        %v4004 = vsel %vm1058, %v3989, %v3997
        %v4005 = vsel %vm1058, %v3991, %v3999
        %v4006 = vsel %vm1058, %v3993, %v4001
        %v4007 = vsel %vm1058, %v3995, %v4003
        %v4008 = vsel %vm1058, %v3997, %v3989
        %v4009 = vsel %vm1058, %v3999, %v3991
        %v4010 = vsel %vm1058, %v4001, %v3993
        %v4011 = vsel %vm1058, %v4003, %v3995
        %v4012 = vmul.f32 %v4004, %v1070
        %v4013 = vmul.f32 %v4008, %v1074
        %v4014 = vmul.f32 %v4005, %v1070
        %v4015 = vmul.f32 %v4009, %v1074
        %v4016 = vmul.f32 %v4006, %v1070
        %v4017 = vmul.f32 %v4010, %v1074
        %v4018 = vmul.f32 %v4007, %v1070
        %v4019 = vmul.f32 %v4011, %v1074
        %4021 = vset.pattern.permute.xlu0 0
        %4022 = vperm.xlu0 %4021, %v3763
        %v4023 = vpop.permute.xlu0 %4022
        %v4025 = vlaneseq
        %v4026 = vshrl.u32 %v4025, 7
        %v4027 = vsub.s32 0, %v4026
        %v4028 = vrot.slane %v4023, %v4027
        %v4030 = vlaneseq
        %v4031 = vshrl.u32 %v4030, 7
        %v4032 = vsub.s32 0, %v4031
        %v4033 = vrot.slane %v3762, %v4032
        %v4034 = vlaneseq
        %v4035 = vshrl.u32 %v4034, 7
        %v4036 = vsub.s32 1, %v4035
        %v4037 = vrot.slane %v3762, %v4036
        %v4038 = vlaneseq
        %v4039 = vshrl.u32 %v4038, 7
        %v4040 = vsub.s32 2, %v4039
        %v4041 = vrot.slane %v3762, %v4040
        %v4044 = vsel %vm1103, %v4041, 0
        %4046 = vmatprep.subr.mxu0 %v3789
        %4047 = vmatpush1.msra.mxu0 %v3788
        %4048 = vmatprep.subr.mxu0 %v3791
        %4049 = vmatpush1.msra.mxu0 %v3790
        %4050 = vmatprep.subr.mxu0 %v3793
        %4051 = vmatpush1.msra.mxu0 %v3792
        %4052 = vmatprep.subr.mxu0 %v3795
        %4053 = vmatpush1.msra.mxu0 %v3794
        %4054 = vmatprep.subr.mxu0 %v3821
        %4055 = vmatpush1.msra.mxu0 %v3820
        %4056 = vmatprep.subr.mxu0 %v3823
        %4057 = vmatpush1.msra.mxu0 %v3822
        %4058 = vmatprep.subr.mxu0 %v3825
        %4059 = vmatpush1.msra.mxu0 %v3824
        %4060 = vmatprep.subr.mxu0 %v3827
        %4061 = vmatpush1.msra.mxu0 %v3826
        %4062 = vmatprep.subr.mxu0 %v3853
        %4063 = vmatpush1.msra.mxu0 %v3852
        %4064 = vmatprep.subr.mxu0 %v3855
        %4065 = vmatpush1.msra.mxu0 %v3854
        %4066 = vmatprep.subr.mxu0 %v3857
        %4067 = vmatpush1.msra.mxu0 %v3856
        %4068 = vmatprep.subr.mxu0 %v3859
        %4069 = vmatpush1.msra.mxu0 %v3858
        %4070 = vmatprep.subr.mxu0 %v3885
        %4071 = vmatpush1.msra.mxu0 %v3884
        %4072 = vmatprep.subr.mxu0 %v3887
        %4073 = vmatpush1.msra.mxu0 %v3886
        %4074 = vmatprep.subr.mxu0 %v3889
        %4075 = vmatpush1.msra.mxu0 %v3888
        %4076 = vmatprep.subr.mxu0 %v3891
        %4077 = vmatpush1.msra.mxu0 %v3890
        %4078 = vmatprep.subr.mxu0 %v3755
        %4079 = vmatpush1.msra.mxu0 %v3754
        %4080 = vmatprep.subr.mxu0 %v3757
        %4081 = vmatpush1.msra.mxu0 %v3756
        %4082 = vmatprep.subr.mxu0 %v3759
        %4083 = vmatpush1.msra.mxu0 %v3758
        %4084 = vmatprep.subr.mxu0 %v3761
        %4085 = vmatpush1.msra.mxu0 %v3760
        %4086 = vmatprep.subr.mxu0 %v3917
        %4087 = vmatpush1.msra.mxu0 %v3916
        %4088 = vmatprep.subr.mxu0 %v3919
        %4089 = vmatpush1.msra.mxu0 %v3918
        %4090 = vmatprep.subr.mxu0 %v3921
        %4091 = vmatpush1.msra.mxu0 %v3920
        %4092 = vmatprep.subr.mxu0 %v3923
        %4093 = vmatpush1.msra.mxu0 %v3922
        %4094 = vmatprep.subr.mxu0 %v3949
        %4095 = vmatpush1.msra.mxu0 %v3948
        %4096 = vmatprep.subr.mxu0 %v3951
        %4097 = vmatpush1.msra.mxu0 %v3950
        %4098 = vmatprep.subr.mxu0 %v3953
        %4099 = vmatpush1.msra.mxu0 %v3952
        %4100 = vmatprep.subr.mxu0 %v3955
        %4101 = vmatpush1.msra.mxu0 %v3954
        %4102 = vmatprep.subr.mxu0 %v3981
        %4103 = vmatpush1.msra.mxu0 %v3980
        %4104 = vmatprep.subr.mxu0 %v3983
        %4105 = vmatpush1.msra.mxu0 %v3982
        %4106 = vmatprep.subr.mxu0 %v3985
        %4107 = vmatpush1.msra.mxu0 %v3984
        %4108 = vmatprep.subr.mxu0 %v3987
        %4109 = vmatpush1.msra.mxu0 %v3986
        %4110 = vmatprep.mubr.f32.mxu0 %v4037
        %4111 = vmatmul.mubr.f32.gmra.mrb[0].mxu0 %v4033
        %v4112 = vpop.f32.mrb[0].mxu0
        %v4113 = vadd.f32 %v4028, %v4112
        %v4114 = vpop.f32.mrb[0].mxu0
        %v4115 = vadd.f32 %v4028, %v4114
        %4116 = vdwg.mxu0
        %4117 = vmatprep.subr.mxu0 %v4013
        %4118 = vmatpush1.msra.mxu0 %v4012
        %4119 = vmatprep.subr.mxu0 %v4015
        %4120 = vmatpush1.msra.mxu0 %v4014
        %4121 = vmatprep.subr.mxu0 %v4017
        %4122 = vmatpush1.msra.mxu0 %v4016
        %4123 = vmatprep.subr.mxu0 %v4019
        %4124 = vmatpush1.msra.mxu0 %v4018
        %4125 = vmatprep.subr.mxu0 0.0
        %4126 = vmatpush1.msra.mxu0 0.0
        %4127 = vmatprep.subr.mxu0 0.0
        %4128 = vmatpush1.msra.mxu0 0.0
        %4129 = vmatprep.subr.mxu0 0.0
        %4130 = vmatpush1.msra.mxu0 0.0
        %4131 = vmatprep.subr.mxu0 0.0
        %4132 = vmatpush1.msra.mxu0 0.0
        %4133 = vmatprep.subr.mxu0 0.0
        %4134 = vmatpush1.msra.mxu0 0.0
        %4135 = vmatprep.subr.mxu0 0.0
        %4136 = vmatpush1.msra.mxu0 0.0
        %4137 = vmatprep.subr.mxu0 0.0
        %4138 = vmatpush1.msra.mxu0 0.0
        %4139 = vmatprep.subr.mxu0 0.0
        %4140 = vmatpush1.msra.mxu0 0.0
        %4141 = vmatprep.subr.mxu0 0.0
        %4142 = vmatpush1.msra.mxu0 0.0
        %4143 = vmatprep.subr.mxu0 0.0
        %4144 = vmatpush1.msra.mxu0 0.0
        %4145 = vmatprep.subr.mxu0 0.0
        %4146 = vmatpush1.msra.mxu0 0.0
        %4147 = vmatprep.subr.mxu0 0.0
        %4148 = vmatpush1.msra.mxu0 0.0
        %4149 = vmatprep.subr.mxu0 0.0
        %4150 = vmatpush1.msra.mxu0 0.0
        %4151 = vmatprep.subr.mxu0 0.0
        %4152 = vmatpush1.msra.mxu0 0.0
        %4153 = vmatprep.subr.mxu0 0.0
        %4154 = vmatpush1.msra.mxu0 0.0
        %4155 = vmatprep.subr.mxu0 0.0
        %4156 = vmatpush1.msra.mxu0 0.0
        %4157 = vmatprep.subr.mxu0 0.0
        %4158 = vmatpush1.msra.mxu0 0.0
        %4159 = vmatprep.subr.mxu0 0.0
        %4160 = vmatpush1.msra.mxu0 0.0
        %4161 = vmatprep.subr.mxu0 0.0
        %4162 = vmatpush1.msra.mxu0 0.0
        %4163 = vmatprep.subr.mxu0 0.0
        %4164 = vmatpush1.msra.mxu0 0.0
        %4165 = vmatprep.subr.mxu0 0.0
        %4166 = vmatpush1.msra.mxu0 0.0
        %4167 = vmatprep.subr.mxu0 0.0
        %4168 = vmatpush1.msra.mxu0 0.0
        %4169 = vmatprep.subr.mxu0 0.0
        %4170 = vmatpush1.msra.mxu0 0.0
        %4171 = vmatprep.subr.mxu0 0.0
        %4172 = vmatpush1.msra.mxu0 0.0
        %4173 = vmatprep.subr.mxu0 0.0
        %4174 = vmatpush1.msra.mxu0 0.0
        %4175 = vmatprep.subr.mxu0 0.0
        %4176 = vmatpush1.msra.mxu0 0.0
        %4177 = vmatprep.subr.mxu0 0.0
        %4178 = vmatpush1.msra.mxu0 0.0
        %4179 = vmatprep.subr.mxu0 0.0
        %4180 = vmatpush1.msra.mxu0 0.0
        %4181 = vmatprep.mubr.f32.mxu0 0.0
        %4182 = vmatmul.mubr.f32.gmra.mrb[0].mxu0 %v4044
        %v4183 = vpop.f32.mrb[0].mxu0
        %v4184 = vadd.f32 %v4113, %v4183
        %v4185 = vpop.f32.mrb[0].mxu0
        %v4186 = vadd.f32 %v4115, %v4185
        %4187 = vdwg.mxu0
        %v4190 = vcombine.low %v4184, %v4186
        %v4192 = vunpack.c.l.s4 1966171168
        %v4193 = vunpack.c.0.s8 %v4192
        %v4194 = vlaneseq
        %v4195 = vshrl.u32 %v4194, 7
        %v4196 = vsub.s32 %v4193, %v4195
        %v4197 = vrot.slane %v4190, %v4196
        %v4199 = vunpack.c.l.s4 1966171168
        %v4200 = vunpack.c.0.s8 %v4199
        %v4201 = vlaneseq
        %v4202 = vshrl.u32 %v4201, 7
        %v4203 = vsub.s32 %v4200, %v4202
        %v4204 = vrot.slane %v4197, %v4203
        %v4206 = vlaneseq
        %vm4207 = vcmp.ge.s32.totalorder %v4206, 0
        %vm4208 = vcmp.lt.s32.totalorder %v4206, 256
        %vm4209 = vmand %vm4207, %vm4208
        %4210 = vst.msk [vmem:[%s315] sm:$0x3] %vm4209, %v4204
        %s4211 = sand.u32 %s206, 1
        %s4212 = scalar_lea.sflag [#allocation5], %s4211
        %s4213 = sand.u32 %s206, 1
        %s4214 = smul.addr %s4213, 2
        %s4215 = scalar_lea.vmem [#allocation6], %s4214
        // Predicated region
        $region57: #{tpu_custom_call.1} parent=51 // pred_check
          %p4216 = pneg %p216
        $region58: #{tpu_custom_call.1} parent=51 // pred_check_branch
          %4218 = sbr.rel (%p4216) target = $region60
        $region59: #{tpu_custom_call.1} parent=51 // pred_region
          %s4220 = ssub.s32 32, 32
          %4221 = vsyncadd %s4212, %s4220
          %s4222 = smul.addr %s25, 2
          %s4223 = smul.addr %s4222, 16
          %s4224 = scalar_lea.hbm %s8, %s4223
          %s4226 = sshll.u32 %s4215, 4
          %s4227 = int_to_ptr.vmem [resolvable:$true] %s4226
          %4229 = dma.vmem_to_hbm [thread:$0]  %s4227, 32, %s4224, %s4212
        $region60: #{tpu_custom_call.1} parent=51 // pred_fallthru
          _
      $region52: #{tpu_custom_call.1} parent=5 // pred_fallthru
        _
      %p4230 = scmp.le.s32.totalorder 2, %s20
      // Predicated region
      $region61: #{tpu_custom_call.1} parent=5 // pred_check
        %p4231 = pneg %p4230
      $region62: #{tpu_custom_call.1} parent=5 // pred_check_branch
        %4233 = sbr.rel (%p4231) target = $region64
      $region63: #{tpu_custom_call.1} parent=5 // pred_region
        %s4234 = ssub.s32 %s20, 2
        // Predicated region
        $region65: #{tpu_custom_call.1} parent=63 // pred_check
          %p4235 = pneg %p222
        $region66: #{tpu_custom_call.1} parent=63 // pred_check_branch
          %4237 = sbr.rel (%p4235) target = $region68
        $region67: #{tpu_custom_call.1} parent=63 // pred_region
          %s4238 = sand.u32 %s207, 1
          %s4239 = scalar_lea.sflag [#allocation5], %s4238
          %s4240 = sand.u32 %s207, 1
          %s4241 = smul.addr %s4240, 2
          %s4242 = scalar_lea.vmem [#allocation6], %s4241
          %4243 = dma.done %s4239, 32
        $region68: #{tpu_custom_call.1} parent=63 // pred_fallthru
          _
      $region64: #{tpu_custom_call.1} parent=5 // pred_fallthru
        _
    $region6: #{tpu_custom_call.1} parent=1 // loop_footer
      %s24 = sadd.s32 1, %s20
    $region7: #{tpu_custom_call.1} parent=1 // loop_footer_branch
      %19 = sbr.rel target = $region3
    $region8: #{tpu_custom_call.1} parent=1 // loop_exit
      _
    %4244 = vsyncpa [#allocation4], 1
    %s4245 = scalar_lea.sflag [#allocation4], 1
    %4246 = vsyncpa %s4245, 1
    %4247 = vsyncpa [#allocation5], 1
    %s4248 = scalar_lea.sflag [#allocation5], 1
    %4249 = vsyncpa %s4248, 1

</llo_original>
